<compile_context>
chip_gen: v6e
topology: v6e:2x2x1
jax: 0.10.0
libtpu: 0.0.40
codegen_flags: <defaults>
</compile_context>

<pallas_src>
import functools

import jax
import jax.numpy as jnp
import numpy as np
from jax.experimental import pallas as pl
from jax.experimental.pallas import tpu as pltpu


def _round_up(x, m):
    return ((x + m - 1) // m) * m


def _plan_time_block(S, Bp, Hp, *, vmem_budget_bytes, max_time_block):
    """Pick timesteps-per-grid-step T and a VMEM limit from a budget."""
    # Per-timestep pipelined VMEM (bf16): gi blocks (2 dirs x 2 bufs x 3Hp)
    # + output blocks (2 dirs x 2 bufs x Hp)  = 32 * Bp * Hp bytes.
    per_t = 32 * Bp * Hp
    # Fixed: bf16 W_hh x2 directions (single-buffered) + f32 carries + slack.
    fixed = 12 * Hp * Hp + 8 * Bp * Hp + (1 << 20)
    budget_cap = max(1, (vmem_budget_bytes - fixed) // per_t)
    # Unrolled-body register-pressure heuristic: shrink T when (Bp,Hp) tensors
    # span many vregs (static Python loops do not bound live ranges).
    vregs = max(1, (Bp // 8) * (Hp // 128))
    unroll_cap = 32 if vregs <= 4 else (16 if vregs <= 16 else 8)
    t_cap = int(max(1, min(budget_cap, unroll_cap, max_time_block, S)))
    # Prefer a divisor of S (no tail padding); otherwise pad S up to t_cap.
    best_div = max(d for d in range(1, t_cap + 1) if S % d == 0)
    T = best_div if best_div >= min(8, t_cap) else t_cap
    need = per_t * T + fixed
    vmem_limit = int(min(max(need + (4 << 20), 32 << 20), 112 << 20))
    return T, vmem_limit


# ----------------------------------------------------------------------------
# Pallas kernel: one grid step == T GRU time steps (both directions).
# ----------------------------------------------------------------------------
def _bigru_kernel(
    gif_ref, gib_ref,                 # (T, Bp, 3Hp) bf16 precomputed input gates
    whhf_ref, bhnf_ref,               # forward  recurrent weights (Hp,3Hp) bf16, n-bias (1,Hp) f32
    whhb_ref, bhnb_ref,               # backward recurrent weights / n-bias
    out_f_ref, out_b_ref,             # (T, Bp, Hp) bf16 output streams
    hf_scr, hb_scr,                   # (Bp, Hp) f32 VMEM hidden carries
    *, hidden_pad, t_block,
):
    Hp = hidden_pad
    j = pl.program_id(0)

    @pl.when(j == 0)
    def _init():
        hf_scr[...] = jnp.zeros_like(hf_scr)
        hb_scr[...] = jnp.zeros_like(hb_scr)

    Bp = hf_scr.shape[0]
    # Hoisted once per block: n-gate hidden bias, broadcast to (Bp, Hp).
    bhn_f = jnp.broadcast_to(bhnf_ref[...], (Bp, Hp))
    bhn_b = jnp.broadcast_to(bhnb_ref[...], (Bp, Hp))

    def gru_step(gi_raw, h, whh_ref, bhn):
        # gi already contains x @ W_ih + b_ih (+ b_hh for r,z gates).
        gi = gi_raw.astype(jnp.float32)
        gh = jnp.dot(h.astype(jnp.bfloat16), whh_ref[...],
                     preferred_element_type=jnp.float32)
        r = jax.nn.sigmoid(gi[:, 0 * Hp:1 * Hp] + gh[:, 0 * Hp:1 * Hp])
        z = jax.nn.sigmoid(gi[:, 1 * Hp:2 * Hp] + gh[:, 1 * Hp:2 * Hp])
        n = jnp.tanh(gi[:, 2 * Hp:3 * Hp] + r * (gh[:, 2 * Hp:3 * Hp] + bhn))
        return (1.0 - z) * n + z * h

    # Register-carried hidden states across the statically unrolled block;
    # scratch is touched only once at block entry / exit.
    hf = hf_scr[...]
    hb = hb_scr[...]
    for i in range(t_block):
        hf = gru_step(gif_ref[i], hf, whhf_ref, bhn_f)
        out_f_ref[i] = hf.astype(out_f_ref.dtype)

        ib = t_block - 1 - i   # backward direction walks its block in reverse
        hb = gru_step(gib_ref[ib], hb, whhb_ref, bhn_b)
        out_b_ref[ib] = hb.astype(out_b_ref.dtype)
    hf_scr[...] = hf
    hb_scr[...] = hb


# ----------------------------------------------------------------------------
# Parameter packing (padding + bias folding), done once in the wrapper.
# ----------------------------------------------------------------------------
def _pack_dir_params(wih, whh, bih, bhh, H, Hp):
    """Pad per-gate to Hp lanes; fold r/z hidden biases into the input bias.

    Returns:
      wih_p : (E, 3Hp)  f32   input weights, gate-padded
      b_in  : (1, 3Hp)  f32   input bias (r,z include b_hh; n only b_ih)
      whh_p : (Hp, 3Hp) bf16  recurrent weights, row+gate padded
      bhn   : (1, Hp)   f32   n-gate hidden bias
    """
    def pad_gate_cols(w):  # (rows, 3H) -> (rows, 3Hp)
        r = w.shape[0]
        w3 = w.reshape(r, 3, H)
        out = jnp.zeros((r, 3, Hp), jnp.float32).at[:, :, :H].set(w3)
        return out.reshape(r, 3 * Hp)

    wih_p = pad_gate_cols(wih)
    whh_p = (jnp.zeros((Hp, 3 * Hp), jnp.float32)
             .at[:H, :].set(pad_gate_cols(whh))).astype(jnp.bfloat16)

    bi = bih.reshape(3, H)
    bh = bhh.reshape(3, H)
    b_in = jnp.zeros((3, Hp), jnp.float32)
    b_in = b_in.at[0, :H].set(bi[0] + bh[0])   # r: fold b_hh_r
    b_in = b_in.at[1, :H].set(bi[1] + bh[1])   # z: fold b_hh_z
    b_in = b_in.at[2, :H].set(bi[2])           # n: keep b_ih_n only
    bhn = jnp.zeros((1, Hp), jnp.float32).at[0, :H].set(bh[2])
    return wih_p, b_in.reshape(1, 3 * Hp), whh_p, bhn


# ----------------------------------------------------------------------------
# Wrapper
# ----------------------------------------------------------------------------
def encoder_forward(src, params, *, emb_dim, hidden_size,
                    max_time_block=64, vmem_budget_bytes=48 * 1024 * 1024):
    """src: int32 [S, B].  Returns (outputs [S,B,2H] f32, hidden [B,H] f32)."""
    S, B = src.shape
    E, H = emb_dim, hidden_size
    Hp = _round_up(H, 128)          # lane-aligned gate boundaries
    Bp = _round_up(B, 16)           # full bf16 sublane tiles
    T, vmem_limit = _plan_time_block(
        S, Bp, Hp, vmem_budget_bytes=vmem_budget_bytes,
        max_time_block=max_time_block)
    Spad = _round_up(S, T)
    nb = Spad // T

    # --- plain-JAX glue: embedding gather + (identity) dropout + padding ---
    embedded = params["embedding"][src].astype(jnp.float32)      # (S, B, E)
    if Bp != B:
        embedded = jnp.pad(embedded, ((0, 0), (0, Bp - B), (0, 0)))

    wih_f, binf, whh_f, bhn_f = _pack_dir_params(
        params["wih_f"], params["whh_f"], params["bih_f"], params["bhh_f"], H, Hp)
    wih_b, binb, whh_b, bhn_b = _pack_dir_params(
        params["wih_b"], params["whh_b"], params["bih_b"], params["bhh_b"], H, Hp)

    # --- hoisted input projections: one seq-level matmul per direction ---
    emb2d = embedded.reshape(S * Bp, E).astype(jnp.bfloat16)
    def project(wih_p, b_in):
        gi = jnp.dot(emb2d, wih_p.astype(jnp.bfloat16),
                     preferred_element_type=jnp.float32) + b_in
        return gi.reshape(S, Bp, 3 * Hp).astype(jnp.bfloat16)
    gi_f = project(wih_f, binf)
    gi_b = project(wih_b, binb)

    # Sequence tail padding: force the z-gate input huge so sigmoid(z)=1 and
    # the padded GRU steps are exact identities (inert for both directions).
    if Spad != S:
        pad_blk = jnp.zeros((Spad - S, Bp, 3 * Hp), jnp.bfloat16)
        pad_blk = pad_blk.at[:, :, Hp:2 * Hp].set(jnp.bfloat16(1e4))
        gi_f = jnp.concatenate([gi_f, pad_blk], axis=0)
        gi_b = jnp.concatenate([gi_b, pad_blk], axis=0)

    kernel = functools.partial(_bigru_kernel, hidden_pad=Hp, t_block=T)

    def const_spec(shape):   # constant-index weights: single-buffered
        return pl.BlockSpec(shape, lambda j: tuple(0 for _ in shape),
                            pipeline_mode=pl.Buffered(1))

    out_f, out_b = pl.pallas_call(
        kernel,
        out_shape=(
            jax.ShapeDtypeStruct((Spad, Bp, Hp), jnp.bfloat16),
            jax.ShapeDtypeStruct((Spad, Bp, Hp), jnp.bfloat16),
        ),
        grid_spec=pltpu.PrefetchScalarGridSpec(
            num_scalar_prefetch=0,
            grid=(nb,),
            in_specs=[
                pl.BlockSpec((T, Bp, 3 * Hp), lambda j: (j, 0, 0)),           # gi fwd
                pl.BlockSpec((T, Bp, 3 * Hp), lambda j: (nb - 1 - j, 0, 0)),  # gi bwd
                const_spec((Hp, 3 * Hp)), const_spec((1, Hp)),   # whh_f, bhn_f
                const_spec((Hp, 3 * Hp)), const_spec((1, Hp)),   # whh_b, bhn_b
            ],
            out_specs=[
                pl.BlockSpec((T, Bp, Hp), lambda j: (j, 0, 0)),           # fwd stream
                pl.BlockSpec((T, Bp, Hp), lambda j: (nb - 1 - j, 0, 0)),  # bwd stream
            ],
            scratch_shapes=[
                pltpu.VMEM((Bp, Hp), jnp.float32),   # h_fwd carry
                pltpu.VMEM((Bp, Hp), jnp.float32),   # h_bwd carry
            ],
        ),
        compiler_params=pltpu.CompilerParams(
            dimension_semantics=("arbitrary",),
            vmem_limit_bytes=vmem_limit),
    )(gi_f, gi_b, whh_f, bhn_f, whh_b, bhn_b)

    outputs = jnp.concatenate([out_f[:S, :B, :H], out_b[:S, :B, :H]],
                              axis=-1).astype(jnp.float32)

    # Final hidden = tanh(cat(h_fwd_final, h_bwd_final) @ W_fc^T + b_fc),
    # computed in plain JAX (the final carries are rows of the output streams).
    h_f = out_f[S - 1, :B, :H].astype(jnp.float32)
    h_b = out_b[0, :B, :H].astype(jnp.float32)
    hidden = jnp.tanh(jnp.concatenate([h_f, h_b], axis=-1) @ params["wfc"]
                      + params["bfc"][0])
    return outputs, hidden


# ----------------------------------------------------------------------------
# Pure-JAX reference (for correctness check)
# ----------------------------------------------------------------------------
def _ref_gru_dir(x_seq, wih, whh, bih, bhh, H):
    def step(h, x):
        gi = x @ wih + bih
        gh = h @ whh + bhh
        r = jax.nn.sigmoid(gi[:, :H] + gh[:, :H])
        z = jax.nn.sigmoid(gi[:, H:2 * H] + gh[:, H:2 * H])
        n = jnp.tanh(gi[:, 2 * H:] + r * gh[:, 2 * H:])
        h_new = (1.0 - z) * n + z * h
        return h_new, h_new
    h0 = jnp.zeros((x_seq.shape[1], H), jnp.float32)
    h_last, outs = jax.lax.scan(step, h0, x_seq)
    return outs, h_last


def encoder_reference(src, params, *, emb_dim, hidden_size):
    H = hidden_size
    embedded = params["embedding"][src].astype(jnp.float32)
    outs_f, hf = _ref_gru_dir(embedded, params["wih_f"], params["whh_f"],
                              params["bih_f"][0], params["bhh_f"][0], H)
    outs_b_rev, hb = _ref_gru_dir(embedded[::-1], params["wih_b"],
                                  params["whh_b"], params["bih_b"][0],
                                  params["bhh_b"][0], H)
    outs_b = outs_b_rev[::-1]
    outputs = jnp.concatenate([outs_f, outs_b], axis=-1)
    hidden = jnp.tanh(jnp.concatenate([hf, hb], axis=-1) @ params["wfc"]
                      + params["bfc"][0])
    return outputs, hidden


# ----------------------------------------------------------------------------
# Parameter init (deterministic, PyTorch-like uniform ranges)
# ----------------------------------------------------------------------------
def init_params(key, *, vocab, emb_dim, hidden_size):
    E, H = emb_dim, hidden_size
    ks = jax.random.split(key, 12)
    u = lambda k, shape, bound: jax.random.uniform(
        k, shape, jnp.float32, -bound, bound)
    gru_b = 1.0 / np.sqrt(H)
    fc_b = 1.0 / np.sqrt(2 * H)
    return {
        "embedding": jax.random.normal(ks[0], (vocab, E), jnp.float32),
        # GRU weights stored pre-transposed: (in, 3H) / (H, 3H); gate order r,z,n
        "wih_f": u(ks[1], (E, 3 * H), gru_b),
        "whh_f": u(ks[2], (H, 3 * H), gru_b),
        "bih_f": u(ks[3], (1, 3 * H), gru_b),
        "bhh_f": u(ks[4], (1, 3 * H), gru_b),
        "wih_b": u(ks[5], (E, 3 * H), gru_b),
        "whh_b": u(ks[6], (H, 3 * H), gru_b),
        "bih_b": u(ks[7], (1, 3 * H), gru_b),
        "bhh_b": u(ks[8], (1, 3 * H), gru_b),
        # fc stored pre-transposed: (2H, H)
        "wfc": u(ks[9], (2 * H, H), fc_b),
        "bfc": u(ks[10], (1, H), fc_b),
    }


if __name__ == "__main__":
    VOCAB, EMB, HID = 50, 32, 32
    key = jax.random.PRNGKey(0)
    k_src, k_params, k_src2 = jax.random.split(key, 3)
    params = init_params(k_params, vocab=VOCAB, emb_dim=EMB, hidden_size=HID)

    # bf16 activation/weight storage -> loosened tolerances vs the f32 reference.
    RTOL = ATOL = 2e-2

    # Test 1: friendly sizes (T == S, no sequence padding).
    SEQ, BATCH = 8, 4
    src = jax.random.randint(k_src, (SEQ, BATCH), 0, VOCAB, dtype=jnp.int32)
    outputs, hidden = encoder_forward(src, params, emb_dim=EMB, hidden_size=HID)
    jax.block_until_ready((outputs, hidden))
    ref_out, ref_hid = encoder_reference(src, params, emb_dim=EMB, hidden_size=HID)
    np.testing.assert_allclose(np.asarray(outputs), np.asarray(ref_out),
                               rtol=RTOL, atol=ATOL)
    np.testing.assert_allclose(np.asarray(hidden), np.asarray(ref_hid),
                               rtol=RTOL, atol=ATOL)
    assert outputs.shape == (SEQ, BATCH, 2 * HID)
    assert hidden.shape == (BATCH, HID)

    # Test 2: awkward sequence length exercising the identity-padded tail path.
    SEQ2, BATCH2 = 13, 3
    src2 = jax.random.randint(k_src2, (SEQ2, BATCH2), 0, VOCAB, dtype=jnp.int32)
    out2, hid2 = encoder_forward(src2, params, emb_dim=EMB, hidden_size=HID,
                                 max_time_block=8)
    jax.block_until_ready((out2, hid2))
    ref_out2, ref_hid2 = encoder_reference(src2, params, emb_dim=EMB,
                                           hidden_size=HID)
    np.testing.assert_allclose(np.asarray(out2), np.asarray(ref_out2),
                               rtol=RTOL, atol=ATOL)
    np.testing.assert_allclose(np.asarray(hid2), np.asarray(ref_hid2),
                               rtol=RTOL, atol=ATOL)
    assert out2.shape == (SEQ2, BATCH2, 2 * HID)
    assert hid2.shape == (BATCH2, HID)

    print("KERNEL_OK")
</pallas_src>

<mosaic_0001>
module attributes {stable_mosaic.version = 11 : i64} {
  func.func @_bigru_kernel(%arg0: i32, %arg1: memref<8x16x384xbf16, #tpu.memory_space<vmem>>, %arg2: memref<8x16x384xbf16, #tpu.memory_space<vmem>>, %arg3: memref<128x384xbf16, #tpu.memory_space<vmem>>, %arg4: memref<1x128xf32, #tpu.memory_space<vmem>>, %arg5: memref<128x384xbf16, #tpu.memory_space<vmem>>, %arg6: memref<1x128xf32, #tpu.memory_space<vmem>>, %arg7: memref<8x16x128xbf16, #tpu.memory_space<vmem>>, %arg8: memref<8x16x128xbf16, #tpu.memory_space<vmem>>, %arg9: memref<16x128xf32, #tpu.memory_space<vmem>>, %arg10: memref<16x128xf32, #tpu.memory_space<vmem>>) attributes {dimension_semantics = [#tpu.dimension_semantics<arbitrary>], iteration_bounds = array<i64: 1>, scalar_prefetch = 0 : i64, scratch_operands = 2 : i64, tpu.core_type = #tpu.core_type<tc>, window_params = [{transform_indices = @transform_0, window_bounds = array<i64: 8, 16, 384>}, {transform_indices = @transform_1, window_bounds = array<i64: 8, 16, 384>}, {pipeline_mode = #tpu.pipeline_mode<synchronous>, transform_indices = @transform_2, window_bounds = array<i64: 128, 384>}, {pipeline_mode = #tpu.pipeline_mode<synchronous>, transform_indices = @transform_3, window_bounds = array<i64: 1, 128>}, {pipeline_mode = #tpu.pipeline_mode<synchronous>, transform_indices = @transform_4, window_bounds = array<i64: 128, 384>}, {pipeline_mode = #tpu.pipeline_mode<synchronous>, transform_indices = @transform_5, window_bounds = array<i64: 1, 128>}, {transform_indices = @transform_6, window_bounds = array<i64: 8, 16, 128>}, {transform_indices = @transform_7, window_bounds = array<i64: 8, 16, 128>}]} {
    %c0_i32 = arith.constant 0 : i32
    %0 = arith.cmpi eq, %arg0, %c0_i32 : i32
    %1 = arith.extui %0 : i1 to i32
    %c0_i32_0 = arith.constant 0 : i32
    %2 = arith.cmpi ne, %1, %c0_i32_0 : i32
    scf.if %2 {
      %cst_196 = arith.constant 0.000000e+00 : f32
      %605 = vector.broadcast %cst_196 : f32 to vector<16x128xf32>
      %c0_197 = arith.constant 0 : index
      %c0_198 = arith.constant 0 : index
      %606 = vector.load %arg9[%c0_197, %c0_198] : memref<16x128xf32, #tpu.memory_space<vmem>>, vector<16x128xf32>
      tpu.vector_store %arg9[%c0_197, %c0_198], %605 {strides = array<i32>} : memref<16x128xf32, #tpu.memory_space<vmem>>, vector<16x128xf32>,
      %cst_199 = arith.constant 0.000000e+00 : f32
      %607 = vector.broadcast %cst_199 : f32 to vector<16x128xf32>
      %c0_200 = arith.constant 0 : index
      %c0_201 = arith.constant 0 : index
      %608 = vector.load %arg10[%c0_200, %c0_201] : memref<16x128xf32, #tpu.memory_space<vmem>>, vector<16x128xf32>
      tpu.vector_store %arg10[%c0_200, %c0_201], %607 {strides = array<i32>} : memref<16x128xf32, #tpu.memory_space<vmem>>, vector<16x128xf32>,
    } else {
    }
    %c0 = arith.constant 0 : index
    %c0_1 = arith.constant 0 : index
    %3 = vector.load %arg4[%c0, %c0_1] : memref<1x128xf32, #tpu.memory_space<vmem>>, vector<1x128xf32>
    %4 = vector.shape_cast %3 : vector<1x128xf32> to vector<1x128xf32>
    %5 = vector.broadcast %4 : vector<1x128xf32> to vector<16x128xf32>
    %c0_2 = arith.constant 0 : index
    %c0_3 = arith.constant 0 : index
    %6 = vector.load %arg6[%c0_2, %c0_3] : memref<1x128xf32, #tpu.memory_space<vmem>>, vector<1x128xf32>
    %7 = vector.shape_cast %6 : vector<1x128xf32> to vector<1x128xf32>
    %8 = vector.broadcast %7 : vector<1x128xf32> to vector<16x128xf32>
    %c0_4 = arith.constant 0 : index
    %c0_5 = arith.constant 0 : index
    %9 = vector.load %arg9[%c0_4, %c0_5] : memref<16x128xf32, #tpu.memory_space<vmem>>, vector<16x128xf32>
    %c0_6 = arith.constant 0 : index
    %c0_7 = arith.constant 0 : index
    %10 = vector.load %arg10[%c0_6, %c0_7] : memref<16x128xf32, #tpu.memory_space<vmem>>, vector<16x128xf32>
    %c0_8 = arith.constant 0 : index
    %c0_9 = arith.constant 0 : index
    %c0_10 = arith.constant 0 : index
    %11 = vector.load %arg1[%c0_8, %c0_9, %c0_10] : memref<8x16x384xbf16, #tpu.memory_space<vmem>>, vector<1x16x384xbf16>
    %12 = vector.shape_cast %11 : vector<1x16x384xbf16> to vector<16x384xbf16>
    %13 = arith.extf %12 : vector<16x384xbf16> to vector<16x384xf32>
    %14 = arith.truncf %9 : vector<16x128xf32> to vector<16x128xbf16>
    %c0_11 = arith.constant 0 : index
    %c0_12 = arith.constant 0 : index
    %15 = vector.load %arg3[%c0_11, %c0_12] : memref<128x384xbf16, #tpu.memory_space<vmem>>, vector<128x384xbf16>
    %cst = arith.constant dense<0.000000e+00> : vector<16x384xf32>
    %16 = tpu.matmul %14, %15, %cst {dimension_numbers = #tpu.dot_dimension_numbers<[1], [0], [0], [1], [0, 0, 1, 1], [], []>} : vector<16x128xbf16>, vector<128x384xbf16>, vector<16x384xf32> -> vector<16x384xf32>
    %17 = vector.extract_strided_slice %13 {offsets = [0, 0], sizes = [16, 128], strides = [1, 1]} : vector<16x384xf32> to vector<16x128xf32>
    %18 = vector.extract_strided_slice %16 {offsets = [0, 0], sizes = [16, 128], strides = [1, 1]} : vector<16x384xf32> to vector<16x128xf32>
    %19 = arith.addf %17, %18 : vector<16x128xf32>
    %20 = arith.negf %19 : vector<16x128xf32>
    %21 = math.exp %20 : vector<16x128xf32>
    %cst_13 = arith.constant 1.000000e+00 : f32
    %22 = vector.broadcast %cst_13 : f32 to vector<16x128xf32>
    %23 = arith.addf %22, %21 : vector<16x128xf32>
    %24 = arith.divf %22, %23 : vector<16x128xf32>
    %25 = vector.extract_strided_slice %13 {offsets = [0, 128], sizes = [16, 128], strides = [1, 1]} : vector<16x384xf32> to vector<16x128xf32>
    %26 = vector.extract_strided_slice %16 {offsets = [0, 128], sizes = [16, 128], strides = [1, 1]} : vector<16x384xf32> to vector<16x128xf32>
    %27 = arith.addf %25, %26 : vector<16x128xf32>
    %28 = arith.negf %27 : vector<16x128xf32>
    %29 = math.exp %28 : vector<16x128xf32>
    %cst_14 = arith.constant 1.000000e+00 : f32
    %30 = vector.broadcast %cst_14 : f32 to vector<16x128xf32>
    %31 = arith.addf %30, %29 : vector<16x128xf32>
    %32 = arith.divf %30, %31 : vector<16x128xf32>
    %33 = vector.extract_strided_slice %13 {offsets = [0, 256], sizes = [16, 128], strides = [1, 1]} : vector<16x384xf32> to vector<16x128xf32>
    %34 = vector.extract_strided_slice %16 {offsets = [0, 256], sizes = [16, 128], strides = [1, 1]} : vector<16x384xf32> to vector<16x128xf32>
    %35 = arith.addf %34, %5 : vector<16x128xf32>
    %36 = arith.mulf %24, %35 : vector<16x128xf32>
    %37 = arith.addf %33, %36 : vector<16x128xf32>
    %38 = math.tanh %37 : vector<16x128xf32>
    %cst_15 = arith.constant 1.000000e+00 : f32
    %39 = vector.broadcast %cst_15 : f32 to vector<16x128xf32>
    %40 = arith.subf %39, %32 : vector<16x128xf32>
    %41 = arith.mulf %40, %38 : vector<16x128xf32>
    %42 = arith.mulf %32, %9 : vector<16x128xf32>
    %43 = arith.addf %41, %42 : vector<16x128xf32>
    %44 = arith.truncf %43 : vector<16x128xf32> to vector<16x128xbf16>
    %c0_16 = arith.constant 0 : index
    %c0_17 = arith.constant 0 : index
    %c0_18 = arith.constant 0 : index
    %45 = vector.load %arg7[%c0_16, %c0_17, %c0_18] : memref<8x16x128xbf16, #tpu.memory_space<vmem>>, vector<1x16x128xbf16>
    %46 = vector.shape_cast %45 : vector<1x16x128xbf16> to vector<16x128xbf16>
    %47 = vector.shape_cast %44 : vector<16x128xbf16> to vector<1x16x128xbf16>
    tpu.vector_store %arg7[%c0_16, %c0_17, %c0_18], %47 {strides = array<i32>} : memref<8x16x128xbf16, #tpu.memory_space<vmem>>, vector<1x16x128xbf16>,
    %c7 = arith.constant 7 : index
    %c0_19 = arith.constant 0 : index
    %c0_20 = arith.constant 0 : index
    %48 = vector.load %arg2[%c7, %c0_19, %c0_20] : memref<8x16x384xbf16, #tpu.memory_space<vmem>>, vector<1x16x384xbf16>
    %49 = vector.shape_cast %48 : vector<1x16x384xbf16> to vector<16x384xbf16>
    %50 = arith.extf %49 : vector<16x384xbf16> to vector<16x384xf32>
    %51 = arith.truncf %10 : vector<16x128xf32> to vector<16x128xbf16>
    %c0_21 = arith.constant 0 : index
    %c0_22 = arith.constant 0 : index
    %52 = vector.load %arg5[%c0_21, %c0_22] : memref<128x384xbf16, #tpu.memory_space<vmem>>, vector<128x384xbf16>
    %cst_23 = arith.constant dense<0.000000e+00> : vector<16x384xf32>
    %53 = tpu.matmul %51, %52, %cst_23 {dimension_numbers = #tpu.dot_dimension_numbers<[1], [0], [0], [1], [0, 0, 1, 1], [], []>} : vector<16x128xbf16>, vector<128x384xbf16>, vector<16x384xf32> -> vector<16x384xf32>
    %54 = vector.extract_strided_slice %50 {offsets = [0, 0], sizes = [16, 128], strides = [1, 1]} : vector<16x384xf32> to vector<16x128xf32>
    %55 = vector.extract_strided_slice %53 {offsets = [0, 0], sizes = [16, 128], strides = [1, 1]} : vector<16x384xf32> to vector<16x128xf32>
    %56 = arith.addf %54, %55 : vector<16x128xf32>
    %57 = arith.negf %56 : vector<16x128xf32>
    %58 = math.exp %57 : vector<16x128xf32>
    %cst_24 = arith.constant 1.000000e+00 : f32
    %59 = vector.broadcast %cst_24 : f32 to vector<16x128xf32>
    %60 = arith.addf %59, %58 : vector<16x128xf32>
    %61 = arith.divf %59, %60 : vector<16x128xf32>
    %62 = vector.extract_strided_slice %50 {offsets = [0, 128], sizes = [16, 128], strides = [1, 1]} : vector<16x384xf32> to vector<16x128xf32>
    %63 = vector.extract_strided_slice %53 {offsets = [0, 128], sizes = [16, 128], strides = [1, 1]} : vector<16x384xf32> to vector<16x128xf32>
    %64 = arith.addf %62, %63 : vector<16x128xf32>
    %65 = arith.negf %64 : vector<16x128xf32>
    %66 = math.exp %65 : vector<16x128xf32>
    %cst_25 = arith.constant 1.000000e+00 : f32
    %67 = vector.broadcast %cst_25 : f32 to vector<16x128xf32>
    %68 = arith.addf %67, %66 : vector<16x128xf32>
    %69 = arith.divf %67, %68 : vector<16x128xf32>
    %70 = vector.extract_strided_slice %50 {offsets = [0, 256], sizes = [16, 128], strides = [1, 1]} : vector<16x384xf32> to vector<16x128xf32>
    %71 = vector.extract_strided_slice %53 {offsets = [0, 256], sizes = [16, 128], strides = [1, 1]} : vector<16x384xf32> to vector<16x128xf32>
    %72 = arith.addf %71, %8 : vector<16x128xf32>
    %73 = arith.mulf %61, %72 : vector<16x128xf32>
    %74 = arith.addf %70, %73 : vector<16x128xf32>
    %75 = math.tanh %74 : vector<16x128xf32>
    %cst_26 = arith.constant 1.000000e+00 : f32
    %76 = vector.broadcast %cst_26 : f32 to vector<16x128xf32>
    %77 = arith.subf %76, %69 : vector<16x128xf32>
    %78 = arith.mulf %77, %75 : vector<16x128xf32>
    %79 = arith.mulf %69, %10 : vector<16x128xf32>
    %80 = arith.addf %78, %79 : vector<16x128xf32>
    %81 = arith.truncf %80 : vector<16x128xf32> to vector<16x128xbf16>
    %c7_27 = arith.constant 7 : index
    %c0_28 = arith.constant 0 : index
    %c0_29 = arith.constant 0 : index
    %82 = vector.load %arg8[%c7_27, %c0_28, %c0_29] : memref<8x16x128xbf16, #tpu.memory_space<vmem>>, vector<1x16x128xbf16>
    %83 = vector.shape_cast %82 : vector<1x16x128xbf16> to vector<16x128xbf16>
    %84 = vector.shape_cast %81 : vector<16x128xbf16> to vector<1x16x128xbf16>
    tpu.vector_store %arg8[%c7_27, %c0_28, %c0_29], %84 {strides = array<i32>} : memref<8x16x128xbf16, #tpu.memory_space<vmem>>, vector<1x16x128xbf16>,
    %c1 = arith.constant 1 : index
    %c0_30 = arith.constant 0 : index
    %c0_31 = arith.constant 0 : index
    %85 = vector.load %arg1[%c1, %c0_30, %c0_31] : memref<8x16x384xbf16, #tpu.memory_space<vmem>>, vector<1x16x384xbf16>
    %86 = vector.shape_cast %85 : vector<1x16x384xbf16> to vector<16x384xbf16>
    %87 = arith.extf %86 : vector<16x384xbf16> to vector<16x384xf32>
    %88 = arith.truncf %43 : vector<16x128xf32> to vector<16x128xbf16>
    %c0_32 = arith.constant 0 : index
    %c0_33 = arith.constant 0 : index
    %89 = vector.load %arg3[%c0_32, %c0_33] : memref<128x384xbf16, #tpu.memory_space<vmem>>, vector<128x384xbf16>
    %cst_34 = arith.constant dense<0.000000e+00> : vector<16x384xf32>
    %90 = tpu.matmul %88, %89, %cst_34 {dimension_numbers = #tpu.dot_dimension_numbers<[1], [0], [0], [1], [0, 0, 1, 1], [], []>} : vector<16x128xbf16>, vector<128x384xbf16>, vector<16x384xf32> -> vector<16x384xf32>
    %91 = vector.extract_strided_slice %87 {offsets = [0, 0], sizes = [16, 128], strides = [1, 1]} : vector<16x384xf32> to vector<16x128xf32>
    %92 = vector.extract_strided_slice %90 {offsets = [0, 0], sizes = [16, 128], strides = [1, 1]} : vector<16x384xf32> to vector<16x128xf32>
    %93 = arith.addf %91, %92 : vector<16x128xf32>
    %94 = arith.negf %93 : vector<16x128xf32>
    %95 = math.exp %94 : vector<16x128xf32>
    %cst_35 = arith.constant 1.000000e+00 : f32
    %96 = vector.broadcast %cst_35 : f32 to vector<16x128xf32>
    %97 = arith.addf %96, %95 : vector<16x128xf32>
    %98 = arith.divf %96, %97 : vector<16x128xf32>
    %99 = vector.extract_strided_slice %87 {offsets = [0, 128], sizes = [16, 128], strides = [1, 1]} : vector<16x384xf32> to vector<16x128xf32>
    %100 = vector.extract_strided_slice %90 {offsets = [0, 128], sizes = [16, 128], strides = [1, 1]} : vector<16x384xf32> to vector<16x128xf32>
    %101 = arith.addf %99, %100 : vector<16x128xf32>
    %102 = arith.negf %101 : vector<16x128xf32>
    %103 = math.exp %102 : vector<16x128xf32>
    %cst_36 = arith.constant 1.000000e+00 : f32
    %104 = vector.broadcast %cst_36 : f32 to vector<16x128xf32>
    %105 = arith.addf %104, %103 : vector<16x128xf32>
    %106 = arith.divf %104, %105 : vector<16x128xf32>
    %107 = vector.extract_strided_slice %87 {offsets = [0, 256], sizes = [16, 128], strides = [1, 1]} : vector<16x384xf32> to vector<16x128xf32>
    %108 = vector.extract_strided_slice %90 {offsets = [0, 256], sizes = [16, 128], strides = [1, 1]} : vector<16x384xf32> to vector<16x128xf32>
    %109 = arith.addf %108, %5 : vector<16x128xf32>
    %110 = arith.mulf %98, %109 : vector<16x128xf32>
    %111 = arith.addf %107, %110 : vector<16x128xf32>
    %112 = math.tanh %111 : vector<16x128xf32>
    %cst_37 = arith.constant 1.000000e+00 : f32
    %113 = vector.broadcast %cst_37 : f32 to vector<16x128xf32>
    %114 = arith.subf %113, %106 : vector<16x128xf32>
    %115 = arith.mulf %114, %112 : vector<16x128xf32>
    %116 = arith.mulf %106, %43 : vector<16x128xf32>
    %117 = arith.addf %115, %116 : vector<16x128xf32>
    %118 = arith.truncf %117 : vector<16x128xf32> to vector<16x128xbf16>
    %c1_38 = arith.constant 1 : index
    %c0_39 = arith.constant 0 : index
    %c0_40 = arith.constant 0 : index
    %119 = vector.load %arg7[%c1_38, %c0_39, %c0_40] : memref<8x16x128xbf16, #tpu.memory_space<vmem>>, vector<1x16x128xbf16>
    %120 = vector.shape_cast %119 : vector<1x16x128xbf16> to vector<16x128xbf16>
    %121 = vector.shape_cast %118 : vector<16x128xbf16> to vector<1x16x128xbf16>
    tpu.vector_store %arg7[%c1_38, %c0_39, %c0_40], %121 {strides = array<i32>} : memref<8x16x128xbf16, #tpu.memory_space<vmem>>, vector<1x16x128xbf16>,
    %c6 = arith.constant 6 : index
    %c0_41 = arith.constant 0 : index
    %c0_42 = arith.constant 0 : index
    %122 = vector.load %arg2[%c6, %c0_41, %c0_42] : memref<8x16x384xbf16, #tpu.memory_space<vmem>>, vector<1x16x384xbf16>
    %123 = vector.shape_cast %122 : vector<1x16x384xbf16> to vector<16x384xbf16>
    %124 = arith.extf %123 : vector<16x384xbf16> to vector<16x384xf32>
    %125 = arith.truncf %80 : vector<16x128xf32> to vector<16x128xbf16>
    %c0_43 = arith.constant 0 : index
    %c0_44 = arith.constant 0 : index
    %126 = vector.load %arg5[%c0_43, %c0_44] : memref<128x384xbf16, #tpu.memory_space<vmem>>, vector<128x384xbf16>
    %cst_45 = arith.constant dense<0.000000e+00> : vector<16x384xf32>
    %127 = tpu.matmul %125, %126, %cst_45 {dimension_numbers = #tpu.dot_dimension_numbers<[1], [0], [0], [1], [0, 0, 1, 1], [], []>} : vector<16x128xbf16>, vector<128x384xbf16>, vector<16x384xf32> -> vector<16x384xf32>
    %128 = vector.extract_strided_slice %124 {offsets = [0, 0], sizes = [16, 128], strides = [1, 1]} : vector<16x384xf32> to vector<16x128xf32>
    %129 = vector.extract_strided_slice %127 {offsets = [0, 0], sizes = [16, 128], strides = [1, 1]} : vector<16x384xf32> to vector<16x128xf32>
    %130 = arith.addf %128, %129 : vector<16x128xf32>
    %131 = arith.negf %130 : vector<16x128xf32>
    %132 = math.exp %131 : vector<16x128xf32>
    %cst_46 = arith.constant 1.000000e+00 : f32
    %133 = vector.broadcast %cst_46 : f32 to vector<16x128xf32>
    %134 = arith.addf %133, %132 : vector<16x128xf32>
    %135 = arith.divf %133, %134 : vector<16x128xf32>
    %136 = vector.extract_strided_slice %124 {offsets = [0, 128], sizes = [16, 128], strides = [1, 1]} : vector<16x384xf32> to vector<16x128xf32>
    %137 = vector.extract_strided_slice %127 {offsets = [0, 128], sizes = [16, 128], strides = [1, 1]} : vector<16x384xf32> to vector<16x128xf32>
    %138 = arith.addf %136, %137 : vector<16x128xf32>
    %139 = arith.negf %138 : vector<16x128xf32>
    %140 = math.exp %139 : vector<16x128xf32>
    %cst_47 = arith.constant 1.000000e+00 : f32
    %141 = vector.broadcast %cst_47 : f32 to vector<16x128xf32>
    %142 = arith.addf %141, %140 : vector<16x128xf32>
    %143 = arith.divf %141, %142 : vector<16x128xf32>
    %144 = vector.extract_strided_slice %124 {offsets = [0, 256], sizes = [16, 128], strides = [1, 1]} : vector<16x384xf32> to vector<16x128xf32>
    %145 = vector.extract_strided_slice %127 {offsets = [0, 256], sizes = [16, 128], strides = [1, 1]} : vector<16x384xf32> to vector<16x128xf32>
    %146 = arith.addf %145, %8 : vector<16x128xf32>
    %147 = arith.mulf %135, %146 : vector<16x128xf32>
    %148 = arith.addf %144, %147 : vector<16x128xf32>
    %149 = math.tanh %148 : vector<16x128xf32>
    %cst_48 = arith.constant 1.000000e+00 : f32
    %150 = vector.broadcast %cst_48 : f32 to vector<16x128xf32>
    %151 = arith.subf %150, %143 : vector<16x128xf32>
    %152 = arith.mulf %151, %149 : vector<16x128xf32>
    %153 = arith.mulf %143, %80 : vector<16x128xf32>
    %154 = arith.addf %152, %153 : vector<16x128xf32>
    %155 = arith.truncf %154 : vector<16x128xf32> to vector<16x128xbf16>
    %c6_49 = arith.constant 6 : index
    %c0_50 = arith.constant 0 : index
    %c0_51 = arith.constant 0 : index
    %156 = vector.load %arg8[%c6_49, %c0_50, %c0_51] : memref<8x16x128xbf16, #tpu.memory_space<vmem>>, vector<1x16x128xbf16>
    %157 = vector.shape_cast %156 : vector<1x16x128xbf16> to vector<16x128xbf16>
    %158 = vector.shape_cast %155 : vector<16x128xbf16> to vector<1x16x128xbf16>
    tpu.vector_store %arg8[%c6_49, %c0_50, %c0_51], %158 {strides = array<i32>} : memref<8x16x128xbf16, #tpu.memory_space<vmem>>, vector<1x16x128xbf16>,
    %c2 = arith.constant 2 : index
    %c0_52 = arith.constant 0 : index
    %c0_53 = arith.constant 0 : index
    %159 = vector.load %arg1[%c2, %c0_52, %c0_53] : memref<8x16x384xbf16, #tpu.memory_space<vmem>>, vector<1x16x384xbf16>
    %160 = vector.shape_cast %159 : vector<1x16x384xbf16> to vector<16x384xbf16>
    %161 = arith.extf %160 : vector<16x384xbf16> to vector<16x384xf32>
    %162 = arith.truncf %117 : vector<16x128xf32> to vector<16x128xbf16>
    %c0_54 = arith.constant 0 : index
    %c0_55 = arith.constant 0 : index
    %163 = vector.load %arg3[%c0_54, %c0_55] : memref<128x384xbf16, #tpu.memory_space<vmem>>, vector<128x384xbf16>
    %cst_56 = arith.constant dense<0.000000e+00> : vector<16x384xf32>
    %164 = tpu.matmul %162, %163, %cst_56 {dimension_numbers = #tpu.dot_dimension_numbers<[1], [0], [0], [1], [0, 0, 1, 1], [], []>} : vector<16x128xbf16>, vector<128x384xbf16>, vector<16x384xf32> -> vector<16x384xf32>
    %165 = vector.extract_strided_slice %161 {offsets = [0, 0], sizes = [16, 128], strides = [1, 1]} : vector<16x384xf32> to vector<16x128xf32>
    %166 = vector.extract_strided_slice %164 {offsets = [0, 0], sizes = [16, 128], strides = [1, 1]} : vector<16x384xf32> to vector<16x128xf32>
    %167 = arith.addf %165, %166 : vector<16x128xf32>
    %168 = arith.negf %167 : vector<16x128xf32>
    %169 = math.exp %168 : vector<16x128xf32>
    %cst_57 = arith.constant 1.000000e+00 : f32
    %170 = vector.broadcast %cst_57 : f32 to vector<16x128xf32>
    %171 = arith.addf %170, %169 : vector<16x128xf32>
    %172 = arith.divf %170, %171 : vector<16x128xf32>
    %173 = vector.extract_strided_slice %161 {offsets = [0, 128], sizes = [16, 128], strides = [1, 1]} : vector<16x384xf32> to vector<16x128xf32>
    %174 = vector.extract_strided_slice %164 {offsets = [0, 128], sizes = [16, 128], strides = [1, 1]} : vector<16x384xf32> to vector<16x128xf32>
    %175 = arith.addf %173, %174 : vector<16x128xf32>
    %176 = arith.negf %175 : vector<16x128xf32>
    %177 = math.exp %176 : vector<16x128xf32>
    %cst_58 = arith.constant 1.000000e+00 : f32
    %178 = vector.broadcast %cst_58 : f32 to vector<16x128xf32>
    %179 = arith.addf %178, %177 : vector<16x128xf32>
    %180 = arith.divf %178, %179 : vector<16x128xf32>
    %181 = vector.extract_strided_slice %161 {offsets = [0, 256], sizes = [16, 128], strides = [1, 1]} : vector<16x384xf32> to vector<16x128xf32>
    %182 = vector.extract_strided_slice %164 {offsets = [0, 256], sizes = [16, 128], strides = [1, 1]} : vector<16x384xf32> to vector<16x128xf32>
    %183 = arith.addf %182, %5 : vector<16x128xf32>
    %184 = arith.mulf %172, %183 : vector<16x128xf32>
    %185 = arith.addf %181, %184 : vector<16x128xf32>
    %186 = math.tanh %185 : vector<16x128xf32>
    %cst_59 = arith.constant 1.000000e+00 : f32
    %187 = vector.broadcast %cst_59 : f32 to vector<16x128xf32>
    %188 = arith.subf %187, %180 : vector<16x128xf32>
    %189 = arith.mulf %188, %186 : vector<16x128xf32>
    %190 = arith.mulf %180, %117 : vector<16x128xf32>
    %191 = arith.addf %189, %190 : vector<16x128xf32>
    %192 = arith.truncf %191 : vector<16x128xf32> to vector<16x128xbf16>
    %c2_60 = arith.constant 2 : index
    %c0_61 = arith.constant 0 : index
    %c0_62 = arith.constant 0 : index
    %193 = vector.load %arg7[%c2_60, %c0_61, %c0_62] : memref<8x16x128xbf16, #tpu.memory_space<vmem>>, vector<1x16x128xbf16>
    %194 = vector.shape_cast %193 : vector<1x16x128xbf16> to vector<16x128xbf16>
    %195 = vector.shape_cast %192 : vector<16x128xbf16> to vector<1x16x128xbf16>
    tpu.vector_store %arg7[%c2_60, %c0_61, %c0_62], %195 {strides = array<i32>} : memref<8x16x128xbf16, #tpu.memory_space<vmem>>, vector<1x16x128xbf16>,
    %c5 = arith.constant 5 : index
    %c0_63 = arith.constant 0 : index
    %c0_64 = arith.constant 0 : index
    %196 = vector.load %arg2[%c5, %c0_63, %c0_64] : memref<8x16x384xbf16, #tpu.memory_space<vmem>>, vector<1x16x384xbf16>
    %197 = vector.shape_cast %196 : vector<1x16x384xbf16> to vector<16x384xbf16>
    %198 = arith.extf %197 : vector<16x384xbf16> to vector<16x384xf32>
    %199 = arith.truncf %154 : vector<16x128xf32> to vector<16x128xbf16>
    %c0_65 = arith.constant 0 : index
    %c0_66 = arith.constant 0 : index
    %200 = vector.load %arg5[%c0_65, %c0_66] : memref<128x384xbf16, #tpu.memory_space<vmem>>, vector<128x384xbf16>
    %cst_67 = arith.constant dense<0.000000e+00> : vector<16x384xf32>
    %201 = tpu.matmul %199, %200, %cst_67 {dimension_numbers = #tpu.dot_dimension_numbers<[1], [0], [0], [1], [0, 0, 1, 1], [], []>} : vector<16x128xbf16>, vector<128x384xbf16>, vector<16x384xf32> -> vector<16x384xf32>
    %202 = vector.extract_strided_slice %198 {offsets = [0, 0], sizes = [16, 128], strides = [1, 1]} : vector<16x384xf32> to vector<16x128xf32>
    %203 = vector.extract_strided_slice %201 {offsets = [0, 0], sizes = [16, 128], strides = [1, 1]} : vector<16x384xf32> to vector<16x128xf32>
    %204 = arith.addf %202, %203 : vector<16x128xf32>
    %205 = arith.negf %204 : vector<16x128xf32>
    %206 = math.exp %205 : vector<16x128xf32>
    %cst_68 = arith.constant 1.000000e+00 : f32
    %207 = vector.broadcast %cst_68 : f32 to vector<16x128xf32>
    %208 = arith.addf %207, %206 : vector<16x128xf32>
    %209 = arith.divf %207, %208 : vector<16x128xf32>
    %210 = vector.extract_strided_slice %198 {offsets = [0, 128], sizes = [16, 128], strides = [1, 1]} : vector<16x384xf32> to vector<16x128xf32>
    %211 = vector.extract_strided_slice %201 {offsets = [0, 128], sizes = [16, 128], strides = [1, 1]} : vector<16x384xf32> to vector<16x128xf32>
    %212 = arith.addf %210, %211 : vector<16x128xf32>
    %213 = arith.negf %212 : vector<16x128xf32>
    %214 = math.exp %213 : vector<16x128xf32>
    %cst_69 = arith.constant 1.000000e+00 : f32
    %215 = vector.broadcast %cst_69 : f32 to vector<16x128xf32>
    %216 = arith.addf %215, %214 : vector<16x128xf32>
    %217 = arith.divf %215, %216 : vector<16x128xf32>
    %218 = vector.extract_strided_slice %198 {offsets = [0, 256], sizes = [16, 128], strides = [1, 1]} : vector<16x384xf32> to vector<16x128xf32>
    %219 = vector.extract_strided_slice %201 {offsets = [0, 256], sizes = [16, 128], strides = [1, 1]} : vector<16x384xf32> to vector<16x128xf32>
    %220 = arith.addf %219, %8 : vector<16x128xf32>
    %221 = arith.mulf %209, %220 : vector<16x128xf32>
    %222 = arith.addf %218, %221 : vector<16x128xf32>
    %223 = math.tanh %222 : vector<16x128xf32>
    %cst_70 = arith.constant 1.000000e+00 : f32
    %224 = vector.broadcast %cst_70 : f32 to vector<16x128xf32>
    %225 = arith.subf %224, %217 : vector<16x128xf32>
    %226 = arith.mulf %225, %223 : vector<16x128xf32>
    %227 = arith.mulf %217, %154 : vector<16x128xf32>
    %228 = arith.addf %226, %227 : vector<16x128xf32>
    %229 = arith.truncf %228 : vector<16x128xf32> to vector<16x128xbf16>
    %c5_71 = arith.constant 5 : index
    %c0_72 = arith.constant 0 : index
    %c0_73 = arith.constant 0 : index
    %230 = vector.load %arg8[%c5_71, %c0_72, %c0_73] : memref<8x16x128xbf16, #tpu.memory_space<vmem>>, vector<1x16x128xbf16>
    %231 = vector.shape_cast %230 : vector<1x16x128xbf16> to vector<16x128xbf16>
    %232 = vector.shape_cast %229 : vector<16x128xbf16> to vector<1x16x128xbf16>
    tpu.vector_store %arg8[%c5_71, %c0_72, %c0_73], %232 {strides = array<i32>} : memref<8x16x128xbf16, #tpu.memory_space<vmem>>, vector<1x16x128xbf16>,
    %c3 = arith.constant 3 : index
    %c0_74 = arith.constant 0 : index
    %c0_75 = arith.constant 0 : index
    %233 = vector.load %arg1[%c3, %c0_74, %c0_75] : memref<8x16x384xbf16, #tpu.memory_space<vmem>>, vector<1x16x384xbf16>
    %234 = vector.shape_cast %233 : vector<1x16x384xbf16> to vector<16x384xbf16>
    %235 = arith.extf %234 : vector<16x384xbf16> to vector<16x384xf32>
    %236 = arith.truncf %191 : vector<16x128xf32> to vector<16x128xbf16>
    %c0_76 = arith.constant 0 : index
    %c0_77 = arith.constant 0 : index
    %237 = vector.load %arg3[%c0_76, %c0_77] : memref<128x384xbf16, #tpu.memory_space<vmem>>, vector<128x384xbf16>
    %cst_78 = arith.constant dense<0.000000e+00> : vector<16x384xf32>
    %238 = tpu.matmul %236, %237, %cst_78 {dimension_numbers = #tpu.dot_dimension_numbers<[1], [0], [0], [1], [0, 0, 1, 1], [], []>} : vector<16x128xbf16>, vector<128x384xbf16>, vector<16x384xf32> -> vector<16x384xf32>
    %239 = vector.extract_strided_slice %235 {offsets = [0, 0], sizes = [16, 128], strides = [1, 1]} : vector<16x384xf32> to vector<16x128xf32>
    %240 = vector.extract_strided_slice %238 {offsets = [0, 0], sizes = [16, 128], strides = [1, 1]} : vector<16x384xf32> to vector<16x128xf32>
    %241 = arith.addf %239, %240 : vector<16x128xf32>
    %242 = arith.negf %241 : vector<16x128xf32>
    %243 = math.exp %242 : vector<16x128xf32>
    %cst_79 = arith.constant 1.000000e+00 : f32
    %244 = vector.broadcast %cst_79 : f32 to vector<16x128xf32>
    %245 = arith.addf %244, %243 : vector<16x128xf32>
    %246 = arith.divf %244, %245 : vector<16x128xf32>
    %247 = vector.extract_strided_slice %235 {offsets = [0, 128], sizes = [16, 128], strides = [1, 1]} : vector<16x384xf32> to vector<16x128xf32>
    %248 = vector.extract_strided_slice %238 {offsets = [0, 128], sizes = [16, 128], strides = [1, 1]} : vector<16x384xf32> to vector<16x128xf32>
    %249 = arith.addf %247, %248 : vector<16x128xf32>
    %250 = arith.negf %249 : vector<16x128xf32>
    %251 = math.exp %250 : vector<16x128xf32>
    %cst_80 = arith.constant 1.000000e+00 : f32
    %252 = vector.broadcast %cst_80 : f32 to vector<16x128xf32>
    %253 = arith.addf %252, %251 : vector<16x128xf32>
    %254 = arith.divf %252, %253 : vector<16x128xf32>
    %255 = vector.extract_strided_slice %235 {offsets = [0, 256], sizes = [16, 128], strides = [1, 1]} : vector<16x384xf32> to vector<16x128xf32>
    %256 = vector.extract_strided_slice %238 {offsets = [0, 256], sizes = [16, 128], strides = [1, 1]} : vector<16x384xf32> to vector<16x128xf32>
    %257 = arith.addf %256, %5 : vector<16x128xf32>
    %258 = arith.mulf %246, %257 : vector<16x128xf32>
    %259 = arith.addf %255, %258 : vector<16x128xf32>
    %260 = math.tanh %259 : vector<16x128xf32>
    %cst_81 = arith.constant 1.000000e+00 : f32
    %261 = vector.broadcast %cst_81 : f32 to vector<16x128xf32>
    %262 = arith.subf %261, %254 : vector<16x128xf32>
    %263 = arith.mulf %262, %260 : vector<16x128xf32>
    %264 = arith.mulf %254, %191 : vector<16x128xf32>
    %265 = arith.addf %263, %264 : vector<16x128xf32>
    %266 = arith.truncf %265 : vector<16x128xf32> to vector<16x128xbf16>
    %c3_82 = arith.constant 3 : index
    %c0_83 = arith.constant 0 : index
    %c0_84 = arith.constant 0 : index
    %267 = vector.load %arg7[%c3_82, %c0_83, %c0_84] : memref<8x16x128xbf16, #tpu.memory_space<vmem>>, vector<1x16x128xbf16>
    %268 = vector.shape_cast %267 : vector<1x16x128xbf16> to vector<16x128xbf16>
    %269 = vector.shape_cast %266 : vector<16x128xbf16> to vector<1x16x128xbf16>
    tpu.vector_store %arg7[%c3_82, %c0_83, %c0_84], %269 {strides = array<i32>} : memref<8x16x128xbf16, #tpu.memory_space<vmem>>, vector<1x16x128xbf16>,
    %c4 = arith.constant 4 : index
    %c0_85 = arith.constant 0 : index
    %c0_86 = arith.constant 0 : index
    %270 = vector.load %arg2[%c4, %c0_85, %c0_86] : memref<8x16x384xbf16, #tpu.memory_space<vmem>>, vector<1x16x384xbf16>
    %271 = vector.shape_cast %270 : vector<1x16x384xbf16> to vector<16x384xbf16>
    %272 = arith.extf %271 : vector<16x384xbf16> to vector<16x384xf32>
    %273 = arith.truncf %228 : vector<16x128xf32> to vector<16x128xbf16>
    %c0_87 = arith.constant 0 : index
    %c0_88 = arith.constant 0 : index
    %274 = vector.load %arg5[%c0_87, %c0_88] : memref<128x384xbf16, #tpu.memory_space<vmem>>, vector<128x384xbf16>
    %cst_89 = arith.constant dense<0.000000e+00> : vector<16x384xf32>
    %275 = tpu.matmul %273, %274, %cst_89 {dimension_numbers = #tpu.dot_dimension_numbers<[1], [0], [0], [1], [0, 0, 1, 1], [], []>} : vector<16x128xbf16>, vector<128x384xbf16>, vector<16x384xf32> -> vector<16x384xf32>
    %276 = vector.extract_strided_slice %272 {offsets = [0, 0], sizes = [16, 128], strides = [1, 1]} : vector<16x384xf32> to vector<16x128xf32>
    %277 = vector.extract_strided_slice %275 {offsets = [0, 0], sizes = [16, 128], strides = [1, 1]} : vector<16x384xf32> to vector<16x128xf32>
    %278 = arith.addf %276, %277 : vector<16x128xf32>
    %279 = arith.negf %278 : vector<16x128xf32>
    %280 = math.exp %279 : vector<16x128xf32>
    %cst_90 = arith.constant 1.000000e+00 : f32
    %281 = vector.broadcast %cst_90 : f32 to vector<16x128xf32>
    %282 = arith.addf %281, %280 : vector<16x128xf32>
    %283 = arith.divf %281, %282 : vector<16x128xf32>
    %284 = vector.extract_strided_slice %272 {offsets = [0, 128], sizes = [16, 128], strides = [1, 1]} : vector<16x384xf32> to vector<16x128xf32>
    %285 = vector.extract_strided_slice %275 {offsets = [0, 128], sizes = [16, 128], strides = [1, 1]} : vector<16x384xf32> to vector<16x128xf32>
    %286 = arith.addf %284, %285 : vector<16x128xf32>
    %287 = arith.negf %286 : vector<16x128xf32>
    %288 = math.exp %287 : vector<16x128xf32>
    %cst_91 = arith.constant 1.000000e+00 : f32
    %289 = vector.broadcast %cst_91 : f32 to vector<16x128xf32>
    %290 = arith.addf %289, %288 : vector<16x128xf32>
    %291 = arith.divf %289, %290 : vector<16x128xf32>
    %292 = vector.extract_strided_slice %272 {offsets = [0, 256], sizes = [16, 128], strides = [1, 1]} : vector<16x384xf32> to vector<16x128xf32>
    %293 = vector.extract_strided_slice %275 {offsets = [0, 256], sizes = [16, 128], strides = [1, 1]} : vector<16x384xf32> to vector<16x128xf32>
    %294 = arith.addf %293, %8 : vector<16x128xf32>
    %295 = arith.mulf %283, %294 : vector<16x128xf32>
    %296 = arith.addf %292, %295 : vector<16x128xf32>
    %297 = math.tanh %296 : vector<16x128xf32>
    %cst_92 = arith.constant 1.000000e+00 : f32
    %298 = vector.broadcast %cst_92 : f32 to vector<16x128xf32>
    %299 = arith.subf %298, %291 : vector<16x128xf32>
    %300 = arith.mulf %299, %297 : vector<16x128xf32>
    %301 = arith.mulf %291, %228 : vector<16x128xf32>
    %302 = arith.addf %300, %301 : vector<16x128xf32>
    %303 = arith.truncf %302 : vector<16x128xf32> to vector<16x128xbf16>
    %c4_93 = arith.constant 4 : index
    %c0_94 = arith.constant 0 : index
    %c0_95 = arith.constant 0 : index
    %304 = vector.load %arg8[%c4_93, %c0_94, %c0_95] : memref<8x16x128xbf16, #tpu.memory_space<vmem>>, vector<1x16x128xbf16>
    %305 = vector.shape_cast %304 : vector<1x16x128xbf16> to vector<16x128xbf16>
    %306 = vector.shape_cast %303 : vector<16x128xbf16> to vector<1x16x128xbf16>
    tpu.vector_store %arg8[%c4_93, %c0_94, %c0_95], %306 {strides = array<i32>} : memref<8x16x128xbf16, #tpu.memory_space<vmem>>, vector<1x16x128xbf16>,
    %c4_96 = arith.constant 4 : index
    %c0_97 = arith.constant 0 : index
    %c0_98 = arith.constant 0 : index
    %307 = vector.load %arg1[%c4_96, %c0_97, %c0_98] : memref<8x16x384xbf16, #tpu.memory_space<vmem>>, vector<1x16x384xbf16>
    %308 = vector.shape_cast %307 : vector<1x16x384xbf16> to vector<16x384xbf16>
    %309 = arith.extf %308 : vector<16x384xbf16> to vector<16x384xf32>
    %310 = arith.truncf %265 : vector<16x128xf32> to vector<16x128xbf16>
    %c0_99 = arith.constant 0 : index
    %c0_100 = arith.constant 0 : index
    %311 = vector.load %arg3[%c0_99, %c0_100] : memref<128x384xbf16, #tpu.memory_space<vmem>>, vector<128x384xbf16>
    %cst_101 = arith.constant dense<0.000000e+00> : vector<16x384xf32>
    %312 = tpu.matmul %310, %311, %cst_101 {dimension_numbers = #tpu.dot_dimension_numbers<[1], [0], [0], [1], [0, 0, 1, 1], [], []>} : vector<16x128xbf16>, vector<128x384xbf16>, vector<16x384xf32> -> vector<16x384xf32>
    %313 = vector.extract_strided_slice %309 {offsets = [0, 0], sizes = [16, 128], strides = [1, 1]} : vector<16x384xf32> to vector<16x128xf32>
    %314 = vector.extract_strided_slice %312 {offsets = [0, 0], sizes = [16, 128], strides = [1, 1]} : vector<16x384xf32> to vector<16x128xf32>
    %315 = arith.addf %313, %314 : vector<16x128xf32>
    %316 = arith.negf %315 : vector<16x128xf32>
    %317 = math.exp %316 : vector<16x128xf32>
    %cst_102 = arith.constant 1.000000e+00 : f32
    %318 = vector.broadcast %cst_102 : f32 to vector<16x128xf32>
    %319 = arith.addf %318, %317 : vector<16x128xf32>
    %320 = arith.divf %318, %319 : vector<16x128xf32>
    %321 = vector.extract_strided_slice %309 {offsets = [0, 128], sizes = [16, 128], strides = [1, 1]} : vector<16x384xf32> to vector<16x128xf32>
    %322 = vector.extract_strided_slice %312 {offsets = [0, 128], sizes = [16, 128], strides = [1, 1]} : vector<16x384xf32> to vector<16x128xf32>
    %323 = arith.addf %321, %322 : vector<16x128xf32>
    %324 = arith.negf %323 : vector<16x128xf32>
    %325 = math.exp %324 : vector<16x128xf32>
    %cst_103 = arith.constant 1.000000e+00 : f32
    %326 = vector.broadcast %cst_103 : f32 to vector<16x128xf32>
    %327 = arith.addf %326, %325 : vector<16x128xf32>
    %328 = arith.divf %326, %327 : vector<16x128xf32>
    %329 = vector.extract_strided_slice %309 {offsets = [0, 256], sizes = [16, 128], strides = [1, 1]} : vector<16x384xf32> to vector<16x128xf32>
    %330 = vector.extract_strided_slice %312 {offsets = [0, 256], sizes = [16, 128], strides = [1, 1]} : vector<16x384xf32> to vector<16x128xf32>
    %331 = arith.addf %330, %5 : vector<16x128xf32>
    %332 = arith.mulf %320, %331 : vector<16x128xf32>
    %333 = arith.addf %329, %332 : vector<16x128xf32>
    %334 = math.tanh %333 : vector<16x128xf32>
    %cst_104 = arith.constant 1.000000e+00 : f32
    %335 = vector.broadcast %cst_104 : f32 to vector<16x128xf32>
    %336 = arith.subf %335, %328 : vector<16x128xf32>
    %337 = arith.mulf %336, %334 : vector<16x128xf32>
    %338 = arith.mulf %328, %265 : vector<16x128xf32>
    %339 = arith.addf %337, %338 : vector<16x128xf32>
    %340 = arith.truncf %339 : vector<16x128xf32> to vector<16x128xbf16>
    %c4_105 = arith.constant 4 : index
    %c0_106 = arith.constant 0 : index
    %c0_107 = arith.constant 0 : index
    %341 = vector.load %arg7[%c4_105, %c0_106, %c0_107] : memref<8x16x128xbf16, #tpu.memory_space<vmem>>, vector<1x16x128xbf16>
    %342 = vector.shape_cast %341 : vector<1x16x128xbf16> to vector<16x128xbf16>
    %343 = vector.shape_cast %340 : vector<16x128xbf16> to vector<1x16x128xbf16>
    tpu.vector_store %arg7[%c4_105, %c0_106, %c0_107], %343 {strides = array<i32>} : memref<8x16x128xbf16, #tpu.memory_space<vmem>>, vector<1x16x128xbf16>,
    %c3_108 = arith.constant 3 : index
    %c0_109 = arith.constant 0 : index
    %c0_110 = arith.constant 0 : index
    %344 = vector.load %arg2[%c3_108, %c0_109, %c0_110] : memref<8x16x384xbf16, #tpu.memory_space<vmem>>, vector<1x16x384xbf16>
    %345 = vector.shape_cast %344 : vector<1x16x384xbf16> to vector<16x384xbf16>
    %346 = arith.extf %345 : vector<16x384xbf16> to vector<16x384xf32>
    %347 = arith.truncf %302 : vector<16x128xf32> to vector<16x128xbf16>
    %c0_111 = arith.constant 0 : index
    %c0_112 = arith.constant 0 : index
    %348 = vector.load %arg5[%c0_111, %c0_112] : memref<128x384xbf16, #tpu.memory_space<vmem>>, vector<128x384xbf16>
    %cst_113 = arith.constant dense<0.000000e+00> : vector<16x384xf32>
    %349 = tpu.matmul %347, %348, %cst_113 {dimension_numbers = #tpu.dot_dimension_numbers<[1], [0], [0], [1], [0, 0, 1, 1], [], []>} : vector<16x128xbf16>, vector<128x384xbf16>, vector<16x384xf32> -> vector<16x384xf32>
    %350 = vector.extract_strided_slice %346 {offsets = [0, 0], sizes = [16, 128], strides = [1, 1]} : vector<16x384xf32> to vector<16x128xf32>
    %351 = vector.extract_strided_slice %349 {offsets = [0, 0], sizes = [16, 128], strides = [1, 1]} : vector<16x384xf32> to vector<16x128xf32>
    %352 = arith.addf %350, %351 : vector<16x128xf32>
    %353 = arith.negf %352 : vector<16x128xf32>
    %354 = math.exp %353 : vector<16x128xf32>
    %cst_114 = arith.constant 1.000000e+00 : f32
    %355 = vector.broadcast %cst_114 : f32 to vector<16x128xf32>
    %356 = arith.addf %355, %354 : vector<16x128xf32>
    %357 = arith.divf %355, %356 : vector<16x128xf32>
    %358 = vector.extract_strided_slice %346 {offsets = [0, 128], sizes = [16, 128], strides = [1, 1]} : vector<16x384xf32> to vector<16x128xf32>
    %359 = vector.extract_strided_slice %349 {offsets = [0, 128], sizes = [16, 128], strides = [1, 1]} : vector<16x384xf32> to vector<16x128xf32>
    %360 = arith.addf %358, %359 : vector<16x128xf32>
    %361 = arith.negf %360 : vector<16x128xf32>
    %362 = math.exp %361 : vector<16x128xf32>
    %cst_115 = arith.constant 1.000000e+00 : f32
    %363 = vector.broadcast %cst_115 : f32 to vector<16x128xf32>
    %364 = arith.addf %363, %362 : vector<16x128xf32>
    %365 = arith.divf %363, %364 : vector<16x128xf32>
    %366 = vector.extract_strided_slice %346 {offsets = [0, 256], sizes = [16, 128], strides = [1, 1]} : vector<16x384xf32> to vector<16x128xf32>
    %367 = vector.extract_strided_slice %349 {offsets = [0, 256], sizes = [16, 128], strides = [1, 1]} : vector<16x384xf32> to vector<16x128xf32>
    %368 = arith.addf %367, %8 : vector<16x128xf32>
    %369 = arith.mulf %357, %368 : vector<16x128xf32>
    %370 = arith.addf %366, %369 : vector<16x128xf32>
    %371 = math.tanh %370 : vector<16x128xf32>
    %cst_116 = arith.constant 1.000000e+00 : f32
    %372 = vector.broadcast %cst_116 : f32 to vector<16x128xf32>
    %373 = arith.subf %372, %365 : vector<16x128xf32>
    %374 = arith.mulf %373, %371 : vector<16x128xf32>
    %375 = arith.mulf %365, %302 : vector<16x128xf32>
    %376 = arith.addf %374, %375 : vector<16x128xf32>
    %377 = arith.truncf %376 : vector<16x128xf32> to vector<16x128xbf16>
    %c3_117 = arith.constant 3 : index
    %c0_118 = arith.constant 0 : index
    %c0_119 = arith.constant 0 : index
    %378 = vector.load %arg8[%c3_117, %c0_118, %c0_119] : memref<8x16x128xbf16, #tpu.memory_space<vmem>>, vector<1x16x128xbf16>
    %379 = vector.shape_cast %378 : vector<1x16x128xbf16> to vector<16x128xbf16>
    %380 = vector.shape_cast %377 : vector<16x128xbf16> to vector<1x16x128xbf16>
    tpu.vector_store %arg8[%c3_117, %c0_118, %c0_119], %380 {strides = array<i32>} : memref<8x16x128xbf16, #tpu.memory_space<vmem>>, vector<1x16x128xbf16>,
    %c5_120 = arith.constant 5 : index
    %c0_121 = arith.constant 0 : index
    %c0_122 = arith.constant 0 : index
    %381 = vector.load %arg1[%c5_120, %c0_121, %c0_122] : memref<8x16x384xbf16, #tpu.memory_space<vmem>>, vector<1x16x384xbf16>
    %382 = vector.shape_cast %381 : vector<1x16x384xbf16> to vector<16x384xbf16>
    %383 = arith.extf %382 : vector<16x384xbf16> to vector<16x384xf32>
    %384 = arith.truncf %339 : vector<16x128xf32> to vector<16x128xbf16>
    %c0_123 = arith.constant 0 : index
    %c0_124 = arith.constant 0 : index
    %385 = vector.load %arg3[%c0_123, %c0_124] : memref<128x384xbf16, #tpu.memory_space<vmem>>, vector<128x384xbf16>
    %cst_125 = arith.constant dense<0.000000e+00> : vector<16x384xf32>
    %386 = tpu.matmul %384, %385, %cst_125 {dimension_numbers = #tpu.dot_dimension_numbers<[1], [0], [0], [1], [0, 0, 1, 1], [], []>} : vector<16x128xbf16>, vector<128x384xbf16>, vector<16x384xf32> -> vector<16x384xf32>
    %387 = vector.extract_strided_slice %383 {offsets = [0, 0], sizes = [16, 128], strides = [1, 1]} : vector<16x384xf32> to vector<16x128xf32>
    %388 = vector.extract_strided_slice %386 {offsets = [0, 0], sizes = [16, 128], strides = [1, 1]} : vector<16x384xf32> to vector<16x128xf32>
    %389 = arith.addf %387, %388 : vector<16x128xf32>
    %390 = arith.negf %389 : vector<16x128xf32>
    %391 = math.exp %390 : vector<16x128xf32>
    %cst_126 = arith.constant 1.000000e+00 : f32
    %392 = vector.broadcast %cst_126 : f32 to vector<16x128xf32>
    %393 = arith.addf %392, %391 : vector<16x128xf32>
    %394 = arith.divf %392, %393 : vector<16x128xf32>
    %395 = vector.extract_strided_slice %383 {offsets = [0, 128], sizes = [16, 128], strides = [1, 1]} : vector<16x384xf32> to vector<16x128xf32>
    %396 = vector.extract_strided_slice %386 {offsets = [0, 128], sizes = [16, 128], strides = [1, 1]} : vector<16x384xf32> to vector<16x128xf32>
    %397 = arith.addf %395, %396 : vector<16x128xf32>
    %398 = arith.negf %397 : vector<16x128xf32>
    %399 = math.exp %398 : vector<16x128xf32>
    %cst_127 = arith.constant 1.000000e+00 : f32
    %400 = vector.broadcast %cst_127 : f32 to vector<16x128xf32>
    %401 = arith.addf %400, %399 : vector<16x128xf32>
    %402 = arith.divf %400, %401 : vector<16x128xf32>
    %403 = vector.extract_strided_slice %383 {offsets = [0, 256], sizes = [16, 128], strides = [1, 1]} : vector<16x384xf32> to vector<16x128xf32>
    %404 = vector.extract_strided_slice %386 {offsets = [0, 256], sizes = [16, 128], strides = [1, 1]} : vector<16x384xf32> to vector<16x128xf32>
    %405 = arith.addf %404, %5 : vector<16x128xf32>
    %406 = arith.mulf %394, %405 : vector<16x128xf32>
    %407 = arith.addf %403, %406 : vector<16x128xf32>
    %408 = math.tanh %407 : vector<16x128xf32>
    %cst_128 = arith.constant 1.000000e+00 : f32
    %409 = vector.broadcast %cst_128 : f32 to vector<16x128xf32>
    %410 = arith.subf %409, %402 : vector<16x128xf32>
    %411 = arith.mulf %410, %408 : vector<16x128xf32>
    %412 = arith.mulf %402, %339 : vector<16x128xf32>
    %413 = arith.addf %411, %412 : vector<16x128xf32>
    %414 = arith.truncf %413 : vector<16x128xf32> to vector<16x128xbf16>
    %c5_129 = arith.constant 5 : index
    %c0_130 = arith.constant 0 : index
    %c0_131 = arith.constant 0 : index
    %415 = vector.load %arg7[%c5_129, %c0_130, %c0_131] : memref<8x16x128xbf16, #tpu.memory_space<vmem>>, vector<1x16x128xbf16>
    %416 = vector.shape_cast %415 : vector<1x16x128xbf16> to vector<16x128xbf16>
    %417 = vector.shape_cast %414 : vector<16x128xbf16> to vector<1x16x128xbf16>
    tpu.vector_store %arg7[%c5_129, %c0_130, %c0_131], %417 {strides = array<i32>} : memref<8x16x128xbf16, #tpu.memory_space<vmem>>, vector<1x16x128xbf16>,
    %c2_132 = arith.constant 2 : index
    %c0_133 = arith.constant 0 : index
    %c0_134 = arith.constant 0 : index
    %418 = vector.load %arg2[%c2_132, %c0_133, %c0_134] : memref<8x16x384xbf16, #tpu.memory_space<vmem>>, vector<1x16x384xbf16>
    %419 = vector.shape_cast %418 : vector<1x16x384xbf16> to vector<16x384xbf16>
    %420 = arith.extf %419 : vector<16x384xbf16> to vector<16x384xf32>
    %421 = arith.truncf %376 : vector<16x128xf32> to vector<16x128xbf16>
    %c0_135 = arith.constant 0 : index
    %c0_136 = arith.constant 0 : index
    %422 = vector.load %arg5[%c0_135, %c0_136] : memref<128x384xbf16, #tpu.memory_space<vmem>>, vector<128x384xbf16>
    %cst_137 = arith.constant dense<0.000000e+00> : vector<16x384xf32>
    %423 = tpu.matmul %421, %422, %cst_137 {dimension_numbers = #tpu.dot_dimension_numbers<[1], [0], [0], [1], [0, 0, 1, 1], [], []>} : vector<16x128xbf16>, vector<128x384xbf16>, vector<16x384xf32> -> vector<16x384xf32>
    %424 = vector.extract_strided_slice %420 {offsets = [0, 0], sizes = [16, 128], strides = [1, 1]} : vector<16x384xf32> to vector<16x128xf32>
    %425 = vector.extract_strided_slice %423 {offsets = [0, 0], sizes = [16, 128], strides = [1, 1]} : vector<16x384xf32> to vector<16x128xf32>
    %426 = arith.addf %424, %425 : vector<16x128xf32>
    %427 = arith.negf %426 : vector<16x128xf32>
    %428 = math.exp %427 : vector<16x128xf32>
    %cst_138 = arith.constant 1.000000e+00 : f32
    %429 = vector.broadcast %cst_138 : f32 to vector<16x128xf32>
    %430 = arith.addf %429, %428 : vector<16x128xf32>
    %431 = arith.divf %429, %430 : vector<16x128xf32>
    %432 = vector.extract_strided_slice %420 {offsets = [0, 128], sizes = [16, 128], strides = [1, 1]} : vector<16x384xf32> to vector<16x128xf32>
    %433 = vector.extract_strided_slice %423 {offsets = [0, 128], sizes = [16, 128], strides = [1, 1]} : vector<16x384xf32> to vector<16x128xf32>
    %434 = arith.addf %432, %433 : vector<16x128xf32>
    %435 = arith.negf %434 : vector<16x128xf32>
    %436 = math.exp %435 : vector<16x128xf32>
    %cst_139 = arith.constant 1.000000e+00 : f32
    %437 = vector.broadcast %cst_139 : f32 to vector<16x128xf32>
    %438 = arith.addf %437, %436 : vector<16x128xf32>
    %439 = arith.divf %437, %438 : vector<16x128xf32>
    %440 = vector.extract_strided_slice %420 {offsets = [0, 256], sizes = [16, 128], strides = [1, 1]} : vector<16x384xf32> to vector<16x128xf32>
    %441 = vector.extract_strided_slice %423 {offsets = [0, 256], sizes = [16, 128], strides = [1, 1]} : vector<16x384xf32> to vector<16x128xf32>
    %442 = arith.addf %441, %8 : vector<16x128xf32>
    %443 = arith.mulf %431, %442 : vector<16x128xf32>
    %444 = arith.addf %440, %443 : vector<16x128xf32>
    %445 = math.tanh %444 : vector<16x128xf32>
    %cst_140 = arith.constant 1.000000e+00 : f32
    %446 = vector.broadcast %cst_140 : f32 to vector<16x128xf32>
    %447 = arith.subf %446, %439 : vector<16x128xf32>
    %448 = arith.mulf %447, %445 : vector<16x128xf32>
    %449 = arith.mulf %439, %376 : vector<16x128xf32>
    %450 = arith.addf %448, %449 : vector<16x128xf32>
    %451 = arith.truncf %450 : vector<16x128xf32> to vector<16x128xbf16>
    %c2_141 = arith.constant 2 : index
    %c0_142 = arith.constant 0 : index
    %c0_143 = arith.constant 0 : index
    %452 = vector.load %arg8[%c2_141, %c0_142, %c0_143] : memref<8x16x128xbf16, #tpu.memory_space<vmem>>, vector<1x16x128xbf16>
    %453 = vector.shape_cast %452 : vector<1x16x128xbf16> to vector<16x128xbf16>
    %454 = vector.shape_cast %451 : vector<16x128xbf16> to vector<1x16x128xbf16>
    tpu.vector_store %arg8[%c2_141, %c0_142, %c0_143], %454 {strides = array<i32>} : memref<8x16x128xbf16, #tpu.memory_space<vmem>>, vector<1x16x128xbf16>,
    %c6_144 = arith.constant 6 : index
    %c0_145 = arith.constant 0 : index
    %c0_146 = arith.constant 0 : index
    %455 = vector.load %arg1[%c6_144, %c0_145, %c0_146] : memref<8x16x384xbf16, #tpu.memory_space<vmem>>, vector<1x16x384xbf16>
    %456 = vector.shape_cast %455 : vector<1x16x384xbf16> to vector<16x384xbf16>
    %457 = arith.extf %456 : vector<16x384xbf16> to vector<16x384xf32>
    %458 = arith.truncf %413 : vector<16x128xf32> to vector<16x128xbf16>
    %c0_147 = arith.constant 0 : index
    %c0_148 = arith.constant 0 : index
    %459 = vector.load %arg3[%c0_147, %c0_148] : memref<128x384xbf16, #tpu.memory_space<vmem>>, vector<128x384xbf16>
    %cst_149 = arith.constant dense<0.000000e+00> : vector<16x384xf32>
    %460 = tpu.matmul %458, %459, %cst_149 {dimension_numbers = #tpu.dot_dimension_numbers<[1], [0], [0], [1], [0, 0, 1, 1], [], []>} : vector<16x128xbf16>, vector<128x384xbf16>, vector<16x384xf32> -> vector<16x384xf32>
    %461 = vector.extract_strided_slice %457 {offsets = [0, 0], sizes = [16, 128], strides = [1, 1]} : vector<16x384xf32> to vector<16x128xf32>
    %462 = vector.extract_strided_slice %460 {offsets = [0, 0], sizes = [16, 128], strides = [1, 1]} : vector<16x384xf32> to vector<16x128xf32>
    %463 = arith.addf %461, %462 : vector<16x128xf32>
    %464 = arith.negf %463 : vector<16x128xf32>
    %465 = math.exp %464 : vector<16x128xf32>
    %cst_150 = arith.constant 1.000000e+00 : f32
    %466 = vector.broadcast %cst_150 : f32 to vector<16x128xf32>
    %467 = arith.addf %466, %465 : vector<16x128xf32>
    %468 = arith.divf %466, %467 : vector<16x128xf32>
    %469 = vector.extract_strided_slice %457 {offsets = [0, 128], sizes = [16, 128], strides = [1, 1]} : vector<16x384xf32> to vector<16x128xf32>
    %470 = vector.extract_strided_slice %460 {offsets = [0, 128], sizes = [16, 128], strides = [1, 1]} : vector<16x384xf32> to vector<16x128xf32>
    %471 = arith.addf %469, %470 : vector<16x128xf32>
    %472 = arith.negf %471 : vector<16x128xf32>
    %473 = math.exp %472 : vector<16x128xf32>
    %cst_151 = arith.constant 1.000000e+00 : f32
    %474 = vector.broadcast %cst_151 : f32 to vector<16x128xf32>
    %475 = arith.addf %474, %473 : vector<16x128xf32>
    %476 = arith.divf %474, %475 : vector<16x128xf32>
    %477 = vector.extract_strided_slice %457 {offsets = [0, 256], sizes = [16, 128], strides = [1, 1]} : vector<16x384xf32> to vector<16x128xf32>
    %478 = vector.extract_strided_slice %460 {offsets = [0, 256], sizes = [16, 128], strides = [1, 1]} : vector<16x384xf32> to vector<16x128xf32>
    %479 = arith.addf %478, %5 : vector<16x128xf32>
    %480 = arith.mulf %468, %479 : vector<16x128xf32>
    %481 = arith.addf %477, %480 : vector<16x128xf32>
    %482 = math.tanh %481 : vector<16x128xf32>
    %cst_152 = arith.constant 1.000000e+00 : f32
    %483 = vector.broadcast %cst_152 : f32 to vector<16x128xf32>
    %484 = arith.subf %483, %476 : vector<16x128xf32>
    %485 = arith.mulf %484, %482 : vector<16x128xf32>
    %486 = arith.mulf %476, %413 : vector<16x128xf32>
    %487 = arith.addf %485, %486 : vector<16x128xf32>
    %488 = arith.truncf %487 : vector<16x128xf32> to vector<16x128xbf16>
    %c6_153 = arith.constant 6 : index
    %c0_154 = arith.constant 0 : index
    %c0_155 = arith.constant 0 : index
    %489 = vector.load %arg7[%c6_153, %c0_154, %c0_155] : memref<8x16x128xbf16, #tpu.memory_space<vmem>>, vector<1x16x128xbf16>
    %490 = vector.shape_cast %489 : vector<1x16x128xbf16> to vector<16x128xbf16>
    %491 = vector.shape_cast %488 : vector<16x128xbf16> to vector<1x16x128xbf16>
    tpu.vector_store %arg7[%c6_153, %c0_154, %c0_155], %491 {strides = array<i32>} : memref<8x16x128xbf16, #tpu.memory_space<vmem>>, vector<1x16x128xbf16>,
    %c1_156 = arith.constant 1 : index
    %c0_157 = arith.constant 0 : index
    %c0_158 = arith.constant 0 : index
    %492 = vector.load %arg2[%c1_156, %c0_157, %c0_158] : memref<8x16x384xbf16, #tpu.memory_space<vmem>>, vector<1x16x384xbf16>
    %493 = vector.shape_cast %492 : vector<1x16x384xbf16> to vector<16x384xbf16>
    %494 = arith.extf %493 : vector<16x384xbf16> to vector<16x384xf32>
    %495 = arith.truncf %450 : vector<16x128xf32> to vector<16x128xbf16>
    %c0_159 = arith.constant 0 : index
    %c0_160 = arith.constant 0 : index
    %496 = vector.load %arg5[%c0_159, %c0_160] : memref<128x384xbf16, #tpu.memory_space<vmem>>, vector<128x384xbf16>
    %cst_161 = arith.constant dense<0.000000e+00> : vector<16x384xf32>
    %497 = tpu.matmul %495, %496, %cst_161 {dimension_numbers = #tpu.dot_dimension_numbers<[1], [0], [0], [1], [0, 0, 1, 1], [], []>} : vector<16x128xbf16>, vector<128x384xbf16>, vector<16x384xf32> -> vector<16x384xf32>
    %498 = vector.extract_strided_slice %494 {offsets = [0, 0], sizes = [16, 128], strides = [1, 1]} : vector<16x384xf32> to vector<16x128xf32>
    %499 = vector.extract_strided_slice %497 {offsets = [0, 0], sizes = [16, 128], strides = [1, 1]} : vector<16x384xf32> to vector<16x128xf32>
    %500 = arith.addf %498, %499 : vector<16x128xf32>
    %501 = arith.negf %500 : vector<16x128xf32>
    %502 = math.exp %501 : vector<16x128xf32>
    %cst_162 = arith.constant 1.000000e+00 : f32
    %503 = vector.broadcast %cst_162 : f32 to vector<16x128xf32>
    %504 = arith.addf %503, %502 : vector<16x128xf32>
    %505 = arith.divf %503, %504 : vector<16x128xf32>
    %506 = vector.extract_strided_slice %494 {offsets = [0, 128], sizes = [16, 128], strides = [1, 1]} : vector<16x384xf32> to vector<16x128xf32>
    %507 = vector.extract_strided_slice %497 {offsets = [0, 128], sizes = [16, 128], strides = [1, 1]} : vector<16x384xf32> to vector<16x128xf32>
    %508 = arith.addf %506, %507 : vector<16x128xf32>
    %509 = arith.negf %508 : vector<16x128xf32>
    %510 = math.exp %509 : vector<16x128xf32>
    %cst_163 = arith.constant 1.000000e+00 : f32
    %511 = vector.broadcast %cst_163 : f32 to vector<16x128xf32>
    %512 = arith.addf %511, %510 : vector<16x128xf32>
    %513 = arith.divf %511, %512 : vector<16x128xf32>
    %514 = vector.extract_strided_slice %494 {offsets = [0, 256], sizes = [16, 128], strides = [1, 1]} : vector<16x384xf32> to vector<16x128xf32>
    %515 = vector.extract_strided_slice %497 {offsets = [0, 256], sizes = [16, 128], strides = [1, 1]} : vector<16x384xf32> to vector<16x128xf32>
    %516 = arith.addf %515, %8 : vector<16x128xf32>
    %517 = arith.mulf %505, %516 : vector<16x128xf32>
    %518 = arith.addf %514, %517 : vector<16x128xf32>
    %519 = math.tanh %518 : vector<16x128xf32>
    %cst_164 = arith.constant 1.000000e+00 : f32
    %520 = vector.broadcast %cst_164 : f32 to vector<16x128xf32>
    %521 = arith.subf %520, %513 : vector<16x128xf32>
    %522 = arith.mulf %521, %519 : vector<16x128xf32>
    %523 = arith.mulf %513, %450 : vector<16x128xf32>
    %524 = arith.addf %522, %523 : vector<16x128xf32>
    %525 = arith.truncf %524 : vector<16x128xf32> to vector<16x128xbf16>
    %c1_165 = arith.constant 1 : index
    %c0_166 = arith.constant 0 : index
    %c0_167 = arith.constant 0 : index
    %526 = vector.load %arg8[%c1_165, %c0_166, %c0_167] : memref<8x16x128xbf16, #tpu.memory_space<vmem>>, vector<1x16x128xbf16>
    %527 = vector.shape_cast %526 : vector<1x16x128xbf16> to vector<16x128xbf16>
    %528 = vector.shape_cast %525 : vector<16x128xbf16> to vector<1x16x128xbf16>
    tpu.vector_store %arg8[%c1_165, %c0_166, %c0_167], %528 {strides = array<i32>} : memref<8x16x128xbf16, #tpu.memory_space<vmem>>, vector<1x16x128xbf16>,
    %c7_168 = arith.constant 7 : index
    %c0_169 = arith.constant 0 : index
    %c0_170 = arith.constant 0 : index
    %529 = vector.load %arg1[%c7_168, %c0_169, %c0_170] : memref<8x16x384xbf16, #tpu.memory_space<vmem>>, vector<1x16x384xbf16>
    %530 = vector.shape_cast %529 : vector<1x16x384xbf16> to vector<16x384xbf16>
    %531 = arith.extf %530 : vector<16x384xbf16> to vector<16x384xf32>
    %532 = arith.truncf %487 : vector<16x128xf32> to vector<16x128xbf16>
    %c0_171 = arith.constant 0 : index
    %c0_172 = arith.constant 0 : index
    %533 = vector.load %arg3[%c0_171, %c0_172] : memref<128x384xbf16, #tpu.memory_space<vmem>>, vector<128x384xbf16>
    %cst_173 = arith.constant dense<0.000000e+00> : vector<16x384xf32>
    %534 = tpu.matmul %532, %533, %cst_173 {dimension_numbers = #tpu.dot_dimension_numbers<[1], [0], [0], [1], [0, 0, 1, 1], [], []>} : vector<16x128xbf16>, vector<128x384xbf16>, vector<16x384xf32> -> vector<16x384xf32>
    %535 = vector.extract_strided_slice %531 {offsets = [0, 0], sizes = [16, 128], strides = [1, 1]} : vector<16x384xf32> to vector<16x128xf32>
    %536 = vector.extract_strided_slice %534 {offsets = [0, 0], sizes = [16, 128], strides = [1, 1]} : vector<16x384xf32> to vector<16x128xf32>
    %537 = arith.addf %535, %536 : vector<16x128xf32>
    %538 = arith.negf %537 : vector<16x128xf32>
    %539 = math.exp %538 : vector<16x128xf32>
    %cst_174 = arith.constant 1.000000e+00 : f32
    %540 = vector.broadcast %cst_174 : f32 to vector<16x128xf32>
    %541 = arith.addf %540, %539 : vector<16x128xf32>
    %542 = arith.divf %540, %541 : vector<16x128xf32>
    %543 = vector.extract_strided_slice %531 {offsets = [0, 128], sizes = [16, 128], strides = [1, 1]} : vector<16x384xf32> to vector<16x128xf32>
    %544 = vector.extract_strided_slice %534 {offsets = [0, 128], sizes = [16, 128], strides = [1, 1]} : vector<16x384xf32> to vector<16x128xf32>
    %545 = arith.addf %543, %544 : vector<16x128xf32>
    %546 = arith.negf %545 : vector<16x128xf32>
    %547 = math.exp %546 : vector<16x128xf32>
    %cst_175 = arith.constant 1.000000e+00 : f32
    %548 = vector.broadcast %cst_175 : f32 to vector<16x128xf32>
    %549 = arith.addf %548, %547 : vector<16x128xf32>
    %550 = arith.divf %548, %549 : vector<16x128xf32>
    %551 = vector.extract_strided_slice %531 {offsets = [0, 256], sizes = [16, 128], strides = [1, 1]} : vector<16x384xf32> to vector<16x128xf32>
    %552 = vector.extract_strided_slice %534 {offsets = [0, 256], sizes = [16, 128], strides = [1, 1]} : vector<16x384xf32> to vector<16x128xf32>
    %553 = arith.addf %552, %5 : vector<16x128xf32>
    %554 = arith.mulf %542, %553 : vector<16x128xf32>
    %555 = arith.addf %551, %554 : vector<16x128xf32>
    %556 = math.tanh %555 : vector<16x128xf32>
    %cst_176 = arith.constant 1.000000e+00 : f32
    %557 = vector.broadcast %cst_176 : f32 to vector<16x128xf32>
    %558 = arith.subf %557, %550 : vector<16x128xf32>
    %559 = arith.mulf %558, %556 : vector<16x128xf32>
    %560 = arith.mulf %550, %487 : vector<16x128xf32>
    %561 = arith.addf %559, %560 : vector<16x128xf32>
    %562 = arith.truncf %561 : vector<16x128xf32> to vector<16x128xbf16>
    %c7_177 = arith.constant 7 : index
    %c0_178 = arith.constant 0 : index
    %c0_179 = arith.constant 0 : index
    %563 = vector.load %arg7[%c7_177, %c0_178, %c0_179] : memref<8x16x128xbf16, #tpu.memory_space<vmem>>, vector<1x16x128xbf16>
    %564 = vector.shape_cast %563 : vector<1x16x128xbf16> to vector<16x128xbf16>
    %565 = vector.shape_cast %562 : vector<16x128xbf16> to vector<1x16x128xbf16>
    tpu.vector_store %arg7[%c7_177, %c0_178, %c0_179], %565 {strides = array<i32>} : memref<8x16x128xbf16, #tpu.memory_space<vmem>>, vector<1x16x128xbf16>,
    %c0_180 = arith.constant 0 : index
    %c0_181 = arith.constant 0 : index
    %c0_182 = arith.constant 0 : index
    %566 = vector.load %arg2[%c0_180, %c0_181, %c0_182] : memref<8x16x384xbf16, #tpu.memory_space<vmem>>, vector<1x16x384xbf16>
    %567 = vector.shape_cast %566 : vector<1x16x384xbf16> to vector<16x384xbf16>
    %568 = arith.extf %567 : vector<16x384xbf16> to vector<16x384xf32>
    %569 = arith.truncf %524 : vector<16x128xf32> to vector<16x128xbf16>
    %c0_183 = arith.constant 0 : index
    %c0_184 = arith.constant 0 : index
    %570 = vector.load %arg5[%c0_183, %c0_184] : memref<128x384xbf16, #tpu.memory_space<vmem>>, vector<128x384xbf16>
    %cst_185 = arith.constant dense<0.000000e+00> : vector<16x384xf32>
    %571 = tpu.matmul %569, %570, %cst_185 {dimension_numbers = #tpu.dot_dimension_numbers<[1], [0], [0], [1], [0, 0, 1, 1], [], []>} : vector<16x128xbf16>, vector<128x384xbf16>, vector<16x384xf32> -> vector<16x384xf32>
    %572 = vector.extract_strided_slice %568 {offsets = [0, 0], sizes = [16, 128], strides = [1, 1]} : vector<16x384xf32> to vector<16x128xf32>
    %573 = vector.extract_strided_slice %571 {offsets = [0, 0], sizes = [16, 128], strides = [1, 1]} : vector<16x384xf32> to vector<16x128xf32>
    %574 = arith.addf %572, %573 : vector<16x128xf32>
    %575 = arith.negf %574 : vector<16x128xf32>
    %576 = math.exp %575 : vector<16x128xf32>
    %cst_186 = arith.constant 1.000000e+00 : f32
    %577 = vector.broadcast %cst_186 : f32 to vector<16x128xf32>
    %578 = arith.addf %577, %576 : vector<16x128xf32>
    %579 = arith.divf %577, %578 : vector<16x128xf32>
    %580 = vector.extract_strided_slice %568 {offsets = [0, 128], sizes = [16, 128], strides = [1, 1]} : vector<16x384xf32> to vector<16x128xf32>
    %581 = vector.extract_strided_slice %571 {offsets = [0, 128], sizes = [16, 128], strides = [1, 1]} : vector<16x384xf32> to vector<16x128xf32>
    %582 = arith.addf %580, %581 : vector<16x128xf32>
    %583 = arith.negf %582 : vector<16x128xf32>
    %584 = math.exp %583 : vector<16x128xf32>
    %cst_187 = arith.constant 1.000000e+00 : f32
    %585 = vector.broadcast %cst_187 : f32 to vector<16x128xf32>
    %586 = arith.addf %585, %584 : vector<16x128xf32>
    %587 = arith.divf %585, %586 : vector<16x128xf32>
    %588 = vector.extract_strided_slice %568 {offsets = [0, 256], sizes = [16, 128], strides = [1, 1]} : vector<16x384xf32> to vector<16x128xf32>
    %589 = vector.extract_strided_slice %571 {offsets = [0, 256], sizes = [16, 128], strides = [1, 1]} : vector<16x384xf32> to vector<16x128xf32>
    %590 = arith.addf %589, %8 : vector<16x128xf32>
    %591 = arith.mulf %579, %590 : vector<16x128xf32>
    %592 = arith.addf %588, %591 : vector<16x128xf32>
    %593 = math.tanh %592 : vector<16x128xf32>
    %cst_188 = arith.constant 1.000000e+00 : f32
    %594 = vector.broadcast %cst_188 : f32 to vector<16x128xf32>
    %595 = arith.subf %594, %587 : vector<16x128xf32>
    %596 = arith.mulf %595, %593 : vector<16x128xf32>
    %597 = arith.mulf %587, %524 : vector<16x128xf32>
    %598 = arith.addf %596, %597 : vector<16x128xf32>
    %599 = arith.truncf %598 : vector<16x128xf32> to vector<16x128xbf16>
    %c0_189 = arith.constant 0 : index
    %c0_190 = arith.constant 0 : index
    %c0_191 = arith.constant 0 : index
    %600 = vector.load %arg8[%c0_189, %c0_190, %c0_191] : memref<8x16x128xbf16, #tpu.memory_space<vmem>>, vector<1x16x128xbf16>
    %601 = vector.shape_cast %600 : vector<1x16x128xbf16> to vector<16x128xbf16>
    %602 = vector.shape_cast %599 : vector<16x128xbf16> to vector<1x16x128xbf16>
    tpu.vector_store %arg8[%c0_189, %c0_190, %c0_191], %602 {strides = array<i32>} : memref<8x16x128xbf16, #tpu.memory_space<vmem>>, vector<1x16x128xbf16>,
    %c0_192 = arith.constant 0 : index
    %c0_193 = arith.constant 0 : index
    %603 = vector.load %arg9[%c0_192, %c0_193] : memref<16x128xf32, #tpu.memory_space<vmem>>, vector<16x128xf32>
    tpu.vector_store %arg9[%c0_192, %c0_193], %561 {strides = array<i32>} : memref<16x128xf32, #tpu.memory_space<vmem>>, vector<16x128xf32>,
    %c0_194 = arith.constant 0 : index
    %c0_195 = arith.constant 0 : index
    %604 = vector.load %arg10[%c0_194, %c0_195] : memref<16x128xf32, #tpu.memory_space<vmem>>, vector<16x128xf32>
    tpu.vector_store %arg10[%c0_194, %c0_195], %598 {strides = array<i32>} : memref<16x128xf32, #tpu.memory_space<vmem>>, vector<16x128xf32>,
    return
  }
  func.func @transform_0(%arg0: i32) -> (i32, i32, i32) {
    %c0_i32 = arith.constant 0 : i32
    %c0_i32_0 = arith.constant 0 : i32
    %c0_i32_1 = arith.constant 0 : i32
    return %arg0, %c0_i32, %c0_i32_0 : i32, i32, i32
  }
  func.func @transform_1(%arg0: i32) -> (i32, i32, i32) {
    %c0_i32 = arith.constant 0 : i32
    %0 = arith.subi %c0_i32, %arg0 : i32
    %c0_i32_0 = arith.constant 0 : i32
    %c0_i32_1 = arith.constant 0 : i32
    %c0_i32_2 = arith.constant 0 : i32
    return %0, %c0_i32_0, %c0_i32_1 : i32, i32, i32
  }
  func.func @transform_2(%arg0: i32) -> (i32, i32) {
    %c0_i32 = arith.constant 0 : i32
    %c0_i32_0 = arith.constant 0 : i32
    %c0_i32_1 = arith.constant 0 : i32
    return %c0_i32, %c0_i32_0 : i32, i32
  }
  func.func @transform_3(%arg0: i32) -> (i32, i32) {
    %c0_i32 = arith.constant 0 : i32
    %c0_i32_0 = arith.constant 0 : i32
    %c0_i32_1 = arith.constant 0 : i32
    return %c0_i32, %c0_i32_0 : i32, i32
  }
  func.func @transform_4(%arg0: i32) -> (i32, i32) {
    %c0_i32 = arith.constant 0 : i32
    %c0_i32_0 = arith.constant 0 : i32
    %c0_i32_1 = arith.constant 0 : i32
    return %c0_i32, %c0_i32_0 : i32, i32
  }
  func.func @transform_5(%arg0: i32) -> (i32, i32) {
    %c0_i32 = arith.constant 0 : i32
    %c0_i32_0 = arith.constant 0 : i32
    %c0_i32_1 = arith.constant 0 : i32
    return %c0_i32, %c0_i32_0 : i32, i32
  }
  func.func @transform_6(%arg0: i32) -> (i32, i32, i32) {
    %c0_i32 = arith.constant 0 : i32
    %c0_i32_0 = arith.constant 0 : i32
    %c0_i32_1 = arith.constant 0 : i32
    return %arg0, %c0_i32, %c0_i32_0 : i32, i32, i32
  }
  func.func @transform_7(%arg0: i32) -> (i32, i32, i32) {
    %c0_i32 = arith.constant 0 : i32
    %0 = arith.subi %c0_i32, %arg0 : i32
    %c0_i32_0 = arith.constant 0 : i32
    %c0_i32_1 = arith.constant 0 : i32
    %c0_i32_2 = arith.constant 0 : i32
    return %0, %c0_i32_0, %c0_i32_1 : i32, i32, i32
  }
}

</mosaic_0001>

<llo_original>
// kernel: tpu_custom_call.1
$region0: #{tpu_custom_call.1}
  #allocation0 [shape = 'u32[]', space=smem, size = 0x4, offset = 0x4, fixed_abs, tag = 'smem constant byte address 0x4 - core index']
  #allocation1 [shape = 'u32[144,128]{1,0:T(1,128)}', space=vmem, size = 0x12000, scoped, tag = 'internal scratch']
  #allocation2 [shape = 'f32[16,128]{1,0:T(8,128)}', space=vmem, size = 0x2000, scoped, tag = 'scratch operand']
  #allocation3 [shape = 'f32[16,128]{1,0:T(8,128)}', space=vmem, size = 0x2000, scoped, tag = 'scratch operand']
  %s0 = inlined_call_operand.hbm [shape: bf16[8,16,384], index: 0, kind: input, shape index: {}]
  %s1 = inlined_call_operand.hbm [shape: bf16[8,16,384], index: 1, kind: input, shape index: {}]
  %s2 = inlined_call_operand.hbm [shape: bf16[128,384], index: 2, kind: input, shape index: {}]
  %s3 = inlined_call_operand.vmem [shape: f32[1,128], index: 3, kind: input, shape index: {}]
  %s4 = inlined_call_operand.hbm [shape: bf16[128,384], index: 4, kind: input, shape index: {}]
  %s5 = inlined_call_operand.vmem [shape: f32[1,128], index: 5, kind: input, shape index: {}]
  %s6 = inlined_call_operand.hbm [shape: bf16[8,16,128], index: 6, kind: output, shape index: {0}]
  %s7 = inlined_call_operand.hbm [shape: bf16[8,16,128], index: 7, kind: output, shape index: {1}]
  %8 = xla_tuple %s6, %s7
  %s9 = sld [smem:[#allocation0]]
  $region62: #{tpu_custom_call.1} parent=0
    _
  %s11 = ssub.s32 1, %s9
  %s12 = scalar_select 0, %s11, %s9
  $region1: #{tpu_custom_call.1} parent=0
    #allocation4 [shape = 'u8[98304]{0}', space=vmem, size = 0x18000, scoped, tag = 'input window, operand 0, single buffered']
    #allocation5 [shape = 's32[1]{0}', space=sflag, size = 0x4, scoped, tag = 'scoped memory for tpu_custom_call.1']
    #allocation6 [shape = 's32[1]{0}', space=sflag, size = 0x4, scoped, tag = 'scoped memory for tpu_custom_call.1']
    #allocation7 [shape = 'u8[98304]{0}', space=vmem, size = 0x18000, scoped, tag = 'input window, operand 1, single buffered']
    #allocation8 [shape = 's32[1]{0}', space=sflag, size = 0x4, scoped, tag = 'scoped memory for tpu_custom_call.1']
    #allocation9 [shape = 'u8[98304]{0}', space=vmem, size = 0x18000, scoped, tag = 'input window, operand 2, single buffered']
    #allocation10 [shape = 'u8[98304]{0}', space=vmem, size = 0x18000, scoped, tag = 'input window, operand 4, single buffered']
    #allocation11 [shape = 's32[1]{0}', space=sflag, size = 0x4, scoped, tag = 'scoped memory for tpu_custom_call.1']
    #allocation12 [shape = 'u8[32768]{0}', space=vmem, size = 0x8000, scoped, tag = 'output window, operand 0, single buffered']
    #allocation13 [shape = 'u8[32768]{0}', space=vmem, size = 0x8000, scoped, tag = 'output window, operand 1, single buffered']
    #allocation14 [shape = 's32[1]{0}', space=sflag, size = 0x4, scoped, tag = 'scoped memory for tpu_custom_call.1']
    %13 = vsyncpa [#allocation5], 0
    %14 = vsyncpa [#allocation8], 0
    %15 = vsyncpa [#allocation11], 0
    %16 = vsyncpa [#allocation6], 0
    %17 = vsyncpa [#allocation14], 0
    // Predicated region
    $region2: #{tpu_custom_call.1} parent=1 // pred_check
      _
    $region3: #{tpu_custom_call.1} parent=1 // pred_check_branch
      %19 = sbr.rel (0) target = $region5
    $region4: #{tpu_custom_call.1} parent=1 // pred_region
      %s21 = ssub.s32 3072, 3072
      %22 = vsyncadd [#allocation5], %s21
      %s23 = sshll.u32 [#allocation4], 4
      %s24 = int_to_ptr.vmem [resolvable:$true] %s23
      %29 = dma.hbm_to_vmem [thread:$0]  %s0, 3072, %s24, [#allocation5], 192, 192, 12
    $region5: #{tpu_custom_call.1} parent=1 // pred_fallthru
      _
    // Predicated region
    $region6: #{tpu_custom_call.1} parent=1 // pred_check
      _
    $region7: #{tpu_custom_call.1} parent=1 // pred_check_branch
      %31 = sbr.rel (0) target = $region9
    $region8: #{tpu_custom_call.1} parent=1 // pred_region
      %s32 = ssub.s32 0, 0
      %s33 = smul.u32 8, %s32
      %s35 = ssub.s32 3072, 3072
      %36 = vsyncadd [#allocation8], %s35
      %s37 = smul.addr %s33, 6
      %s38 = smul.addr %s37, 64
      %s39 = scalar_lea.hbm %s1, %s38
      %s40 = sshll.u32 [#allocation7], 4
      %s41 = int_to_ptr.vmem [resolvable:$true] %s40
      %46 = dma.hbm_to_vmem [thread:$0]  %s39, 3072, %s41, [#allocation8], 192, 192, 12
    $region9: #{tpu_custom_call.1} parent=1 // pred_fallthru
      _
    // Predicated region
    $region10: #{tpu_custom_call.1} parent=1 // pred_check
      _
    $region11: #{tpu_custom_call.1} parent=1 // pred_check_branch
      %48 = sbr.rel (0) target = $region13
    $region12: #{tpu_custom_call.1} parent=1 // pred_region
      %s50 = ssub.s32 3072, 3072
      %51 = vsyncadd [#allocation8], %s50
      %s52 = sshll.u32 [#allocation9], 4
      %s53 = int_to_ptr.vmem [resolvable:$true] %s52
      %58 = dma.hbm_to_vmem [thread:$0]  %s2, 3072, %s53, [#allocation8], 192, 192, 12
    $region13: #{tpu_custom_call.1} parent=1 // pred_fallthru
      _
    // Predicated region
    $region14: #{tpu_custom_call.1} parent=1 // pred_check
      _
    $region15: #{tpu_custom_call.1} parent=1 // pred_check_branch
      %60 = sbr.rel (0) target = $region17
    $region16: #{tpu_custom_call.1} parent=1 // pred_region
      _
    $region17: #{tpu_custom_call.1} parent=1 // pred_fallthru
      _
    // Predicated region
    $region18: #{tpu_custom_call.1} parent=1 // pred_check
      _
    $region19: #{tpu_custom_call.1} parent=1 // pred_check_branch
      %62 = sbr.rel (0) target = $region21
    $region20: #{tpu_custom_call.1} parent=1 // pred_region
      %s64 = ssub.s32 3072, 3072
      %65 = vsyncadd [#allocation11], %s64
      %s66 = sshll.u32 [#allocation10], 4
      %s67 = int_to_ptr.vmem [resolvable:$true] %s66
      %72 = dma.hbm_to_vmem [thread:$0]  %s4, 3072, %s67, [#allocation11], 192, 192, 12
    $region21: #{tpu_custom_call.1} parent=1 // pred_fallthru
      _
    // Predicated region
    $region22: #{tpu_custom_call.1} parent=1 // pred_check
      _
    $region23: #{tpu_custom_call.1} parent=1 // pred_check_branch
      %74 = sbr.rel (0) target = $region25
    $region24: #{tpu_custom_call.1} parent=1 // pred_region
      _
    $region25: #{tpu_custom_call.1} parent=1 // pred_fallthru
      _
    // Predicated region
    $region26: #{tpu_custom_call.1} parent=1 // pred_check
      _
    $region27: #{tpu_custom_call.1} parent=1 // pred_check_branch
      %76 = sbr.rel (0) target = $region29
    $region28: #{tpu_custom_call.1} parent=1 // pred_region
      %77 = dma.done [#allocation5], 3072
    $region29: #{tpu_custom_call.1} parent=1 // pred_fallthru
      _
    // Predicated region
    $region30: #{tpu_custom_call.1} parent=1 // pred_check
      _
    $region31: #{tpu_custom_call.1} parent=1 // pred_check_branch
      %79 = sbr.rel (0) target = $region33
    $region32: #{tpu_custom_call.1} parent=1 // pred_region
      %80 = dma.done [#allocation8], 3072
    $region33: #{tpu_custom_call.1} parent=1 // pred_fallthru
      _
    // Predicated region
    $region34: #{tpu_custom_call.1} parent=1 // pred_check
      _
    $region35: #{tpu_custom_call.1} parent=1 // pred_check_branch
      %82 = sbr.rel (0) target = $region37
    $region36: #{tpu_custom_call.1} parent=1 // pred_region
      %83 = dma.done [#allocation8], 3072
    $region37: #{tpu_custom_call.1} parent=1 // pred_fallthru
      _
    // Predicated region
    $region38: #{tpu_custom_call.1} parent=1 // pred_check
      _
    $region39: #{tpu_custom_call.1} parent=1 // pred_check_branch
      %85 = sbr.rel (0) target = $region41
    $region40: #{tpu_custom_call.1} parent=1 // pred_region
      %86 = dma.done [#allocation11], 3072
    $region41: #{tpu_custom_call.1} parent=1 // pred_fallthru
      _
    %s87 = ssub.s32 0, 0
    %s88 = smul.u32 8, %s87
    %s89 = ssub.s32 0, 0
    %s90 = smul.u32 8, %s89
    %p92 = scmp.eq.s32.totalorder 0, 0
    // Predicated region
    $region42: #{tpu_custom_call.1} parent=1 // pred_check
      %p93 = pneg %p92
    $region43: #{tpu_custom_call.1} parent=1 // pred_check_branch
      %95 = sbr.rel (%p93) target = $region45
    $region44: #{tpu_custom_call.1} parent=1 // pred_region
      %96 = vst [vmem:[#allocation2] sm:$0xff] 0.0
      %97 = vst [vmem:[#allocation2 + $0x8] sm:$0xff] 0.0
      %98 = vst [vmem:[#allocation3] sm:$0xff] 0.0
      %99 = vst [vmem:[#allocation3 + $0x8] sm:$0xff] 0.0
    $region45: #{tpu_custom_call.1} parent=1 // pred_fallthru
      _
    %v100 = vld [vmem:[%s3] sm:$0x1]
    %v102 = vlaneseq
    %v103 = vshrl.u32 %v102, 7
    %v104 = vsub.s32 0, %v103
    %v105 = vrot.slane %v100, %v104
    %v107 = vld [vmem:[%s5] sm:$0x1]
    %v109 = vlaneseq
    %v110 = vshrl.u32 %v109, 7
    %v111 = vsub.s32 0, %v110
    %v112 = vrot.slane %v107, %v111
    %v114 = vld [vmem:[#allocation2] sm:$0xff]
    %v115 = vld [vmem:[#allocation2 + $0x8] sm:$0xff]
    %v116 = vld [vmem:[#allocation3] sm:$0xff]
    %v117 = vld [vmem:[#allocation3 + $0x8] sm:$0xff]
    %v118 = vld [vmem:[#allocation4] sm:$0xff]
    %v119 = vld [vmem:[#allocation4 + $0x8] sm:$0xf]
    %v120 = vld [vmem:[#allocation4 + $0xc] sm:$0xff]
    %v121 = vld [vmem:[#allocation4 + $0x14] sm:$0xf]
    %v122 = vunpack.c.l.bf16 %v118
    %v123 = vunpack.c.h.bf16 %v118
    %v124 = vunpack.c.l.bf16 %v119
    %v125 = vunpack.c.l.bf16 %v120
    %v126 = vunpack.c.h.bf16 %v120
    %v127 = vunpack.c.l.bf16 %v121
    %v128 = vpack.c.bf16 %v115, %v114
    %v129 = vld [vmem:[#allocation9] sm:$0xff]
    %v130 = vld [vmem:[#allocation9 + $0x8] sm:$0xf]
    %v131 = vld [vmem:[#allocation9 + $0xc] sm:$0xff]
    %v132 = vld [vmem:[#allocation9 + $0x14] sm:$0xf]
    %v133 = vld [vmem:[#allocation9 + $0x18] sm:$0xff]
    %v134 = vld [vmem:[#allocation9 + $0x20] sm:$0xf]
    %v135 = vld [vmem:[#allocation9 + $0x24] sm:$0xff]
    %v136 = vld [vmem:[#allocation9 + $0x2c] sm:$0xf]
    %v137 = vld [vmem:[#allocation9 + $0x30] sm:$0xff]
    %v138 = vld [vmem:[#allocation9 + $0x38] sm:$0xf]
    %v139 = vld [vmem:[#allocation9 + $0x3c] sm:$0xff]
    %v140 = vld [vmem:[#allocation9 + $0x44] sm:$0xf]
    %v141 = vld [vmem:[#allocation9 + $0x48] sm:$0xff]
    %v142 = vld [vmem:[#allocation9 + $0x50] sm:$0xf]
    %v143 = vld [vmem:[#allocation9 + $0x54] sm:$0xff]
    %v144 = vld [vmem:[#allocation9 + $0x5c] sm:$0xf]
    %v145 = vld [vmem:[#allocation9 + $0x60] sm:$0xff]
    %v146 = vld [vmem:[#allocation9 + $0x68] sm:$0xf]
    %v147 = vld [vmem:[#allocation9 + $0x6c] sm:$0xff]
    %v148 = vld [vmem:[#allocation9 + $0x74] sm:$0xf]
    %v149 = vld [vmem:[#allocation9 + $0x78] sm:$0xff]
    %v150 = vld [vmem:[#allocation9 + $0x80] sm:$0xf]
    %v151 = vld [vmem:[#allocation9 + $0x84] sm:$0xff]
    %v152 = vld [vmem:[#allocation9 + $0x8c] sm:$0xf]
    %v153 = vld [vmem:[#allocation9 + $0x90] sm:$0xff]
    %v154 = vld [vmem:[#allocation9 + $0x98] sm:$0xf]
    %v155 = vld [vmem:[#allocation9 + $0x9c] sm:$0xff]
    %v156 = vld [vmem:[#allocation9 + $0xa4] sm:$0xf]
    %v157 = vld [vmem:[#allocation9 + $0xa8] sm:$0xff]
    %v158 = vld [vmem:[#allocation9 + $0xb0] sm:$0xf]
    %v159 = vld [vmem:[#allocation9 + $0xb4] sm:$0xff]
    %v160 = vld [vmem:[#allocation9 + $0xbc] sm:$0xf]
    %v193 = vunpack.c.l.b16 %v129
    %v194 = vunpack.c.h.b16 %v129
    %v195 = vunpack.c.l.b16 %v130
    %v196 = vunpack.c.l.b16 %v131
    %v197 = vunpack.c.h.b16 %v131
    %v198 = vunpack.c.l.b16 %v132
    %v199 = vunpack.c.l.b16 %v133
    %v200 = vunpack.c.h.b16 %v133
    %v201 = vunpack.c.l.b16 %v134
    %v202 = vunpack.c.l.b16 %v135
    %v203 = vunpack.c.h.b16 %v135
    %v204 = vunpack.c.l.b16 %v136
    %v205 = vunpack.c.l.b16 %v137
    %v206 = vunpack.c.h.b16 %v137
    %v207 = vunpack.c.l.b16 %v138
    %v208 = vunpack.c.l.b16 %v139
    %v209 = vunpack.c.h.b16 %v139
    %v210 = vunpack.c.l.b16 %v140
    %v211 = vunpack.c.l.b16 %v141
    %v212 = vunpack.c.h.b16 %v141
    %v213 = vunpack.c.l.b16 %v142
    %v214 = vunpack.c.l.b16 %v143
    %v215 = vunpack.c.h.b16 %v143
    %v216 = vunpack.c.l.b16 %v144
    %v217 = vunpack.c.l.b16 %v145
    %v218 = vunpack.c.h.b16 %v145
    %v219 = vunpack.c.l.b16 %v146
    %v220 = vunpack.c.l.b16 %v147
    %v221 = vunpack.c.h.b16 %v147
    %v222 = vunpack.c.l.b16 %v148
    %v223 = vunpack.c.l.b16 %v149
    %v224 = vunpack.c.h.b16 %v149
    %v225 = vunpack.c.l.b16 %v150
    %v226 = vunpack.c.l.b16 %v151
    %v227 = vunpack.c.h.b16 %v151
    %v228 = vunpack.c.l.b16 %v152
    %v229 = vunpack.c.l.b16 %v153
    %v230 = vunpack.c.h.b16 %v153
    %v231 = vunpack.c.l.b16 %v154
    %v232 = vunpack.c.l.b16 %v155
    %v233 = vunpack.c.h.b16 %v155
    %v234 = vunpack.c.l.b16 %v156
    %v235 = vunpack.c.l.b16 %v157
    %v236 = vunpack.c.h.b16 %v157
    %v237 = vunpack.c.l.b16 %v158
    %v238 = vunpack.c.l.b16 %v159
    %v239 = vunpack.c.h.b16 %v159
    %v240 = vunpack.c.l.b16 %v160
    %v241 = vpack.c.b16 %v196, %v193
    %v242 = vpack.c.b16 %v197, %v194
    %v243 = vpack.c.b16 %v198, %v195
    %v244 = vpack.c.b16 %v202, %v199
    %v245 = vpack.c.b16 %v203, %v200
    %v246 = vpack.c.b16 %v204, %v201
    %v247 = vpack.c.b16 %v208, %v205
    %v248 = vpack.c.b16 %v209, %v206
    %v249 = vpack.c.b16 %v210, %v207
    %v250 = vpack.c.b16 %v214, %v211
    %v251 = vpack.c.b16 %v215, %v212
    %v252 = vpack.c.b16 %v216, %v213
    %v253 = vpack.c.b16 %v220, %v217
    %v254 = vpack.c.b16 %v221, %v218
    %v255 = vpack.c.b16 %v222, %v219
    %v256 = vpack.c.b16 %v226, %v223
    %v257 = vpack.c.b16 %v227, %v224
    %v258 = vpack.c.b16 %v228, %v225
    %v259 = vpack.c.b16 %v232, %v229
    %v260 = vpack.c.b16 %v233, %v230
    %v261 = vpack.c.b16 %v234, %v231
    %v262 = vpack.c.b16 %v238, %v235
    %v263 = vpack.c.b16 %v239, %v236
    %v264 = vpack.c.b16 %v240, %v237
    %289 = vmatprep.subr.bf16.mxu0 %v263
    %290 = vmatpush1.bf16.msra.mxu0 %v262
    %291 = vmatprep.subr.bf16.mxu0 %v260
    %292 = vmatpush1.bf16.msra.mxu0 %v259
    %293 = vmatprep.subr.bf16.mxu0 %v257
    %294 = vmatpush1.bf16.msra.mxu0 %v256
    %295 = vmatprep.subr.bf16.mxu0 %v254
    %296 = vmatpush1.bf16.msra.mxu0 %v253
    %297 = vmatprep.subr.bf16.mxu0 %v251
    %298 = vmatpush1.bf16.msra.mxu0 %v250
    %299 = vmatprep.subr.bf16.mxu0 %v248
    %300 = vmatpush1.bf16.msra.mxu0 %v247
    %301 = vmatprep.subr.bf16.mxu0 %v245
    %302 = vmatpush1.bf16.msra.mxu0 %v244
    %303 = vmatprep.subr.bf16.mxu0 %v242
    %304 = vmatpush1.bf16.msra.mxu0 %v241
    %305 = vmatprep.subr.bf16.mxu0 0
    %306 = vmatpush2.bf16.msra.mxu0 0
    %307 = vmatprep.subr.bf16.mxu0 0
    %308 = vmatpush2.bf16.msra.mxu0 0
    %309 = vmatprep.subr.bf16.mxu0 0
    %310 = vmatpush2.bf16.msra.mxu0 0
    %311 = vmatprep.subr.bf16.mxu0 0
    %312 = vmatpush2.bf16.msra.mxu0 0
    %313 = vmatprep.subr.bf16.mxu0 0
    %314 = vmatpush2.bf16.msra.mxu0 0
    %315 = vmatprep.subr.bf16.mxu0 0
    %316 = vmatpush2.bf16.msra.mxu0 0
    %317 = vmatprep.subr.bf16.mxu0 0
    %318 = vmatpush2.bf16.msra.mxu0 0
    %319 = vmatprep.subr.bf16.mxu0 0
    %320 = vmatpush2.bf16.msra.mxu0 0
    %321 = vmatprep.mubr.bf16.mxu0 0
    %322 = vmatmul.mubr.bf16.gmra.mxu0 %v128
    %v323 = vpop.f32.mrf.mxu0
    %v324 = vadd.f32 0.0, %v323
    %v325 = vpop.f32.mrf.mxu0
    %v326 = vadd.f32 0.0, %v325
    %v327 = vpop.f32.mrf.mxu0
    %v328 = vadd.f32 0.0, %v327
    %v329 = vpop.f32.mrf.mxu0
    %v330 = vadd.f32 0.0, %v329
    %331 = vdwg.mxu0
    %332 = vmatprep.subr.bf16.mxu0 0
    %333 = vmatpush1.bf16.msra.mxu0 %v264
    %334 = vmatprep.subr.bf16.mxu0 0
    %335 = vmatpush1.bf16.msra.mxu0 %v261
    %336 = vmatprep.subr.bf16.mxu0 0
    %337 = vmatpush1.bf16.msra.mxu0 %v258
    %338 = vmatprep.subr.bf16.mxu0 0
    %339 = vmatpush1.bf16.msra.mxu0 %v255
    %340 = vmatprep.subr.bf16.mxu0 0
    %341 = vmatpush1.bf16.msra.mxu0 %v252
    %342 = vmatprep.subr.bf16.mxu0 0
    %343 = vmatpush1.bf16.msra.mxu0 %v249
    %344 = vmatprep.subr.bf16.mxu0 0
    %345 = vmatpush1.bf16.msra.mxu0 %v246
    %346 = vmatprep.subr.bf16.mxu0 0
    %347 = vmatpush1.bf16.msra.mxu0 %v243
    %348 = vmatprep.subr.bf16.mxu0 0
    %349 = vmatpush2.bf16.msra.mxu0 0
    %350 = vmatprep.subr.bf16.mxu0 0
    %351 = vmatpush2.bf16.msra.mxu0 0
    %352 = vmatprep.subr.bf16.mxu0 0
    %353 = vmatpush2.bf16.msra.mxu0 0
    %354 = vmatprep.subr.bf16.mxu0 0
    %355 = vmatpush2.bf16.msra.mxu0 0
    %356 = vmatprep.subr.bf16.mxu0 0
    %357 = vmatpush2.bf16.msra.mxu0 0
    %358 = vmatprep.subr.bf16.mxu0 0
    %359 = vmatpush2.bf16.msra.mxu0 0
    %360 = vmatprep.subr.bf16.mxu0 0
    %361 = vmatpush2.bf16.msra.mxu0 0
    %362 = vmatprep.subr.bf16.mxu0 0
    %363 = vmatpush2.bf16.msra.mxu0 0
    %364 = vmatprep.mubr.bf16.mxu0 0
    %365 = vmatmul.mubr.bf16.gmra.mxu0 %v128
    %v366 = vpop.f32.mrf.mxu0
    %v367 = vadd.f32 0.0, %v366
    %v368 = vpop.f32.mrf.mxu0
    %v369 = vpop.f32.mrf.mxu0
    %v370 = vadd.f32 0.0, %v369
    %v371 = vpop.f32.mrf.mxu0
    %372 = vdwg.mxu0
    %v373 = vadd.f32 %v122, %v324
    %v374 = vadd.f32 %v125, %v328
    %v375 = vxor.u32 %v373, 2147483648
    %v376 = vxor.u32 %v374, 2147483648
    %v377 = vmul.f32 %v375, 1.442695
    %v378 = vpow.pop %v377
    %v379 = vmul.f32 %v376, 1.442695
    %v380 = vpow.pop %v379
    %v381 = vadd.f32 %v378, 1.0
    %v382 = vadd.f32 %v380, 1.0
    %v383 = vrcp.pop %v381
    %v384 = vmul.f32 1.0, %v383
    %v385 = vrcp.pop %v382
    %v386 = vmul.f32 1.0, %v385
    %v387 = vadd.f32 %v123, %v326
    %v388 = vadd.f32 %v126, %v330
    %v389 = vxor.u32 %v387, 2147483648
    %v390 = vxor.u32 %v388, 2147483648
    %v391 = vmul.f32 %v389, 1.442695
    %v392 = vpow.pop %v391
    %v393 = vmul.f32 %v390, 1.442695
    %v394 = vpow.pop %v393
    %v395 = vadd.f32 %v392, 1.0
    %v396 = vadd.f32 %v394, 1.0
    %v397 = vrcp.pop %v395
    %v398 = vmul.f32 1.0, %v397
    %v399 = vrcp.pop %v396
    %v400 = vmul.f32 1.0, %v399
    %v401 = vadd.f32 %v367, %v105
    %v402 = vadd.f32 %v370, %v105
    %v403 = vmul.f32 %v384, %v401
    %v404 = vmul.f32 %v386, %v402
    %v405 = vadd.f32 %v124, %v403
    %v406 = vadd.f32 %v127, %v404
    %v407 = vtanh.pop %v405
    %v408 = vtanh.pop %v406
    %v409 = vsub.f32 1.0, %v398
    %v410 = vsub.f32 1.0, %v400
    %v411 = vmul.f32 %v409, %v407
    %v412 = vmul.f32 %v410, %v408
    %v413 = vmul.f32 %v398, %v114
    %v414 = vmul.f32 %v400, %v115
    %v415 = vadd.f32 %v411, %v413
    %v416 = vadd.f32 %v412, %v414
    %v417 = vpack.c.bf16 %v416, %v415
    %v419 = vunpack.c.l.b16 %v417
    %v420 = vunpack.c.h.b16 %v417
    %v421 = vpack.c.b16 %v419, %v419
    %v422 = vpack.c.b16 %v420, %v420
    %425 = vst [vmem:[#allocation12] sm:$0xf] %v421
    %426 = vst [vmem:[#allocation12 + $0x4] sm:$0xf] %v422
    %s427 = scalar_lea.vmem [#allocation7], 168
    %v428 = vld [vmem:[%s427] sm:$0xff]
    %v429 = vld [vmem:[%s427 + $0x8] sm:$0xf]
    %v430 = vld [vmem:[%s427 + $0xc] sm:$0xff]
    %v431 = vld [vmem:[%s427 + $0x14] sm:$0xf]
    %v432 = vunpack.c.l.bf16 %v428
    %v433 = vunpack.c.h.bf16 %v428
    %v434 = vunpack.c.l.bf16 %v429
    %v435 = vunpack.c.l.bf16 %v430
    %v436 = vunpack.c.h.bf16 %v430
    %v437 = vunpack.c.l.bf16 %v431
    %v438 = vpack.c.bf16 %v117, %v116
    %v439 = vld [vmem:[#allocation10] sm:$0xff]
    %v440 = vld [vmem:[#allocation10 + $0x8] sm:$0xf]
    %v441 = vld [vmem:[#allocation10 + $0xc] sm:$0xff]
    %v442 = vld [vmem:[#allocation10 + $0x14] sm:$0xf]
    %v443 = vld [vmem:[#allocation10 + $0x18] sm:$0xff]
    %v444 = vld [vmem:[#allocation10 + $0x20] sm:$0xf]
    %v445 = vld [vmem:[#allocation10 + $0x24] sm:$0xff]
    %v446 = vld [vmem:[#allocation10 + $0x2c] sm:$0xf]
    %v447 = vld [vmem:[#allocation10 + $0x30] sm:$0xff]
    %v448 = vld [vmem:[#allocation10 + $0x38] sm:$0xf]
    %v449 = vld [vmem:[#allocation10 + $0x3c] sm:$0xff]
    %v450 = vld [vmem:[#allocation10 + $0x44] sm:$0xf]
    %v451 = vld [vmem:[#allocation10 + $0x48] sm:$0xff]
    %v452 = vld [vmem:[#allocation10 + $0x50] sm:$0xf]
    %v453 = vld [vmem:[#allocation10 + $0x54] sm:$0xff]
    %v454 = vld [vmem:[#allocation10 + $0x5c] sm:$0xf]
    %v455 = vld [vmem:[#allocation10 + $0x60] sm:$0xff]
    %v456 = vld [vmem:[#allocation10 + $0x68] sm:$0xf]
    %v457 = vld [vmem:[#allocation10 + $0x6c] sm:$0xff]
    %v458 = vld [vmem:[#allocation10 + $0x74] sm:$0xf]
    %v459 = vld [vmem:[#allocation10 + $0x78] sm:$0xff]
    %v460 = vld [vmem:[#allocation10 + $0x80] sm:$0xf]
    %v461 = vld [vmem:[#allocation10 + $0x84] sm:$0xff]
    %v462 = vld [vmem:[#allocation10 + $0x8c] sm:$0xf]
    %v463 = vld [vmem:[#allocation10 + $0x90] sm:$0xff]
    %v464 = vld [vmem:[#allocation10 + $0x98] sm:$0xf]
    %v465 = vld [vmem:[#allocation10 + $0x9c] sm:$0xff]
    %v466 = vld [vmem:[#allocation10 + $0xa4] sm:$0xf]
    %v467 = vld [vmem:[#allocation10 + $0xa8] sm:$0xff]
    %v468 = vld [vmem:[#allocation10 + $0xb0] sm:$0xf]
    %v469 = vld [vmem:[#allocation10 + $0xb4] sm:$0xff]
    %v470 = vld [vmem:[#allocation10 + $0xbc] sm:$0xf]
    %v503 = vunpack.c.l.b16 %v439
    %v504 = vunpack.c.h.b16 %v439
    %v505 = vunpack.c.l.b16 %v440
    %v506 = vunpack.c.l.b16 %v441
    %v507 = vunpack.c.h.b16 %v441
    %v508 = vunpack.c.l.b16 %v442
    %v509 = vunpack.c.l.b16 %v443
    %v510 = vunpack.c.h.b16 %v443
    %v511 = vunpack.c.l.b16 %v444
    %v512 = vunpack.c.l.b16 %v445
    %v513 = vunpack.c.h.b16 %v445
    %v514 = vunpack.c.l.b16 %v446
    %v515 = vunpack.c.l.b16 %v447
    %v516 = vunpack.c.h.b16 %v447
    %v517 = vunpack.c.l.b16 %v448
    %v518 = vunpack.c.l.b16 %v449
    %v519 = vunpack.c.h.b16 %v449
    %v520 = vunpack.c.l.b16 %v450
    %v521 = vunpack.c.l.b16 %v451
    %v522 = vunpack.c.h.b16 %v451
    %v523 = vunpack.c.l.b16 %v452
    %v524 = vunpack.c.l.b16 %v453
    %v525 = vunpack.c.h.b16 %v453
    %v526 = vunpack.c.l.b16 %v454
    %v527 = vunpack.c.l.b16 %v455
    %v528 = vunpack.c.h.b16 %v455
    %v529 = vunpack.c.l.b16 %v456
    %v530 = vunpack.c.l.b16 %v457
    %v531 = vunpack.c.h.b16 %v457
    %v532 = vunpack.c.l.b16 %v458
    %v533 = vunpack.c.l.b16 %v459
    %v534 = vunpack.c.h.b16 %v459
    %v535 = vunpack.c.l.b16 %v460
    %v536 = vunpack.c.l.b16 %v461
    %v537 = vunpack.c.h.b16 %v461
    %v538 = vunpack.c.l.b16 %v462
    %v539 = vunpack.c.l.b16 %v463
    %v540 = vunpack.c.h.b16 %v463
    %v541 = vunpack.c.l.b16 %v464
    %v542 = vunpack.c.l.b16 %v465
    %v543 = vunpack.c.h.b16 %v465
    %v544 = vunpack.c.l.b16 %v466
    %v545 = vunpack.c.l.b16 %v467
    %v546 = vunpack.c.h.b16 %v467
    %v547 = vunpack.c.l.b16 %v468
    %v548 = vunpack.c.l.b16 %v469
    %v549 = vunpack.c.h.b16 %v469
    %v550 = vunpack.c.l.b16 %v470
    %v551 = vpack.c.b16 %v506, %v503
    %v552 = vpack.c.b16 %v507, %v504
    %v553 = vpack.c.b16 %v508, %v505
    %v554 = vpack.c.b16 %v512, %v509
    %v555 = vpack.c.b16 %v513, %v510
    %v556 = vpack.c.b16 %v514, %v511
    %v557 = vpack.c.b16 %v518, %v515
    %v558 = vpack.c.b16 %v519, %v516
    %v559 = vpack.c.b16 %v520, %v517
    %v560 = vpack.c.b16 %v524, %v521
    %v561 = vpack.c.b16 %v525, %v522
    %v562 = vpack.c.b16 %v526, %v523
    %v563 = vpack.c.b16 %v530, %v527
    %v564 = vpack.c.b16 %v531, %v528
    %v565 = vpack.c.b16 %v532, %v529
    %v566 = vpack.c.b16 %v536, %v533
    %v567 = vpack.c.b16 %v537, %v534
    %v568 = vpack.c.b16 %v538, %v535
    %v569 = vpack.c.b16 %v542, %v539
    %v570 = vpack.c.b16 %v543, %v540
    %v571 = vpack.c.b16 %v544, %v541
    %v572 = vpack.c.b16 %v548, %v545
    %v573 = vpack.c.b16 %v549, %v546
    %v574 = vpack.c.b16 %v550, %v547
    %599 = vmatprep.subr.bf16.mxu0 %v573
    %600 = vmatpush1.bf16.msra.mxu0 %v572
    %601 = vmatprep.subr.bf16.mxu0 %v570
    %602 = vmatpush1.bf16.msra.mxu0 %v569
    %603 = vmatprep.subr.bf16.mxu0 %v567
    %604 = vmatpush1.bf16.msra.mxu0 %v566
    %605 = vmatprep.subr.bf16.mxu0 %v564
    %606 = vmatpush1.bf16.msra.mxu0 %v563
    %607 = vmatprep.subr.bf16.mxu0 %v561
    %608 = vmatpush1.bf16.msra.mxu0 %v560
    %609 = vmatprep.subr.bf16.mxu0 %v558
    %610 = vmatpush1.bf16.msra.mxu0 %v557
    %611 = vmatprep.subr.bf16.mxu0 %v555
    %612 = vmatpush1.bf16.msra.mxu0 %v554
    %613 = vmatprep.subr.bf16.mxu0 %v552
    %614 = vmatpush1.bf16.msra.mxu0 %v551
    %615 = vmatprep.subr.bf16.mxu0 0
    %616 = vmatpush2.bf16.msra.mxu0 0
    %617 = vmatprep.subr.bf16.mxu0 0
    %618 = vmatpush2.bf16.msra.mxu0 0
    %619 = vmatprep.subr.bf16.mxu0 0
    %620 = vmatpush2.bf16.msra.mxu0 0
    %621 = vmatprep.subr.bf16.mxu0 0
    %622 = vmatpush2.bf16.msra.mxu0 0
    %623 = vmatprep.subr.bf16.mxu0 0
    %624 = vmatpush2.bf16.msra.mxu0 0
    %625 = vmatprep.subr.bf16.mxu0 0
    %626 = vmatpush2.bf16.msra.mxu0 0
    %627 = vmatprep.subr.bf16.mxu0 0
    %628 = vmatpush2.bf16.msra.mxu0 0
    %629 = vmatprep.subr.bf16.mxu0 0
    %630 = vmatpush2.bf16.msra.mxu0 0
    %631 = vmatprep.mubr.bf16.mxu0 0
    %632 = vmatmul.mubr.bf16.gmra.mxu0 %v438
    %v633 = vpop.f32.mrf.mxu0
    %v634 = vadd.f32 0.0, %v633
    %v635 = vpop.f32.mrf.mxu0
    %v636 = vadd.f32 0.0, %v635
    %v637 = vpop.f32.mrf.mxu0
    %v638 = vadd.f32 0.0, %v637
    %v639 = vpop.f32.mrf.mxu0
    %v640 = vadd.f32 0.0, %v639
    %641 = vdwg.mxu0
    %642 = vmatprep.subr.bf16.mxu0 0
    %643 = vmatpush1.bf16.msra.mxu0 %v574
    %644 = vmatprep.subr.bf16.mxu0 0
    %645 = vmatpush1.bf16.msra.mxu0 %v571
    %646 = vmatprep.subr.bf16.mxu0 0
    %647 = vmatpush1.bf16.msra.mxu0 %v568
    %648 = vmatprep.subr.bf16.mxu0 0
    %649 = vmatpush1.bf16.msra.mxu0 %v565
    %650 = vmatprep.subr.bf16.mxu0 0
    %651 = vmatpush1.bf16.msra.mxu0 %v562
    %652 = vmatprep.subr.bf16.mxu0 0
    %653 = vmatpush1.bf16.msra.mxu0 %v559
    %654 = vmatprep.subr.bf16.mxu0 0
    %655 = vmatpush1.bf16.msra.mxu0 %v556
    %656 = vmatprep.subr.bf16.mxu0 0
    %657 = vmatpush1.bf16.msra.mxu0 %v553
    %658 = vmatprep.subr.bf16.mxu0 0
    %659 = vmatpush2.bf16.msra.mxu0 0
    %660 = vmatprep.subr.bf16.mxu0 0
    %661 = vmatpush2.bf16.msra.mxu0 0
    %662 = vmatprep.subr.bf16.mxu0 0
    %663 = vmatpush2.bf16.msra.mxu0 0
    %664 = vmatprep.subr.bf16.mxu0 0
    %665 = vmatpush2.bf16.msra.mxu0 0
    %666 = vmatprep.subr.bf16.mxu0 0
    %667 = vmatpush2.bf16.msra.mxu0 0
    %668 = vmatprep.subr.bf16.mxu0 0
    %669 = vmatpush2.bf16.msra.mxu0 0
    %670 = vmatprep.subr.bf16.mxu0 0
    %671 = vmatpush2.bf16.msra.mxu0 0
    %672 = vmatprep.subr.bf16.mxu0 0
    %673 = vmatpush2.bf16.msra.mxu0 0
    %674 = vmatprep.mubr.bf16.mxu0 0
    %675 = vmatmul.mubr.bf16.gmra.mxu0 %v438
    %v676 = vpop.f32.mrf.mxu0
    %v677 = vadd.f32 0.0, %v676
    %v678 = vpop.f32.mrf.mxu0
    %v679 = vpop.f32.mrf.mxu0
    %v680 = vadd.f32 0.0, %v679
    %v681 = vpop.f32.mrf.mxu0
    %682 = vdwg.mxu0
    %v683 = vadd.f32 %v432, %v634
    %v684 = vadd.f32 %v435, %v638
    %v685 = vxor.u32 %v683, 2147483648
    %v686 = vxor.u32 %v684, 2147483648
    %v687 = vmul.f32 %v685, 1.442695
    %v688 = vpow.pop %v687
    %v689 = vmul.f32 %v686, 1.442695
    %v690 = vpow.pop %v689
    %v691 = vadd.f32 %v688, 1.0
    %v692 = vadd.f32 %v690, 1.0
    %v693 = vrcp.pop %v691
    %v694 = vmul.f32 1.0, %v693
    %v695 = vrcp.pop %v692
    %v696 = vmul.f32 1.0, %v695
    %v697 = vadd.f32 %v433, %v636
    %v698 = vadd.f32 %v436, %v640
    %v699 = vxor.u32 %v697, 2147483648
    %v700 = vxor.u32 %v698, 2147483648
    %v701 = vmul.f32 %v699, 1.442695
    %v702 = vpow.pop %v701
    %v703 = vmul.f32 %v700, 1.442695
    %v704 = vpow.pop %v703
    %v705 = vadd.f32 %v702, 1.0
    %v706 = vadd.f32 %v704, 1.0
    %v707 = vrcp.pop %v705
    %v708 = vmul.f32 1.0, %v707
    %v709 = vrcp.pop %v706
    %v710 = vmul.f32 1.0, %v709
    %v711 = vadd.f32 %v677, %v112
    %v712 = vadd.f32 %v680, %v112
    %v713 = vmul.f32 %v694, %v711
    %v714 = vmul.f32 %v696, %v712
    %v715 = vadd.f32 %v434, %v713
    %v716 = vadd.f32 %v437, %v714
    %v717 = vtanh.pop %v715
    %v718 = vtanh.pop %v716
    %v719 = vsub.f32 1.0, %v708
    %v720 = vsub.f32 1.0, %v710
    %v721 = vmul.f32 %v719, %v717
    %v722 = vmul.f32 %v720, %v718
    %v723 = vmul.f32 %v708, %v116
    %v724 = vmul.f32 %v710, %v117
    %v725 = vadd.f32 %v721, %v723
    %v726 = vadd.f32 %v722, %v724
    %v727 = vpack.c.bf16 %v726, %v725
    %v729 = vunpack.c.l.b16 %v727
    %v730 = vunpack.c.h.b16 %v727
    %v731 = vpack.c.b16 %v729, %v729
    %v732 = vpack.c.b16 %v730, %v730
    %s735 = scalar_lea.vmem [#allocation13], 56
    %736 = vst [vmem:[%s735] sm:$0xf] %v731
    %737 = vst [vmem:[%s735 + $0x4] sm:$0xf] %v732
    %s738 = scalar_lea.vmem [#allocation4], 24
    %v739 = vld [vmem:[%s738] sm:$0xff]
    %v740 = vld [vmem:[%s738 + $0x8] sm:$0xf]
    %v741 = vld [vmem:[%s738 + $0xc] sm:$0xff]
    %v742 = vld [vmem:[%s738 + $0x14] sm:$0xf]
    %v743 = vunpack.c.l.bf16 %v739
    %v744 = vunpack.c.h.bf16 %v739
    %v745 = vunpack.c.l.bf16 %v740
    %v746 = vunpack.c.l.bf16 %v741
    %v747 = vunpack.c.h.bf16 %v741
    %v748 = vunpack.c.l.bf16 %v742
    %v749 = vld [vmem:[#allocation9] sm:$0xff]
    %v750 = vld [vmem:[#allocation9 + $0x8] sm:$0xf]
    %v751 = vld [vmem:[#allocation9 + $0xc] sm:$0xff]
    %v752 = vld [vmem:[#allocation9 + $0x14] sm:$0xf]
    %v753 = vld [vmem:[#allocation9 + $0x18] sm:$0xff]
    %v754 = vld [vmem:[#allocation9 + $0x20] sm:$0xf]
    %v755 = vld [vmem:[#allocation9 + $0x24] sm:$0xff]
    %v756 = vld [vmem:[#allocation9 + $0x2c] sm:$0xf]
    %v757 = vld [vmem:[#allocation9 + $0x30] sm:$0xff]
    %v758 = vld [vmem:[#allocation9 + $0x38] sm:$0xf]
    %v759 = vld [vmem:[#allocation9 + $0x3c] sm:$0xff]
    %v760 = vld [vmem:[#allocation9 + $0x44] sm:$0xf]
    %v761 = vld [vmem:[#allocation9 + $0x48] sm:$0xff]
    %v762 = vld [vmem:[#allocation9 + $0x50] sm:$0xf]
    %v763 = vld [vmem:[#allocation9 + $0x54] sm:$0xff]
    %v764 = vld [vmem:[#allocation9 + $0x5c] sm:$0xf]
    %v765 = vld [vmem:[#allocation9 + $0x60] sm:$0xff]
    %v766 = vld [vmem:[#allocation9 + $0x68] sm:$0xf]
    %v767 = vld [vmem:[#allocation9 + $0x6c] sm:$0xff]
    %v768 = vld [vmem:[#allocation9 + $0x74] sm:$0xf]
    %v769 = vld [vmem:[#allocation9 + $0x78] sm:$0xff]
    %v770 = vld [vmem:[#allocation9 + $0x80] sm:$0xf]
    %v771 = vld [vmem:[#allocation9 + $0x84] sm:$0xff]
    %v772 = vld [vmem:[#allocation9 + $0x8c] sm:$0xf]
    %v773 = vld [vmem:[#allocation9 + $0x90] sm:$0xff]
    %v774 = vld [vmem:[#allocation9 + $0x98] sm:$0xf]
    %v775 = vld [vmem:[#allocation9 + $0x9c] sm:$0xff]
    %v776 = vld [vmem:[#allocation9 + $0xa4] sm:$0xf]
    %v777 = vld [vmem:[#allocation9 + $0xa8] sm:$0xff]
    %v778 = vld [vmem:[#allocation9 + $0xb0] sm:$0xf]
    %v779 = vld [vmem:[#allocation9 + $0xb4] sm:$0xff]
    %v780 = vld [vmem:[#allocation9 + $0xbc] sm:$0xf]
    %v813 = vunpack.c.l.b16 %v749
    %v814 = vunpack.c.h.b16 %v749
    %v815 = vunpack.c.l.b16 %v750
    %v816 = vunpack.c.l.b16 %v751
    %v817 = vunpack.c.h.b16 %v751
    %v818 = vunpack.c.l.b16 %v752
    %v819 = vunpack.c.l.b16 %v753
    %v820 = vunpack.c.h.b16 %v753
    %v821 = vunpack.c.l.b16 %v754
    %v822 = vunpack.c.l.b16 %v755
    %v823 = vunpack.c.h.b16 %v755
    %v824 = vunpack.c.l.b16 %v756
    %v825 = vunpack.c.l.b16 %v757
    %v826 = vunpack.c.h.b16 %v757
    %v827 = vunpack.c.l.b16 %v758
    %v828 = vunpack.c.l.b16 %v759
    %v829 = vunpack.c.h.b16 %v759
    %v830 = vunpack.c.l.b16 %v760
    %v831 = vunpack.c.l.b16 %v761
    %v832 = vunpack.c.h.b16 %v761
    %v833 = vunpack.c.l.b16 %v762
    %v834 = vunpack.c.l.b16 %v763
    %v835 = vunpack.c.h.b16 %v763
    %v836 = vunpack.c.l.b16 %v764
    %v837 = vunpack.c.l.b16 %v765
    %v838 = vunpack.c.h.b16 %v765
    %v839 = vunpack.c.l.b16 %v766
    %v840 = vunpack.c.l.b16 %v767
    %v841 = vunpack.c.h.b16 %v767
    %v842 = vunpack.c.l.b16 %v768
    %v843 = vunpack.c.l.b16 %v769
    %v844 = vunpack.c.h.b16 %v769
    %v845 = vunpack.c.l.b16 %v770
    %v846 = vunpack.c.l.b16 %v771
    %v847 = vunpack.c.h.b16 %v771
    %v848 = vunpack.c.l.b16 %v772
    %v849 = vunpack.c.l.b16 %v773
    %v850 = vunpack.c.h.b16 %v773
    %v851 = vunpack.c.l.b16 %v774
    %v852 = vunpack.c.l.b16 %v775
    %v853 = vunpack.c.h.b16 %v775
    %v854 = vunpack.c.l.b16 %v776
    %v855 = vunpack.c.l.b16 %v777
    %v856 = vunpack.c.h.b16 %v777
    %v857 = vunpack.c.l.b16 %v778
    %v858 = vunpack.c.l.b16 %v779
    %v859 = vunpack.c.h.b16 %v779
    %v860 = vunpack.c.l.b16 %v780
    %v861 = vpack.c.b16 %v816, %v813
    %v862 = vpack.c.b16 %v817, %v814
    %v863 = vpack.c.b16 %v818, %v815
    %v864 = vpack.c.b16 %v822, %v819
    %v865 = vpack.c.b16 %v823, %v820
    %v866 = vpack.c.b16 %v824, %v821
    %v867 = vpack.c.b16 %v828, %v825
    %v868 = vpack.c.b16 %v829, %v826
    %v869 = vpack.c.b16 %v830, %v827
    %v870 = vpack.c.b16 %v834, %v831
    %v871 = vpack.c.b16 %v835, %v832
    %v872 = vpack.c.b16 %v836, %v833
    %v873 = vpack.c.b16 %v840, %v837
    %v874 = vpack.c.b16 %v841, %v838
    %v875 = vpack.c.b16 %v842, %v839
    %v876 = vpack.c.b16 %v846, %v843
    %v877 = vpack.c.b16 %v847, %v844
    %v878 = vpack.c.b16 %v848, %v845
    %v879 = vpack.c.b16 %v852, %v849
    %v880 = vpack.c.b16 %v853, %v850
    %v881 = vpack.c.b16 %v854, %v851
    %v882 = vpack.c.b16 %v858, %v855
    %v883 = vpack.c.b16 %v859, %v856
    %v884 = vpack.c.b16 %v860, %v857
    %909 = vmatprep.subr.bf16.mxu0 %v883
    %910 = vmatpush1.bf16.msra.mxu0 %v882
    %911 = vmatprep.subr.bf16.mxu0 %v880
    %912 = vmatpush1.bf16.msra.mxu0 %v879
    %913 = vmatprep.subr.bf16.mxu0 %v877
    %914 = vmatpush1.bf16.msra.mxu0 %v876
    %915 = vmatprep.subr.bf16.mxu0 %v874
    %916 = vmatpush1.bf16.msra.mxu0 %v873
    %917 = vmatprep.subr.bf16.mxu0 %v871
    %918 = vmatpush1.bf16.msra.mxu0 %v870
    %919 = vmatprep.subr.bf16.mxu0 %v868
    %920 = vmatpush1.bf16.msra.mxu0 %v867
    %921 = vmatprep.subr.bf16.mxu0 %v865
    %922 = vmatpush1.bf16.msra.mxu0 %v864
    %923 = vmatprep.subr.bf16.mxu0 %v862
    %924 = vmatpush1.bf16.msra.mxu0 %v861
    %925 = vmatprep.subr.bf16.mxu0 0
    %926 = vmatpush2.bf16.msra.mxu0 0
    %927 = vmatprep.subr.bf16.mxu0 0
    %928 = vmatpush2.bf16.msra.mxu0 0
    %929 = vmatprep.subr.bf16.mxu0 0
    %930 = vmatpush2.bf16.msra.mxu0 0
    %931 = vmatprep.subr.bf16.mxu0 0
    %932 = vmatpush2.bf16.msra.mxu0 0
    %933 = vmatprep.subr.bf16.mxu0 0
    %934 = vmatpush2.bf16.msra.mxu0 0
    %935 = vmatprep.subr.bf16.mxu0 0
    %936 = vmatpush2.bf16.msra.mxu0 0
    %937 = vmatprep.subr.bf16.mxu0 0
    %938 = vmatpush2.bf16.msra.mxu0 0
    %939 = vmatprep.subr.bf16.mxu0 0
    %940 = vmatpush2.bf16.msra.mxu0 0
    %941 = vmatprep.mubr.bf16.mxu0 0
    %942 = vmatmul.mubr.bf16.gmra.mxu0 %v417
    %v943 = vpop.f32.mrf.mxu0
    %v944 = vadd.f32 0.0, %v943
    %v945 = vpop.f32.mrf.mxu0
    %v946 = vadd.f32 0.0, %v945
    %v947 = vpop.f32.mrf.mxu0
    %v948 = vadd.f32 0.0, %v947
    %v949 = vpop.f32.mrf.mxu0
    %v950 = vadd.f32 0.0, %v949
    %951 = vdwg.mxu0
    %952 = vmatprep.subr.bf16.mxu0 0
    %953 = vmatpush1.bf16.msra.mxu0 %v884
    %954 = vmatprep.subr.bf16.mxu0 0
    %955 = vmatpush1.bf16.msra.mxu0 %v881
    %956 = vmatprep.subr.bf16.mxu0 0
    %957 = vmatpush1.bf16.msra.mxu0 %v878
    %958 = vmatprep.subr.bf16.mxu0 0
    %959 = vmatpush1.bf16.msra.mxu0 %v875
    %960 = vmatprep.subr.bf16.mxu0 0
    %961 = vmatpush1.bf16.msra.mxu0 %v872
    %962 = vmatprep.subr.bf16.mxu0 0
    %963 = vmatpush1.bf16.msra.mxu0 %v869
    %964 = vmatprep.subr.bf16.mxu0 0
    %965 = vmatpush1.bf16.msra.mxu0 %v866
    %966 = vmatprep.subr.bf16.mxu0 0
    %967 = vmatpush1.bf16.msra.mxu0 %v863
    %968 = vmatprep.subr.bf16.mxu0 0
    %969 = vmatpush2.bf16.msra.mxu0 0
    %970 = vmatprep.subr.bf16.mxu0 0
    %971 = vmatpush2.bf16.msra.mxu0 0
    %972 = vmatprep.subr.bf16.mxu0 0
    %973 = vmatpush2.bf16.msra.mxu0 0
    %974 = vmatprep.subr.bf16.mxu0 0
    %975 = vmatpush2.bf16.msra.mxu0 0
    %976 = vmatprep.subr.bf16.mxu0 0
    %977 = vmatpush2.bf16.msra.mxu0 0
    %978 = vmatprep.subr.bf16.mxu0 0
    %979 = vmatpush2.bf16.msra.mxu0 0
    %980 = vmatprep.subr.bf16.mxu0 0
    %981 = vmatpush2.bf16.msra.mxu0 0
    %982 = vmatprep.subr.bf16.mxu0 0
    %983 = vmatpush2.bf16.msra.mxu0 0
    %984 = vmatprep.mubr.bf16.mxu0 0
    %985 = vmatmul.mubr.bf16.gmra.mxu0 %v417
    %v986 = vpop.f32.mrf.mxu0
    %v987 = vadd.f32 0.0, %v986
    %v988 = vpop.f32.mrf.mxu0
    %v989 = vpop.f32.mrf.mxu0
    %v990 = vadd.f32 0.0, %v989
    %v991 = vpop.f32.mrf.mxu0
    %992 = vdwg.mxu0
    %v993 = vadd.f32 %v743, %v944
    %v994 = vadd.f32 %v746, %v948
    %v995 = vxor.u32 %v993, 2147483648
    %v996 = vxor.u32 %v994, 2147483648
    %v997 = vmul.f32 %v995, 1.442695
    %v998 = vpow.pop %v997
    %v999 = vmul.f32 %v996, 1.442695
    %v1000 = vpow.pop %v999
    %v1001 = vadd.f32 %v998, 1.0
    %v1002 = vadd.f32 %v1000, 1.0
    %v1003 = vrcp.pop %v1001
    %v1004 = vmul.f32 1.0, %v1003
    %v1005 = vrcp.pop %v1002
    %v1006 = vmul.f32 1.0, %v1005
    %v1007 = vadd.f32 %v744, %v946
    %v1008 = vadd.f32 %v747, %v950
    %v1009 = vxor.u32 %v1007, 2147483648
    %v1010 = vxor.u32 %v1008, 2147483648
    %v1011 = vmul.f32 %v1009, 1.442695
    %v1012 = vpow.pop %v1011
    %v1013 = vmul.f32 %v1010, 1.442695
    %v1014 = vpow.pop %v1013
    %v1015 = vadd.f32 %v1012, 1.0
    %v1016 = vadd.f32 %v1014, 1.0
    %v1017 = vrcp.pop %v1015
    %v1018 = vmul.f32 1.0, %v1017
    %v1019 = vrcp.pop %v1016
    %v1020 = vmul.f32 1.0, %v1019
    %v1021 = vadd.f32 %v987, %v105
    %v1022 = vadd.f32 %v990, %v105
    %v1023 = vmul.f32 %v1004, %v1021
    %v1024 = vmul.f32 %v1006, %v1022
    %v1025 = vadd.f32 %v745, %v1023
    %v1026 = vadd.f32 %v748, %v1024
    %v1027 = vtanh.pop %v1025
    %v1028 = vtanh.pop %v1026
    %v1029 = vsub.f32 1.0, %v1018
    %v1030 = vsub.f32 1.0, %v1020
    %v1031 = vmul.f32 %v1029, %v1027
    %v1032 = vmul.f32 %v1030, %v1028
    %v1033 = vmul.f32 %v1018, %v415
    %v1034 = vmul.f32 %v1020, %v416
    %v1035 = vadd.f32 %v1031, %v1033
    %v1036 = vadd.f32 %v1032, %v1034
    %v1037 = vpack.c.bf16 %v1036, %v1035
    %v1039 = vunpack.c.l.b16 %v1037
    %v1040 = vunpack.c.h.b16 %v1037
    %v1041 = vpack.c.b16 %v1039, %v1039
    %v1042 = vpack.c.b16 %v1040, %v1040
    %s1045 = scalar_lea.vmem [#allocation12], 8
    %1046 = vst [vmem:[%s1045] sm:$0xf] %v1041
    %1047 = vst [vmem:[%s1045 + $0x4] sm:$0xf] %v1042
    %s1048 = scalar_lea.vmem [#allocation7], 144
    %v1049 = vld [vmem:[%s1048] sm:$0xff]
    %v1050 = vld [vmem:[%s1048 + $0x8] sm:$0xf]
    %v1051 = vld [vmem:[%s1048 + $0xc] sm:$0xff]
    %v1052 = vld [vmem:[%s1048 + $0x14] sm:$0xf]
    %v1053 = vunpack.c.l.bf16 %v1049
    %v1054 = vunpack.c.h.bf16 %v1049
    %v1055 = vunpack.c.l.bf16 %v1050
    %v1056 = vunpack.c.l.bf16 %v1051
    %v1057 = vunpack.c.h.bf16 %v1051
    %v1058 = vunpack.c.l.bf16 %v1052
    %v1059 = vld [vmem:[#allocation10] sm:$0xff]
    %v1060 = vld [vmem:[#allocation10 + $0x8] sm:$0xf]
    %v1061 = vld [vmem:[#allocation10 + $0xc] sm:$0xff]
    %v1062 = vld [vmem:[#allocation10 + $0x14] sm:$0xf]
    %v1063 = vld [vmem:[#allocation10 + $0x18] sm:$0xff]
    %v1064 = vld [vmem:[#allocation10 + $0x20] sm:$0xf]
    %v1065 = vld [vmem:[#allocation10 + $0x24] sm:$0xff]
    %v1066 = vld [vmem:[#allocation10 + $0x2c] sm:$0xf]
    %v1067 = vld [vmem:[#allocation10 + $0x30] sm:$0xff]
    %v1068 = vld [vmem:[#allocation10 + $0x38] sm:$0xf]
    %v1069 = vld [vmem:[#allocation10 + $0x3c] sm:$0xff]
    %v1070 = vld [vmem:[#allocation10 + $0x44] sm:$0xf]
    %v1071 = vld [vmem:[#allocation10 + $0x48] sm:$0xff]
    %v1072 = vld [vmem:[#allocation10 + $0x50] sm:$0xf]
    %v1073 = vld [vmem:[#allocation10 + $0x54] sm:$0xff]
    %v1074 = vld [vmem:[#allocation10 + $0x5c] sm:$0xf]
    %v1075 = vld [vmem:[#allocation10 + $0x60] sm:$0xff]
    %v1076 = vld [vmem:[#allocation10 + $0x68] sm:$0xf]
    %v1077 = vld [vmem:[#allocation10 + $0x6c] sm:$0xff]
    %v1078 = vld [vmem:[#allocation10 + $0x74] sm:$0xf]
    %v1079 = vld [vmem:[#allocation10 + $0x78] sm:$0xff]
    %v1080 = vld [vmem:[#allocation10 + $0x80] sm:$0xf]
    %v1081 = vld [vmem:[#allocation10 + $0x84] sm:$0xff]
    %v1082 = vld [vmem:[#allocation10 + $0x8c] sm:$0xf]
    %v1083 = vld [vmem:[#allocation10 + $0x90] sm:$0xff]
    %v1084 = vld [vmem:[#allocation10 + $0x98] sm:$0xf]
    %v1085 = vld [vmem:[#allocation10 + $0x9c] sm:$0xff]
    %v1086 = vld [vmem:[#allocation10 + $0xa4] sm:$0xf]
    %v1087 = vld [vmem:[#allocation10 + $0xa8] sm:$0xff]
    %v1088 = vld [vmem:[#allocation10 + $0xb0] sm:$0xf]
    %v1089 = vld [vmem:[#allocation10 + $0xb4] sm:$0xff]
    %v1090 = vld [vmem:[#allocation10 + $0xbc] sm:$0xf]
    %v1123 = vunpack.c.l.b16 %v1059
    %v1124 = vunpack.c.h.b16 %v1059
    %v1125 = vunpack.c.l.b16 %v1060
    %v1126 = vunpack.c.l.b16 %v1061
    %v1127 = vunpack.c.h.b16 %v1061
    %v1128 = vunpack.c.l.b16 %v1062
    %v1129 = vunpack.c.l.b16 %v1063
    %v1130 = vunpack.c.h.b16 %v1063
    %v1131 = vunpack.c.l.b16 %v1064
    %v1132 = vunpack.c.l.b16 %v1065
    %v1133 = vunpack.c.h.b16 %v1065
    %v1134 = vunpack.c.l.b16 %v1066
    %v1135 = vunpack.c.l.b16 %v1067
    %v1136 = vunpack.c.h.b16 %v1067
    %v1137 = vunpack.c.l.b16 %v1068
    %v1138 = vunpack.c.l.b16 %v1069
    %v1139 = vunpack.c.h.b16 %v1069
    %v1140 = vunpack.c.l.b16 %v1070
    %v1141 = vunpack.c.l.b16 %v1071
    %v1142 = vunpack.c.h.b16 %v1071
    %v1143 = vunpack.c.l.b16 %v1072
    %v1144 = vunpack.c.l.b16 %v1073
    %v1145 = vunpack.c.h.b16 %v1073
    %v1146 = vunpack.c.l.b16 %v1074
    %v1147 = vunpack.c.l.b16 %v1075
    %v1148 = vunpack.c.h.b16 %v1075
    %v1149 = vunpack.c.l.b16 %v1076
    %v1150 = vunpack.c.l.b16 %v1077
    %v1151 = vunpack.c.h.b16 %v1077
    %v1152 = vunpack.c.l.b16 %v1078
    %v1153 = vunpack.c.l.b16 %v1079
    %v1154 = vunpack.c.h.b16 %v1079
    %v1155 = vunpack.c.l.b16 %v1080
    %v1156 = vunpack.c.l.b16 %v1081
    %v1157 = vunpack.c.h.b16 %v1081
    %v1158 = vunpack.c.l.b16 %v1082
    %v1159 = vunpack.c.l.b16 %v1083
    %v1160 = vunpack.c.h.b16 %v1083
    %v1161 = vunpack.c.l.b16 %v1084
    %v1162 = vunpack.c.l.b16 %v1085
    %v1163 = vunpack.c.h.b16 %v1085
    %v1164 = vunpack.c.l.b16 %v1086
    %v1165 = vunpack.c.l.b16 %v1087
    %v1166 = vunpack.c.h.b16 %v1087
    %v1167 = vunpack.c.l.b16 %v1088
    %v1168 = vunpack.c.l.b16 %v1089
    %v1169 = vunpack.c.h.b16 %v1089
    %v1170 = vunpack.c.l.b16 %v1090
    %v1171 = vpack.c.b16 %v1126, %v1123
    %v1172 = vpack.c.b16 %v1127, %v1124
    %v1173 = vpack.c.b16 %v1128, %v1125
    %v1174 = vpack.c.b16 %v1132, %v1129
    %v1175 = vpack.c.b16 %v1133, %v1130
    %v1176 = vpack.c.b16 %v1134, %v1131
    %v1177 = vpack.c.b16 %v1138, %v1135
    %v1178 = vpack.c.b16 %v1139, %v1136
    %v1179 = vpack.c.b16 %v1140, %v1137
    %v1180 = vpack.c.b16 %v1144, %v1141
    %v1181 = vpack.c.b16 %v1145, %v1142
    %v1182 = vpack.c.b16 %v1146, %v1143
    %v1183 = vpack.c.b16 %v1150, %v1147
    %v1184 = vpack.c.b16 %v1151, %v1148
    %v1185 = vpack.c.b16 %v1152, %v1149
    %v1186 = vpack.c.b16 %v1156, %v1153
    %v1187 = vpack.c.b16 %v1157, %v1154
    %v1188 = vpack.c.b16 %v1158, %v1155
    %v1189 = vpack.c.b16 %v1162, %v1159
    %v1190 = vpack.c.b16 %v1163, %v1160
    %v1191 = vpack.c.b16 %v1164, %v1161
    %v1192 = vpack.c.b16 %v1168, %v1165
    %v1193 = vpack.c.b16 %v1169, %v1166
    %v1194 = vpack.c.b16 %v1170, %v1167
    %1219 = vmatprep.subr.bf16.mxu0 %v1193
    %1220 = vmatpush1.bf16.msra.mxu0 %v1192
    %1221 = vmatprep.subr.bf16.mxu0 %v1190
    %1222 = vmatpush1.bf16.msra.mxu0 %v1189
    %1223 = vmatprep.subr.bf16.mxu0 %v1187
    %1224 = vmatpush1.bf16.msra.mxu0 %v1186
    %1225 = vmatprep.subr.bf16.mxu0 %v1184
    %1226 = vmatpush1.bf16.msra.mxu0 %v1183
    %1227 = vmatprep.subr.bf16.mxu0 %v1181
    %1228 = vmatpush1.bf16.msra.mxu0 %v1180
    %1229 = vmatprep.subr.bf16.mxu0 %v1178
    %1230 = vmatpush1.bf16.msra.mxu0 %v1177
    %1231 = vmatprep.subr.bf16.mxu0 %v1175
    %1232 = vmatpush1.bf16.msra.mxu0 %v1174
    %1233 = vmatprep.subr.bf16.mxu0 %v1172
    %1234 = vmatpush1.bf16.msra.mxu0 %v1171
    %1235 = vmatprep.subr.bf16.mxu0 0
    %1236 = vmatpush2.bf16.msra.mxu0 0
    %1237 = vmatprep.subr.bf16.mxu0 0
    %1238 = vmatpush2.bf16.msra.mxu0 0
    %1239 = vmatprep.subr.bf16.mxu0 0
    %1240 = vmatpush2.bf16.msra.mxu0 0
    %1241 = vmatprep.subr.bf16.mxu0 0
    %1242 = vmatpush2.bf16.msra.mxu0 0
    %1243 = vmatprep.subr.bf16.mxu0 0
    %1244 = vmatpush2.bf16.msra.mxu0 0
    %1245 = vmatprep.subr.bf16.mxu0 0
    %1246 = vmatpush2.bf16.msra.mxu0 0
    %1247 = vmatprep.subr.bf16.mxu0 0
    %1248 = vmatpush2.bf16.msra.mxu0 0
    %1249 = vmatprep.subr.bf16.mxu0 0
    %1250 = vmatpush2.bf16.msra.mxu0 0
    %1251 = vmatprep.mubr.bf16.mxu0 0
    %1252 = vmatmul.mubr.bf16.gmra.mxu0 %v727
    %v1253 = vpop.f32.mrf.mxu0
    %v1254 = vadd.f32 0.0, %v1253
    %v1255 = vpop.f32.mrf.mxu0
    %v1256 = vadd.f32 0.0, %v1255
    %v1257 = vpop.f32.mrf.mxu0
    %v1258 = vadd.f32 0.0, %v1257
    %v1259 = vpop.f32.mrf.mxu0
    %v1260 = vadd.f32 0.0, %v1259
    %1261 = vdwg.mxu0
    %1262 = vmatprep.subr.bf16.mxu0 0
    %1263 = vmatpush1.bf16.msra.mxu0 %v1194
    %1264 = vmatprep.subr.bf16.mxu0 0
    %1265 = vmatpush1.bf16.msra.mxu0 %v1191
    %1266 = vmatprep.subr.bf16.mxu0 0
    %1267 = vmatpush1.bf16.msra.mxu0 %v1188
    %1268 = vmatprep.subr.bf16.mxu0 0
    %1269 = vmatpush1.bf16.msra.mxu0 %v1185
    %1270 = vmatprep.subr.bf16.mxu0 0
    %1271 = vmatpush1.bf16.msra.mxu0 %v1182
    %1272 = vmatprep.subr.bf16.mxu0 0
    %1273 = vmatpush1.bf16.msra.mxu0 %v1179
    %1274 = vmatprep.subr.bf16.mxu0 0
    %1275 = vmatpush1.bf16.msra.mxu0 %v1176
    %1276 = vmatprep.subr.bf16.mxu0 0
    %1277 = vmatpush1.bf16.msra.mxu0 %v1173
    %1278 = vmatprep.subr.bf16.mxu0 0
    %1279 = vmatpush2.bf16.msra.mxu0 0
    %1280 = vmatprep.subr.bf16.mxu0 0
    %1281 = vmatpush2.bf16.msra.mxu0 0
    %1282 = vmatprep.subr.bf16.mxu0 0
    %1283 = vmatpush2.bf16.msra.mxu0 0
    %1284 = vmatprep.subr.bf16.mxu0 0
    %1285 = vmatpush2.bf16.msra.mxu0 0
    %1286 = vmatprep.subr.bf16.mxu0 0
    %1287 = vmatpush2.bf16.msra.mxu0 0
    %1288 = vmatprep.subr.bf16.mxu0 0
    %1289 = vmatpush2.bf16.msra.mxu0 0
    %1290 = vmatprep.subr.bf16.mxu0 0
    %1291 = vmatpush2.bf16.msra.mxu0 0
    %1292 = vmatprep.subr.bf16.mxu0 0
    %1293 = vmatpush2.bf16.msra.mxu0 0
    %1294 = vmatprep.mubr.bf16.mxu0 0
    %1295 = vmatmul.mubr.bf16.gmra.mxu0 %v727
    %v1296 = vpop.f32.mrf.mxu0
    %v1297 = vadd.f32 0.0, %v1296
    %v1298 = vpop.f32.mrf.mxu0
    %v1299 = vpop.f32.mrf.mxu0
    %v1300 = vadd.f32 0.0, %v1299
    %v1301 = vpop.f32.mrf.mxu0
    %1302 = vdwg.mxu0
    %v1303 = vadd.f32 %v1053, %v1254
    %v1304 = vadd.f32 %v1056, %v1258
    %v1305 = vxor.u32 %v1303, 2147483648
    %v1306 = vxor.u32 %v1304, 2147483648
    %v1307 = vmul.f32 %v1305, 1.442695
    %v1308 = vpow.pop %v1307
    %v1309 = vmul.f32 %v1306, 1.442695
    %v1310 = vpow.pop %v1309
    %v1311 = vadd.f32 %v1308, 1.0
    %v1312 = vadd.f32 %v1310, 1.0
    %v1313 = vrcp.pop %v1311
    %v1314 = vmul.f32 1.0, %v1313
    %v1315 = vrcp.pop %v1312
    %v1316 = vmul.f32 1.0, %v1315
    %v1317 = vadd.f32 %v1054, %v1256
    %v1318 = vadd.f32 %v1057, %v1260
    %v1319 = vxor.u32 %v1317, 2147483648
    %v1320 = vxor.u32 %v1318, 2147483648
    %v1321 = vmul.f32 %v1319, 1.442695
    %v1322 = vpow.pop %v1321
    %v1323 = vmul.f32 %v1320, 1.442695
    %v1324 = vpow.pop %v1323
    %v1325 = vadd.f32 %v1322, 1.0
    %v1326 = vadd.f32 %v1324, 1.0
    %v1327 = vrcp.pop %v1325
    %v1328 = vmul.f32 1.0, %v1327
    %v1329 = vrcp.pop %v1326
    %v1330 = vmul.f32 1.0, %v1329
    %v1331 = vadd.f32 %v1297, %v112
    %v1332 = vadd.f32 %v1300, %v112
    %v1333 = vmul.f32 %v1314, %v1331
    %v1334 = vmul.f32 %v1316, %v1332
    %v1335 = vadd.f32 %v1055, %v1333
    %v1336 = vadd.f32 %v1058, %v1334
    %v1337 = vtanh.pop %v1335
    %v1338 = vtanh.pop %v1336
    %v1339 = vsub.f32 1.0, %v1328
    %v1340 = vsub.f32 1.0, %v1330
    %v1341 = vmul.f32 %v1339, %v1337
    %v1342 = vmul.f32 %v1340, %v1338
    %v1343 = vmul.f32 %v1328, %v725
    %v1344 = vmul.f32 %v1330, %v726
    %v1345 = vadd.f32 %v1341, %v1343
    %v1346 = vadd.f32 %v1342, %v1344
    %v1347 = vpack.c.bf16 %v1346, %v1345
    %v1349 = vunpack.c.l.b16 %v1347
    %v1350 = vunpack.c.h.b16 %v1347
    %v1351 = vpack.c.b16 %v1349, %v1349
    %v1352 = vpack.c.b16 %v1350, %v1350
    %s1355 = scalar_lea.vmem [#allocation13], 48
    %1356 = vst [vmem:[%s1355] sm:$0xf] %v1351
    %1357 = vst [vmem:[%s1355 + $0x4] sm:$0xf] %v1352
    %s1358 = scalar_lea.vmem [#allocation4], 48
    %v1359 = vld [vmem:[%s1358] sm:$0xff]
    %v1360 = vld [vmem:[%s1358 + $0x8] sm:$0xf]
    %v1361 = vld [vmem:[%s1358 + $0xc] sm:$0xff]
    %v1362 = vld [vmem:[%s1358 + $0x14] sm:$0xf]
    %v1363 = vunpack.c.l.bf16 %v1359
    %v1364 = vunpack.c.h.bf16 %v1359
    %v1365 = vunpack.c.l.bf16 %v1360
    %v1366 = vunpack.c.l.bf16 %v1361
    %v1367 = vunpack.c.h.bf16 %v1361
    %v1368 = vunpack.c.l.bf16 %v1362
    %v1369 = vld [vmem:[#allocation9] sm:$0xff]
    %v1370 = vld [vmem:[#allocation9 + $0x8] sm:$0xf]
    %v1371 = vld [vmem:[#allocation9 + $0xc] sm:$0xff]
    %v1372 = vld [vmem:[#allocation9 + $0x14] sm:$0xf]
    %v1373 = vld [vmem:[#allocation9 + $0x18] sm:$0xff]
    %v1374 = vld [vmem:[#allocation9 + $0x20] sm:$0xf]
    %v1375 = vld [vmem:[#allocation9 + $0x24] sm:$0xff]
    %v1376 = vld [vmem:[#allocation9 + $0x2c] sm:$0xf]
    %v1377 = vld [vmem:[#allocation9 + $0x30] sm:$0xff]
    %v1378 = vld [vmem:[#allocation9 + $0x38] sm:$0xf]
    %v1379 = vld [vmem:[#allocation9 + $0x3c] sm:$0xff]
    %v1380 = vld [vmem:[#allocation9 + $0x44] sm:$0xf]
    %v1381 = vld [vmem:[#allocation9 + $0x48] sm:$0xff]
    %v1382 = vld [vmem:[#allocation9 + $0x50] sm:$0xf]
    %v1383 = vld [vmem:[#allocation9 + $0x54] sm:$0xff]
    %v1384 = vld [vmem:[#allocation9 + $0x5c] sm:$0xf]
    %v1385 = vld [vmem:[#allocation9 + $0x60] sm:$0xff]
    %v1386 = vld [vmem:[#allocation9 + $0x68] sm:$0xf]
    %v1387 = vld [vmem:[#allocation9 + $0x6c] sm:$0xff]
    %v1388 = vld [vmem:[#allocation9 + $0x74] sm:$0xf]
    %v1389 = vld [vmem:[#allocation9 + $0x78] sm:$0xff]
    %v1390 = vld [vmem:[#allocation9 + $0x80] sm:$0xf]
    %v1391 = vld [vmem:[#allocation9 + $0x84] sm:$0xff]
    %v1392 = vld [vmem:[#allocation9 + $0x8c] sm:$0xf]
    %v1393 = vld [vmem:[#allocation9 + $0x90] sm:$0xff]
    %v1394 = vld [vmem:[#allocation9 + $0x98] sm:$0xf]
    %v1395 = vld [vmem:[#allocation9 + $0x9c] sm:$0xff]
    %v1396 = vld [vmem:[#allocation9 + $0xa4] sm:$0xf]
    %v1397 = vld [vmem:[#allocation9 + $0xa8] sm:$0xff]
    %v1398 = vld [vmem:[#allocation9 + $0xb0] sm:$0xf]
    %v1399 = vld [vmem:[#allocation9 + $0xb4] sm:$0xff]
    %v1400 = vld [vmem:[#allocation9 + $0xbc] sm:$0xf]
    %v1433 = vunpack.c.l.b16 %v1369
    %v1434 = vunpack.c.h.b16 %v1369
    %v1435 = vunpack.c.l.b16 %v1370
    %v1436 = vunpack.c.l.b16 %v1371
    %v1437 = vunpack.c.h.b16 %v1371
    %v1438 = vunpack.c.l.b16 %v1372
    %v1439 = vunpack.c.l.b16 %v1373
    %v1440 = vunpack.c.h.b16 %v1373
    %v1441 = vunpack.c.l.b16 %v1374
    %v1442 = vunpack.c.l.b16 %v1375
    %v1443 = vunpack.c.h.b16 %v1375
    %v1444 = vunpack.c.l.b16 %v1376
    %v1445 = vunpack.c.l.b16 %v1377
    %v1446 = vunpack.c.h.b16 %v1377
    %v1447 = vunpack.c.l.b16 %v1378
    %v1448 = vunpack.c.l.b16 %v1379
    %v1449 = vunpack.c.h.b16 %v1379
    %v1450 = vunpack.c.l.b16 %v1380
    %v1451 = vunpack.c.l.b16 %v1381
    %v1452 = vunpack.c.h.b16 %v1381
    %v1453 = vunpack.c.l.b16 %v1382
    %v1454 = vunpack.c.l.b16 %v1383
    %v1455 = vunpack.c.h.b16 %v1383
    %v1456 = vunpack.c.l.b16 %v1384
    %v1457 = vunpack.c.l.b16 %v1385
    %v1458 = vunpack.c.h.b16 %v1385
    %v1459 = vunpack.c.l.b16 %v1386
    %v1460 = vunpack.c.l.b16 %v1387
    %v1461 = vunpack.c.h.b16 %v1387
    %v1462 = vunpack.c.l.b16 %v1388
    %v1463 = vunpack.c.l.b16 %v1389
    %v1464 = vunpack.c.h.b16 %v1389
    %v1465 = vunpack.c.l.b16 %v1390
    %v1466 = vunpack.c.l.b16 %v1391
    %v1467 = vunpack.c.h.b16 %v1391
    %v1468 = vunpack.c.l.b16 %v1392
    %v1469 = vunpack.c.l.b16 %v1393
    %v1470 = vunpack.c.h.b16 %v1393
    %v1471 = vunpack.c.l.b16 %v1394
    %v1472 = vunpack.c.l.b16 %v1395
    %v1473 = vunpack.c.h.b16 %v1395
    %v1474 = vunpack.c.l.b16 %v1396
    %v1475 = vunpack.c.l.b16 %v1397
    %v1476 = vunpack.c.h.b16 %v1397
    %v1477 = vunpack.c.l.b16 %v1398
    %v1478 = vunpack.c.l.b16 %v1399
    %v1479 = vunpack.c.h.b16 %v1399
    %v1480 = vunpack.c.l.b16 %v1400
    %v1481 = vpack.c.b16 %v1436, %v1433
    %v1482 = vpack.c.b16 %v1437, %v1434
    %v1483 = vpack.c.b16 %v1438, %v1435
    %v1484 = vpack.c.b16 %v1442, %v1439
    %v1485 = vpack.c.b16 %v1443, %v1440
    %v1486 = vpack.c.b16 %v1444, %v1441
    %v1487 = vpack.c.b16 %v1448, %v1445
    %v1488 = vpack.c.b16 %v1449, %v1446
    %v1489 = vpack.c.b16 %v1450, %v1447
    %v1490 = vpack.c.b16 %v1454, %v1451
    %v1491 = vpack.c.b16 %v1455, %v1452
    %v1492 = vpack.c.b16 %v1456, %v1453
    %v1493 = vpack.c.b16 %v1460, %v1457
    %v1494 = vpack.c.b16 %v1461, %v1458
    %v1495 = vpack.c.b16 %v1462, %v1459
    %v1496 = vpack.c.b16 %v1466, %v1463
    %v1497 = vpack.c.b16 %v1467, %v1464
    %v1498 = vpack.c.b16 %v1468, %v1465
    %v1499 = vpack.c.b16 %v1472, %v1469
    %v1500 = vpack.c.b16 %v1473, %v1470
    %v1501 = vpack.c.b16 %v1474, %v1471
    %v1502 = vpack.c.b16 %v1478, %v1475
    %v1503 = vpack.c.b16 %v1479, %v1476
    %v1504 = vpack.c.b16 %v1480, %v1477
    %1529 = vmatprep.subr.bf16.mxu0 %v1503
    %1530 = vmatpush1.bf16.msra.mxu0 %v1502
    %1531 = vmatprep.subr.bf16.mxu0 %v1500
    %1532 = vmatpush1.bf16.msra.mxu0 %v1499
    %1533 = vmatprep.subr.bf16.mxu0 %v1497
    %1534 = vmatpush1.bf16.msra.mxu0 %v1496
    %1535 = vmatprep.subr.bf16.mxu0 %v1494
    %1536 = vmatpush1.bf16.msra.mxu0 %v1493
    %1537 = vmatprep.subr.bf16.mxu0 %v1491
    %1538 = vmatpush1.bf16.msra.mxu0 %v1490
    %1539 = vmatprep.subr.bf16.mxu0 %v1488
    %1540 = vmatpush1.bf16.msra.mxu0 %v1487
    %1541 = vmatprep.subr.bf16.mxu0 %v1485
    %1542 = vmatpush1.bf16.msra.mxu0 %v1484
    %1543 = vmatprep.subr.bf16.mxu0 %v1482
    %1544 = vmatpush1.bf16.msra.mxu0 %v1481
    %1545 = vmatprep.subr.bf16.mxu0 0
    %1546 = vmatpush2.bf16.msra.mxu0 0
    %1547 = vmatprep.subr.bf16.mxu0 0
    %1548 = vmatpush2.bf16.msra.mxu0 0
    %1549 = vmatprep.subr.bf16.mxu0 0
    %1550 = vmatpush2.bf16.msra.mxu0 0
    %1551 = vmatprep.subr.bf16.mxu0 0
    %1552 = vmatpush2.bf16.msra.mxu0 0
    %1553 = vmatprep.subr.bf16.mxu0 0
    %1554 = vmatpush2.bf16.msra.mxu0 0
    %1555 = vmatprep.subr.bf16.mxu0 0
    %1556 = vmatpush2.bf16.msra.mxu0 0
    %1557 = vmatprep.subr.bf16.mxu0 0
    %1558 = vmatpush2.bf16.msra.mxu0 0
    %1559 = vmatprep.subr.bf16.mxu0 0
    %1560 = vmatpush2.bf16.msra.mxu0 0
    %1561 = vmatprep.mubr.bf16.mxu0 0
    %1562 = vmatmul.mubr.bf16.gmra.mxu0 %v1037
    %v1563 = vpop.f32.mrf.mxu0
    %v1564 = vadd.f32 0.0, %v1563
    %v1565 = vpop.f32.mrf.mxu0
    %v1566 = vadd.f32 0.0, %v1565
    %v1567 = vpop.f32.mrf.mxu0
    %v1568 = vadd.f32 0.0, %v1567
    %v1569 = vpop.f32.mrf.mxu0
    %v1570 = vadd.f32 0.0, %v1569
    %1571 = vdwg.mxu0
    %1572 = vmatprep.subr.bf16.mxu0 0
    %1573 = vmatpush1.bf16.msra.mxu0 %v1504
    %1574 = vmatprep.subr.bf16.mxu0 0
    %1575 = vmatpush1.bf16.msra.mxu0 %v1501
    %1576 = vmatprep.subr.bf16.mxu0 0
    %1577 = vmatpush1.bf16.msra.mxu0 %v1498
    %1578 = vmatprep.subr.bf16.mxu0 0
    %1579 = vmatpush1.bf16.msra.mxu0 %v1495
    %1580 = vmatprep.subr.bf16.mxu0 0
    %1581 = vmatpush1.bf16.msra.mxu0 %v1492
    %1582 = vmatprep.subr.bf16.mxu0 0
    %1583 = vmatpush1.bf16.msra.mxu0 %v1489
    %1584 = vmatprep.subr.bf16.mxu0 0
    %1585 = vmatpush1.bf16.msra.mxu0 %v1486
    %1586 = vmatprep.subr.bf16.mxu0 0
    %1587 = vmatpush1.bf16.msra.mxu0 %v1483
    %1588 = vmatprep.subr.bf16.mxu0 0
    %1589 = vmatpush2.bf16.msra.mxu0 0
    %1590 = vmatprep.subr.bf16.mxu0 0
    %1591 = vmatpush2.bf16.msra.mxu0 0
    %1592 = vmatprep.subr.bf16.mxu0 0
    %1593 = vmatpush2.bf16.msra.mxu0 0
    %1594 = vmatprep.subr.bf16.mxu0 0
    %1595 = vmatpush2.bf16.msra.mxu0 0
    %1596 = vmatprep.subr.bf16.mxu0 0
    %1597 = vmatpush2.bf16.msra.mxu0 0
    %1598 = vmatprep.subr.bf16.mxu0 0
    %1599 = vmatpush2.bf16.msra.mxu0 0
    %1600 = vmatprep.subr.bf16.mxu0 0
    %1601 = vmatpush2.bf16.msra.mxu0 0
    %1602 = vmatprep.subr.bf16.mxu0 0
    %1603 = vmatpush2.bf16.msra.mxu0 0
    %1604 = vmatprep.mubr.bf16.mxu0 0
    %1605 = vmatmul.mubr.bf16.gmra.mxu0 %v1037
    %v1606 = vpop.f32.mrf.mxu0
    %v1607 = vadd.f32 0.0, %v1606
    %v1608 = vpop.f32.mrf.mxu0
    %v1609 = vpop.f32.mrf.mxu0
    %v1610 = vadd.f32 0.0, %v1609
    %v1611 = vpop.f32.mrf.mxu0
    %1612 = vdwg.mxu0
    %v1613 = vadd.f32 %v1363, %v1564
    %v1614 = vadd.f32 %v1366, %v1568
    %v1615 = vxor.u32 %v1613, 2147483648
    %v1616 = vxor.u32 %v1614, 2147483648
    %v1617 = vmul.f32 %v1615, 1.442695
    %v1618 = vpow.pop %v1617
    %v1619 = vmul.f32 %v1616, 1.442695
    %v1620 = vpow.pop %v1619
    %v1621 = vadd.f32 %v1618, 1.0
    %v1622 = vadd.f32 %v1620, 1.0
    %v1623 = vrcp.pop %v1621
    %v1624 = vmul.f32 1.0, %v1623
    %v1625 = vrcp.pop %v1622
    %v1626 = vmul.f32 1.0, %v1625
    %v1627 = vadd.f32 %v1364, %v1566
    %v1628 = vadd.f32 %v1367, %v1570
    %v1629 = vxor.u32 %v1627, 2147483648
    %v1630 = vxor.u32 %v1628, 2147483648
    %v1631 = vmul.f32 %v1629, 1.442695
    %v1632 = vpow.pop %v1631
    %v1633 = vmul.f32 %v1630, 1.442695
    %v1634 = vpow.pop %v1633
    %v1635 = vadd.f32 %v1632, 1.0
    %v1636 = vadd.f32 %v1634, 1.0
    %v1637 = vrcp.pop %v1635
    %v1638 = vmul.f32 1.0, %v1637
    %v1639 = vrcp.pop %v1636
    %v1640 = vmul.f32 1.0, %v1639
    %v1641 = vadd.f32 %v1607, %v105
    %v1642 = vadd.f32 %v1610, %v105
    %v1643 = vmul.f32 %v1624, %v1641
    %v1644 = vmul.f32 %v1626, %v1642
    %v1645 = vadd.f32 %v1365, %v1643
    %v1646 = vadd.f32 %v1368, %v1644
    %v1647 = vtanh.pop %v1645
    %v1648 = vtanh.pop %v1646
    %v1649 = vsub.f32 1.0, %v1638
    %v1650 = vsub.f32 1.0, %v1640
    %v1651 = vmul.f32 %v1649, %v1647
    %v1652 = vmul.f32 %v1650, %v1648
    %v1653 = vmul.f32 %v1638, %v1035
    %v1654 = vmul.f32 %v1640, %v1036
    %v1655 = vadd.f32 %v1651, %v1653
    %v1656 = vadd.f32 %v1652, %v1654
    %v1657 = vpack.c.bf16 %v1656, %v1655
    %v1659 = vunpack.c.l.b16 %v1657
    %v1660 = vunpack.c.h.b16 %v1657
    %v1661 = vpack.c.b16 %v1659, %v1659
    %v1662 = vpack.c.b16 %v1660, %v1660
    %s1665 = scalar_lea.vmem [#allocation12], 16
    %1666 = vst [vmem:[%s1665] sm:$0xf] %v1661
    %1667 = vst [vmem:[%s1665 + $0x4] sm:$0xf] %v1662
    %s1668 = scalar_lea.vmem [#allocation7], 120
    %v1669 = vld [vmem:[%s1668] sm:$0xff]
    %v1670 = vld [vmem:[%s1668 + $0x8] sm:$0xf]
    %v1671 = vld [vmem:[%s1668 + $0xc] sm:$0xff]
    %v1672 = vld [vmem:[%s1668 + $0x14] sm:$0xf]
    %v1673 = vunpack.c.l.bf16 %v1669
    %v1674 = vunpack.c.h.bf16 %v1669
    %v1675 = vunpack.c.l.bf16 %v1670
    %v1676 = vunpack.c.l.bf16 %v1671
    %v1677 = vunpack.c.h.bf16 %v1671
    %v1678 = vunpack.c.l.bf16 %v1672
    %v1679 = vld [vmem:[#allocation10] sm:$0xff]
    %v1680 = vld [vmem:[#allocation10 + $0x8] sm:$0xf]
    %v1681 = vld [vmem:[#allocation10 + $0xc] sm:$0xff]
    %v1682 = vld [vmem:[#allocation10 + $0x14] sm:$0xf]
    %v1683 = vld [vmem:[#allocation10 + $0x18] sm:$0xff]
    %v1684 = vld [vmem:[#allocation10 + $0x20] sm:$0xf]
    %v1685 = vld [vmem:[#allocation10 + $0x24] sm:$0xff]
    %v1686 = vld [vmem:[#allocation10 + $0x2c] sm:$0xf]
    %v1687 = vld [vmem:[#allocation10 + $0x30] sm:$0xff]
    %v1688 = vld [vmem:[#allocation10 + $0x38] sm:$0xf]
    %v1689 = vld [vmem:[#allocation10 + $0x3c] sm:$0xff]
    %v1690 = vld [vmem:[#allocation10 + $0x44] sm:$0xf]
    %v1691 = vld [vmem:[#allocation10 + $0x48] sm:$0xff]
    %v1692 = vld [vmem:[#allocation10 + $0x50] sm:$0xf]
    %v1693 = vld [vmem:[#allocation10 + $0x54] sm:$0xff]
    %v1694 = vld [vmem:[#allocation10 + $0x5c] sm:$0xf]
    %v1695 = vld [vmem:[#allocation10 + $0x60] sm:$0xff]
    %v1696 = vld [vmem:[#allocation10 + $0x68] sm:$0xf]
    %v1697 = vld [vmem:[#allocation10 + $0x6c] sm:$0xff]
    %v1698 = vld [vmem:[#allocation10 + $0x74] sm:$0xf]
    %v1699 = vld [vmem:[#allocation10 + $0x78] sm:$0xff]
    %v1700 = vld [vmem:[#allocation10 + $0x80] sm:$0xf]
    %v1701 = vld [vmem:[#allocation10 + $0x84] sm:$0xff]
    %v1702 = vld [vmem:[#allocation10 + $0x8c] sm:$0xf]
    %v1703 = vld [vmem:[#allocation10 + $0x90] sm:$0xff]
    %v1704 = vld [vmem:[#allocation10 + $0x98] sm:$0xf]
    %v1705 = vld [vmem:[#allocation10 + $0x9c] sm:$0xff]
    %v1706 = vld [vmem:[#allocation10 + $0xa4] sm:$0xf]
    %v1707 = vld [vmem:[#allocation10 + $0xa8] sm:$0xff]
    %v1708 = vld [vmem:[#allocation10 + $0xb0] sm:$0xf]
    %v1709 = vld [vmem:[#allocation10 + $0xb4] sm:$0xff]
    %v1710 = vld [vmem:[#allocation10 + $0xbc] sm:$0xf]
    %v1743 = vunpack.c.l.b16 %v1679
    %v1744 = vunpack.c.h.b16 %v1679
    %v1745 = vunpack.c.l.b16 %v1680
    %v1746 = vunpack.c.l.b16 %v1681
    %v1747 = vunpack.c.h.b16 %v1681
    %v1748 = vunpack.c.l.b16 %v1682
    %v1749 = vunpack.c.l.b16 %v1683
    %v1750 = vunpack.c.h.b16 %v1683
    %v1751 = vunpack.c.l.b16 %v1684
    %v1752 = vunpack.c.l.b16 %v1685
    %v1753 = vunpack.c.h.b16 %v1685
    %v1754 = vunpack.c.l.b16 %v1686
    %v1755 = vunpack.c.l.b16 %v1687
    %v1756 = vunpack.c.h.b16 %v1687
    %v1757 = vunpack.c.l.b16 %v1688
    %v1758 = vunpack.c.l.b16 %v1689
    %v1759 = vunpack.c.h.b16 %v1689
    %v1760 = vunpack.c.l.b16 %v1690
    %v1761 = vunpack.c.l.b16 %v1691
    %v1762 = vunpack.c.h.b16 %v1691
    %v1763 = vunpack.c.l.b16 %v1692
    %v1764 = vunpack.c.l.b16 %v1693
    %v1765 = vunpack.c.h.b16 %v1693
    %v1766 = vunpack.c.l.b16 %v1694
    %v1767 = vunpack.c.l.b16 %v1695
    %v1768 = vunpack.c.h.b16 %v1695
    %v1769 = vunpack.c.l.b16 %v1696
    %v1770 = vunpack.c.l.b16 %v1697
    %v1771 = vunpack.c.h.b16 %v1697
    %v1772 = vunpack.c.l.b16 %v1698
    %v1773 = vunpack.c.l.b16 %v1699
    %v1774 = vunpack.c.h.b16 %v1699
    %v1775 = vunpack.c.l.b16 %v1700
    %v1776 = vunpack.c.l.b16 %v1701
    %v1777 = vunpack.c.h.b16 %v1701
    %v1778 = vunpack.c.l.b16 %v1702
    %v1779 = vunpack.c.l.b16 %v1703
    %v1780 = vunpack.c.h.b16 %v1703
    %v1781 = vunpack.c.l.b16 %v1704
    %v1782 = vunpack.c.l.b16 %v1705
    %v1783 = vunpack.c.h.b16 %v1705
    %v1784 = vunpack.c.l.b16 %v1706
    %v1785 = vunpack.c.l.b16 %v1707
    %v1786 = vunpack.c.h.b16 %v1707
    %v1787 = vunpack.c.l.b16 %v1708
    %v1788 = vunpack.c.l.b16 %v1709
    %v1789 = vunpack.c.h.b16 %v1709
    %v1790 = vunpack.c.l.b16 %v1710
    %v1791 = vpack.c.b16 %v1746, %v1743
    %v1792 = vpack.c.b16 %v1747, %v1744
    %v1793 = vpack.c.b16 %v1748, %v1745
    %v1794 = vpack.c.b16 %v1752, %v1749
    %v1795 = vpack.c.b16 %v1753, %v1750
    %v1796 = vpack.c.b16 %v1754, %v1751
    %v1797 = vpack.c.b16 %v1758, %v1755
    %v1798 = vpack.c.b16 %v1759, %v1756
    %v1799 = vpack.c.b16 %v1760, %v1757
    %v1800 = vpack.c.b16 %v1764, %v1761
    %v1801 = vpack.c.b16 %v1765, %v1762
    %v1802 = vpack.c.b16 %v1766, %v1763
    %v1803 = vpack.c.b16 %v1770, %v1767
    %v1804 = vpack.c.b16 %v1771, %v1768
    %v1805 = vpack.c.b16 %v1772, %v1769
    %v1806 = vpack.c.b16 %v1776, %v1773
    %v1807 = vpack.c.b16 %v1777, %v1774
    %v1808 = vpack.c.b16 %v1778, %v1775
    %v1809 = vpack.c.b16 %v1782, %v1779
    %v1810 = vpack.c.b16 %v1783, %v1780
    %v1811 = vpack.c.b16 %v1784, %v1781
    %v1812 = vpack.c.b16 %v1788, %v1785
    %v1813 = vpack.c.b16 %v1789, %v1786
    %v1814 = vpack.c.b16 %v1790, %v1787
    %1839 = vmatprep.subr.bf16.mxu0 %v1813
    %1840 = vmatpush1.bf16.msra.mxu0 %v1812
    %1841 = vmatprep.subr.bf16.mxu0 %v1810
    %1842 = vmatpush1.bf16.msra.mxu0 %v1809
    %1843 = vmatprep.subr.bf16.mxu0 %v1807
    %1844 = vmatpush1.bf16.msra.mxu0 %v1806
    %1845 = vmatprep.subr.bf16.mxu0 %v1804
    %1846 = vmatpush1.bf16.msra.mxu0 %v1803
    %1847 = vmatprep.subr.bf16.mxu0 %v1801
    %1848 = vmatpush1.bf16.msra.mxu0 %v1800
    %1849 = vmatprep.subr.bf16.mxu0 %v1798
    %1850 = vmatpush1.bf16.msra.mxu0 %v1797
    %1851 = vmatprep.subr.bf16.mxu0 %v1795
    %1852 = vmatpush1.bf16.msra.mxu0 %v1794
    %1853 = vmatprep.subr.bf16.mxu0 %v1792
    %1854 = vmatpush1.bf16.msra.mxu0 %v1791
    %1855 = vmatprep.subr.bf16.mxu0 0
    %1856 = vmatpush2.bf16.msra.mxu0 0
    %1857 = vmatprep.subr.bf16.mxu0 0
    %1858 = vmatpush2.bf16.msra.mxu0 0
    %1859 = vmatprep.subr.bf16.mxu0 0
    %1860 = vmatpush2.bf16.msra.mxu0 0
    %1861 = vmatprep.subr.bf16.mxu0 0
    %1862 = vmatpush2.bf16.msra.mxu0 0
    %1863 = vmatprep.subr.bf16.mxu0 0
    %1864 = vmatpush2.bf16.msra.mxu0 0
    %1865 = vmatprep.subr.bf16.mxu0 0
    %1866 = vmatpush2.bf16.msra.mxu0 0
    %1867 = vmatprep.subr.bf16.mxu0 0
    %1868 = vmatpush2.bf16.msra.mxu0 0
    %1869 = vmatprep.subr.bf16.mxu0 0
    %1870 = vmatpush2.bf16.msra.mxu0 0
    %1871 = vmatprep.mubr.bf16.mxu0 0
    %1872 = vmatmul.mubr.bf16.gmra.mxu0 %v1347
    %v1873 = vpop.f32.mrf.mxu0
    %v1874 = vadd.f32 0.0, %v1873
    %v1875 = vpop.f32.mrf.mxu0
    %v1876 = vadd.f32 0.0, %v1875
    %v1877 = vpop.f32.mrf.mxu0
    %v1878 = vadd.f32 0.0, %v1877
    %v1879 = vpop.f32.mrf.mxu0
    %v1880 = vadd.f32 0.0, %v1879
    %1881 = vdwg.mxu0
    %1882 = vmatprep.subr.bf16.mxu0 0
    %1883 = vmatpush1.bf16.msra.mxu0 %v1814
    %1884 = vmatprep.subr.bf16.mxu0 0
    %1885 = vmatpush1.bf16.msra.mxu0 %v1811
    %1886 = vmatprep.subr.bf16.mxu0 0
    %1887 = vmatpush1.bf16.msra.mxu0 %v1808
    %1888 = vmatprep.subr.bf16.mxu0 0
    %1889 = vmatpush1.bf16.msra.mxu0 %v1805
    %1890 = vmatprep.subr.bf16.mxu0 0
    %1891 = vmatpush1.bf16.msra.mxu0 %v1802
    %1892 = vmatprep.subr.bf16.mxu0 0
    %1893 = vmatpush1.bf16.msra.mxu0 %v1799
    %1894 = vmatprep.subr.bf16.mxu0 0
    %1895 = vmatpush1.bf16.msra.mxu0 %v1796
    %1896 = vmatprep.subr.bf16.mxu0 0
    %1897 = vmatpush1.bf16.msra.mxu0 %v1793
    %1898 = vmatprep.subr.bf16.mxu0 0
    %1899 = vmatpush2.bf16.msra.mxu0 0
    %1900 = vmatprep.subr.bf16.mxu0 0
    %1901 = vmatpush2.bf16.msra.mxu0 0
    %1902 = vmatprep.subr.bf16.mxu0 0
    %1903 = vmatpush2.bf16.msra.mxu0 0
    %1904 = vmatprep.subr.bf16.mxu0 0
    %1905 = vmatpush2.bf16.msra.mxu0 0
    %1906 = vmatprep.subr.bf16.mxu0 0
    %1907 = vmatpush2.bf16.msra.mxu0 0
    %1908 = vmatprep.subr.bf16.mxu0 0
    %1909 = vmatpush2.bf16.msra.mxu0 0
    %1910 = vmatprep.subr.bf16.mxu0 0
    %1911 = vmatpush2.bf16.msra.mxu0 0
    %1912 = vmatprep.subr.bf16.mxu0 0
    %1913 = vmatpush2.bf16.msra.mxu0 0
    %1914 = vmatprep.mubr.bf16.mxu0 0
    %1915 = vmatmul.mubr.bf16.gmra.mxu0 %v1347
    %v1916 = vpop.f32.mrf.mxu0
    %v1917 = vadd.f32 0.0, %v1916
    %v1918 = vpop.f32.mrf.mxu0
    %v1919 = vpop.f32.mrf.mxu0
    %v1920 = vadd.f32 0.0, %v1919
    %v1921 = vpop.f32.mrf.mxu0
    %1922 = vdwg.mxu0
    %v1923 = vadd.f32 %v1673, %v1874
    %v1924 = vadd.f32 %v1676, %v1878
    %v1925 = vxor.u32 %v1923, 2147483648
    %v1926 = vxor.u32 %v1924, 2147483648
    %v1927 = vmul.f32 %v1925, 1.442695
    %v1928 = vpow.pop %v1927
    %v1929 = vmul.f32 %v1926, 1.442695
    %v1930 = vpow.pop %v1929
    %v1931 = vadd.f32 %v1928, 1.0
    %v1932 = vadd.f32 %v1930, 1.0
    %v1933 = vrcp.pop %v1931
    %v1934 = vmul.f32 1.0, %v1933
    %v1935 = vrcp.pop %v1932
    %v1936 = vmul.f32 1.0, %v1935
    %v1937 = vadd.f32 %v1674, %v1876
    %v1938 = vadd.f32 %v1677, %v1880
    %v1939 = vxor.u32 %v1937, 2147483648
    %v1940 = vxor.u32 %v1938, 2147483648
    %v1941 = vmul.f32 %v1939, 1.442695
    %v1942 = vpow.pop %v1941
    %v1943 = vmul.f32 %v1940, 1.442695
    %v1944 = vpow.pop %v1943
    %v1945 = vadd.f32 %v1942, 1.0
    %v1946 = vadd.f32 %v1944, 1.0
    %v1947 = vrcp.pop %v1945
    %v1948 = vmul.f32 1.0, %v1947
    %v1949 = vrcp.pop %v1946
    %v1950 = vmul.f32 1.0, %v1949
    %v1951 = vadd.f32 %v1917, %v112
    %v1952 = vadd.f32 %v1920, %v112
    %v1953 = vmul.f32 %v1934, %v1951
    %v1954 = vmul.f32 %v1936, %v1952
    %v1955 = vadd.f32 %v1675, %v1953
    %v1956 = vadd.f32 %v1678, %v1954
    %v1957 = vtanh.pop %v1955
    %v1958 = vtanh.pop %v1956
    %v1959 = vsub.f32 1.0, %v1948
    %v1960 = vsub.f32 1.0, %v1950
    %v1961 = vmul.f32 %v1959, %v1957
    %v1962 = vmul.f32 %v1960, %v1958
    %v1963 = vmul.f32 %v1948, %v1345
    %v1964 = vmul.f32 %v1950, %v1346
    %v1965 = vadd.f32 %v1961, %v1963
    %v1966 = vadd.f32 %v1962, %v1964
    %v1967 = vpack.c.bf16 %v1966, %v1965
    %v1969 = vunpack.c.l.b16 %v1967
    %v1970 = vunpack.c.h.b16 %v1967
    %v1971 = vpack.c.b16 %v1969, %v1969
    %v1972 = vpack.c.b16 %v1970, %v1970
    %s1975 = scalar_lea.vmem [#allocation13], 40
    %1976 = vst [vmem:[%s1975] sm:$0xf] %v1971
    %1977 = vst [vmem:[%s1975 + $0x4] sm:$0xf] %v1972
    %s1978 = scalar_lea.vmem [#allocation4], 72
    %v1979 = vld [vmem:[%s1978] sm:$0xff]
    %v1980 = vld [vmem:[%s1978 + $0x8] sm:$0xf]
    %v1981 = vld [vmem:[%s1978 + $0xc] sm:$0xff]
    %v1982 = vld [vmem:[%s1978 + $0x14] sm:$0xf]
    %v1983 = vunpack.c.l.bf16 %v1979
    %v1984 = vunpack.c.h.bf16 %v1979
    %v1985 = vunpack.c.l.bf16 %v1980
    %v1986 = vunpack.c.l.bf16 %v1981
    %v1987 = vunpack.c.h.bf16 %v1981
    %v1988 = vunpack.c.l.bf16 %v1982
    %v1989 = vld [vmem:[#allocation9] sm:$0xff]
    %v1990 = vld [vmem:[#allocation9 + $0x8] sm:$0xf]
    %v1991 = vld [vmem:[#allocation9 + $0xc] sm:$0xff]
    %v1992 = vld [vmem:[#allocation9 + $0x14] sm:$0xf]
    %v1993 = vld [vmem:[#allocation9 + $0x18] sm:$0xff]
    %v1994 = vld [vmem:[#allocation9 + $0x20] sm:$0xf]
    %v1995 = vld [vmem:[#allocation9 + $0x24] sm:$0xff]
    %v1996 = vld [vmem:[#allocation9 + $0x2c] sm:$0xf]
    %v1997 = vld [vmem:[#allocation9 + $0x30] sm:$0xff]
    %v1998 = vld [vmem:[#allocation9 + $0x38] sm:$0xf]
    %v1999 = vld [vmem:[#allocation9 + $0x3c] sm:$0xff]
    %v2000 = vld [vmem:[#allocation9 + $0x44] sm:$0xf]
    %v2001 = vld [vmem:[#allocation9 + $0x48] sm:$0xff]
    %v2002 = vld [vmem:[#allocation9 + $0x50] sm:$0xf]
    %v2003 = vld [vmem:[#allocation9 + $0x54] sm:$0xff]
    %v2004 = vld [vmem:[#allocation9 + $0x5c] sm:$0xf]
    %v2005 = vld [vmem:[#allocation9 + $0x60] sm:$0xff]
    %v2006 = vld [vmem:[#allocation9 + $0x68] sm:$0xf]
    %v2007 = vld [vmem:[#allocation9 + $0x6c] sm:$0xff]
    %v2008 = vld [vmem:[#allocation9 + $0x74] sm:$0xf]
    %v2009 = vld [vmem:[#allocation9 + $0x78] sm:$0xff]
    %v2010 = vld [vmem:[#allocation9 + $0x80] sm:$0xf]
    %v2011 = vld [vmem:[#allocation9 + $0x84] sm:$0xff]
    %v2012 = vld [vmem:[#allocation9 + $0x8c] sm:$0xf]
    %v2013 = vld [vmem:[#allocation9 + $0x90] sm:$0xff]
    %v2014 = vld [vmem:[#allocation9 + $0x98] sm:$0xf]
    %v2015 = vld [vmem:[#allocation9 + $0x9c] sm:$0xff]
    %v2016 = vld [vmem:[#allocation9 + $0xa4] sm:$0xf]
    %v2017 = vld [vmem:[#allocation9 + $0xa8] sm:$0xff]
    %v2018 = vld [vmem:[#allocation9 + $0xb0] sm:$0xf]
    %v2019 = vld [vmem:[#allocation9 + $0xb4] sm:$0xff]
    %v2020 = vld [vmem:[#allocation9 + $0xbc] sm:$0xf]
    %v2053 = vunpack.c.l.b16 %v1989
    %v2054 = vunpack.c.h.b16 %v1989
    %v2055 = vunpack.c.l.b16 %v1990
    %v2056 = vunpack.c.l.b16 %v1991
    %v2057 = vunpack.c.h.b16 %v1991
    %v2058 = vunpack.c.l.b16 %v1992
    %v2059 = vunpack.c.l.b16 %v1993
    %v2060 = vunpack.c.h.b16 %v1993
    %v2061 = vunpack.c.l.b16 %v1994
    %v2062 = vunpack.c.l.b16 %v1995
    %v2063 = vunpack.c.h.b16 %v1995
    %v2064 = vunpack.c.l.b16 %v1996
    %v2065 = vunpack.c.l.b16 %v1997
    %v2066 = vunpack.c.h.b16 %v1997
    %v2067 = vunpack.c.l.b16 %v1998
    %v2068 = vunpack.c.l.b16 %v1999
    %v2069 = vunpack.c.h.b16 %v1999
    %v2070 = vunpack.c.l.b16 %v2000
    %v2071 = vunpack.c.l.b16 %v2001
    %v2072 = vunpack.c.h.b16 %v2001
    %v2073 = vunpack.c.l.b16 %v2002
    %v2074 = vunpack.c.l.b16 %v2003
    %v2075 = vunpack.c.h.b16 %v2003
    %v2076 = vunpack.c.l.b16 %v2004
    %v2077 = vunpack.c.l.b16 %v2005
    %v2078 = vunpack.c.h.b16 %v2005
    %v2079 = vunpack.c.l.b16 %v2006
    %v2080 = vunpack.c.l.b16 %v2007
    %v2081 = vunpack.c.h.b16 %v2007
    %v2082 = vunpack.c.l.b16 %v2008
    %v2083 = vunpack.c.l.b16 %v2009
    %v2084 = vunpack.c.h.b16 %v2009
    %v2085 = vunpack.c.l.b16 %v2010
    %v2086 = vunpack.c.l.b16 %v2011
    %v2087 = vunpack.c.h.b16 %v2011
    %v2088 = vunpack.c.l.b16 %v2012
    %v2089 = vunpack.c.l.b16 %v2013
    %v2090 = vunpack.c.h.b16 %v2013
    %v2091 = vunpack.c.l.b16 %v2014
    %v2092 = vunpack.c.l.b16 %v2015
    %v2093 = vunpack.c.h.b16 %v2015
    %v2094 = vunpack.c.l.b16 %v2016
    %v2095 = vunpack.c.l.b16 %v2017
    %v2096 = vunpack.c.h.b16 %v2017
    %v2097 = vunpack.c.l.b16 %v2018
    %v2098 = vunpack.c.l.b16 %v2019
    %v2099 = vunpack.c.h.b16 %v2019
    %v2100 = vunpack.c.l.b16 %v2020
    %v2101 = vpack.c.b16 %v2056, %v2053
    %v2102 = vpack.c.b16 %v2057, %v2054
    %v2103 = vpack.c.b16 %v2058, %v2055
    %v2104 = vpack.c.b16 %v2062, %v2059
    %v2105 = vpack.c.b16 %v2063, %v2060
    %v2106 = vpack.c.b16 %v2064, %v2061
    %v2107 = vpack.c.b16 %v2068, %v2065
    %v2108 = vpack.c.b16 %v2069, %v2066
    %v2109 = vpack.c.b16 %v2070, %v2067
    %v2110 = vpack.c.b16 %v2074, %v2071
    %v2111 = vpack.c.b16 %v2075, %v2072
    %v2112 = vpack.c.b16 %v2076, %v2073
    %v2113 = vpack.c.b16 %v2080, %v2077
    %v2114 = vpack.c.b16 %v2081, %v2078
    %v2115 = vpack.c.b16 %v2082, %v2079
    %v2116 = vpack.c.b16 %v2086, %v2083
    %v2117 = vpack.c.b16 %v2087, %v2084
    %v2118 = vpack.c.b16 %v2088, %v2085
    %v2119 = vpack.c.b16 %v2092, %v2089
    %v2120 = vpack.c.b16 %v2093, %v2090
    %v2121 = vpack.c.b16 %v2094, %v2091
    %v2122 = vpack.c.b16 %v2098, %v2095
    %v2123 = vpack.c.b16 %v2099, %v2096
    %v2124 = vpack.c.b16 %v2100, %v2097
    %2149 = vmatprep.subr.bf16.mxu0 %v2123
    %2150 = vmatpush1.bf16.msra.mxu0 %v2122
    %2151 = vmatprep.subr.bf16.mxu0 %v2120
    %2152 = vmatpush1.bf16.msra.mxu0 %v2119
    %2153 = vmatprep.subr.bf16.mxu0 %v2117
    %2154 = vmatpush1.bf16.msra.mxu0 %v2116
    %2155 = vmatprep.subr.bf16.mxu0 %v2114
    %2156 = vmatpush1.bf16.msra.mxu0 %v2113
    %2157 = vmatprep.subr.bf16.mxu0 %v2111
    %2158 = vmatpush1.bf16.msra.mxu0 %v2110
    %2159 = vmatprep.subr.bf16.mxu0 %v2108
    %2160 = vmatpush1.bf16.msra.mxu0 %v2107
    %2161 = vmatprep.subr.bf16.mxu0 %v2105
    %2162 = vmatpush1.bf16.msra.mxu0 %v2104
    %2163 = vmatprep.subr.bf16.mxu0 %v2102
    %2164 = vmatpush1.bf16.msra.mxu0 %v2101
    %2165 = vmatprep.subr.bf16.mxu0 0
    %2166 = vmatpush2.bf16.msra.mxu0 0
    %2167 = vmatprep.subr.bf16.mxu0 0
    %2168 = vmatpush2.bf16.msra.mxu0 0
    %2169 = vmatprep.subr.bf16.mxu0 0
    %2170 = vmatpush2.bf16.msra.mxu0 0
    %2171 = vmatprep.subr.bf16.mxu0 0
    %2172 = vmatpush2.bf16.msra.mxu0 0
    %2173 = vmatprep.subr.bf16.mxu0 0
    %2174 = vmatpush2.bf16.msra.mxu0 0
    %2175 = vmatprep.subr.bf16.mxu0 0
    %2176 = vmatpush2.bf16.msra.mxu0 0
    %2177 = vmatprep.subr.bf16.mxu0 0
    %2178 = vmatpush2.bf16.msra.mxu0 0
    %2179 = vmatprep.subr.bf16.mxu0 0
    %2180 = vmatpush2.bf16.msra.mxu0 0
    %2181 = vmatprep.mubr.bf16.mxu0 0
    %2182 = vmatmul.mubr.bf16.gmra.mxu0 %v1657
    %v2183 = vpop.f32.mrf.mxu0
    %v2184 = vadd.f32 0.0, %v2183
    %v2185 = vpop.f32.mrf.mxu0
    %v2186 = vadd.f32 0.0, %v2185
    %v2187 = vpop.f32.mrf.mxu0
    %v2188 = vadd.f32 0.0, %v2187
    %v2189 = vpop.f32.mrf.mxu0
    %v2190 = vadd.f32 0.0, %v2189
    %2191 = vdwg.mxu0
    %2192 = vmatprep.subr.bf16.mxu0 0
    %2193 = vmatpush1.bf16.msra.mxu0 %v2124
    %2194 = vmatprep.subr.bf16.mxu0 0
    %2195 = vmatpush1.bf16.msra.mxu0 %v2121
    %2196 = vmatprep.subr.bf16.mxu0 0
    %2197 = vmatpush1.bf16.msra.mxu0 %v2118
    %2198 = vmatprep.subr.bf16.mxu0 0
    %2199 = vmatpush1.bf16.msra.mxu0 %v2115
    %2200 = vmatprep.subr.bf16.mxu0 0
    %2201 = vmatpush1.bf16.msra.mxu0 %v2112
    %2202 = vmatprep.subr.bf16.mxu0 0
    %2203 = vmatpush1.bf16.msra.mxu0 %v2109
    %2204 = vmatprep.subr.bf16.mxu0 0
    %2205 = vmatpush1.bf16.msra.mxu0 %v2106
    %2206 = vmatprep.subr.bf16.mxu0 0
    %2207 = vmatpush1.bf16.msra.mxu0 %v2103
    %2208 = vmatprep.subr.bf16.mxu0 0
    %2209 = vmatpush2.bf16.msra.mxu0 0
    %2210 = vmatprep.subr.bf16.mxu0 0
    %2211 = vmatpush2.bf16.msra.mxu0 0
    %2212 = vmatprep.subr.bf16.mxu0 0
    %2213 = vmatpush2.bf16.msra.mxu0 0
    %2214 = vmatprep.subr.bf16.mxu0 0
    %2215 = vmatpush2.bf16.msra.mxu0 0
    %2216 = vmatprep.subr.bf16.mxu0 0
    %2217 = vmatpush2.bf16.msra.mxu0 0
    %2218 = vmatprep.subr.bf16.mxu0 0
    %2219 = vmatpush2.bf16.msra.mxu0 0
    %2220 = vmatprep.subr.bf16.mxu0 0
    %2221 = vmatpush2.bf16.msra.mxu0 0
    %2222 = vmatprep.subr.bf16.mxu0 0
    %2223 = vmatpush2.bf16.msra.mxu0 0
    %2224 = vmatprep.mubr.bf16.mxu0 0
    %2225 = vmatmul.mubr.bf16.gmra.mxu0 %v1657
    %v2226 = vpop.f32.mrf.mxu0
    %v2227 = vadd.f32 0.0, %v2226
    %v2228 = vpop.f32.mrf.mxu0
    %v2229 = vpop.f32.mrf.mxu0
    %v2230 = vadd.f32 0.0, %v2229
    %v2231 = vpop.f32.mrf.mxu0
    %2232 = vdwg.mxu0
    %v2233 = vadd.f32 %v1983, %v2184
    %v2234 = vadd.f32 %v1986, %v2188
    %v2235 = vxor.u32 %v2233, 2147483648
    %v2236 = vxor.u32 %v2234, 2147483648
    %v2237 = vmul.f32 %v2235, 1.442695
    %v2238 = vpow.pop %v2237
    %v2239 = vmul.f32 %v2236, 1.442695
    %v2240 = vpow.pop %v2239
    %v2241 = vadd.f32 %v2238, 1.0
    %v2242 = vadd.f32 %v2240, 1.0
    %v2243 = vrcp.pop %v2241
    %v2244 = vmul.f32 1.0, %v2243
    %v2245 = vrcp.pop %v2242
    %v2246 = vmul.f32 1.0, %v2245
    %v2247 = vadd.f32 %v1984, %v2186
    %v2248 = vadd.f32 %v1987, %v2190
    %v2249 = vxor.u32 %v2247, 2147483648
    %v2250 = vxor.u32 %v2248, 2147483648
    %v2251 = vmul.f32 %v2249, 1.442695
    %v2252 = vpow.pop %v2251
    %v2253 = vmul.f32 %v2250, 1.442695
    %v2254 = vpow.pop %v2253
    %v2255 = vadd.f32 %v2252, 1.0
    %v2256 = vadd.f32 %v2254, 1.0
    %v2257 = vrcp.pop %v2255
    %v2258 = vmul.f32 1.0, %v2257
    %v2259 = vrcp.pop %v2256
    %v2260 = vmul.f32 1.0, %v2259
    %v2261 = vadd.f32 %v2227, %v105
    %v2262 = vadd.f32 %v2230, %v105
    %v2263 = vmul.f32 %v2244, %v2261
    %v2264 = vmul.f32 %v2246, %v2262
    %v2265 = vadd.f32 %v1985, %v2263
    %v2266 = vadd.f32 %v1988, %v2264
    %v2267 = vtanh.pop %v2265
    %v2268 = vtanh.pop %v2266
    %v2269 = vsub.f32 1.0, %v2258
    %v2270 = vsub.f32 1.0, %v2260
    %v2271 = vmul.f32 %v2269, %v2267
    %v2272 = vmul.f32 %v2270, %v2268
    %v2273 = vmul.f32 %v2258, %v1655
    %v2274 = vmul.f32 %v2260, %v1656
    %v2275 = vadd.f32 %v2271, %v2273
    %v2276 = vadd.f32 %v2272, %v2274
    %v2277 = vpack.c.bf16 %v2276, %v2275
    %v2279 = vunpack.c.l.b16 %v2277
    %v2280 = vunpack.c.h.b16 %v2277
    %v2281 = vpack.c.b16 %v2279, %v2279
    %v2282 = vpack.c.b16 %v2280, %v2280
    %s2285 = scalar_lea.vmem [#allocation12], 24
    %2286 = vst [vmem:[%s2285] sm:$0xf] %v2281
    %2287 = vst [vmem:[%s2285 + $0x4] sm:$0xf] %v2282
    %s2288 = scalar_lea.vmem [#allocation7], 96
    %v2289 = vld [vmem:[%s2288] sm:$0xff]
    %v2290 = vld [vmem:[%s2288 + $0x8] sm:$0xf]
    %v2291 = vld [vmem:[%s2288 + $0xc] sm:$0xff]
    %v2292 = vld [vmem:[%s2288 + $0x14] sm:$0xf]
    %v2293 = vunpack.c.l.bf16 %v2289
    %v2294 = vunpack.c.h.bf16 %v2289
    %v2295 = vunpack.c.l.bf16 %v2290
    %v2296 = vunpack.c.l.bf16 %v2291
    %v2297 = vunpack.c.h.bf16 %v2291
    %v2298 = vunpack.c.l.bf16 %v2292
    %v2299 = vld [vmem:[#allocation10] sm:$0xff]
    %v2300 = vld [vmem:[#allocation10 + $0x8] sm:$0xf]
    %v2301 = vld [vmem:[#allocation10 + $0xc] sm:$0xff]
    %v2302 = vld [vmem:[#allocation10 + $0x14] sm:$0xf]
    %v2303 = vld [vmem:[#allocation10 + $0x18] sm:$0xff]
    %v2304 = vld [vmem:[#allocation10 + $0x20] sm:$0xf]
    %v2305 = vld [vmem:[#allocation10 + $0x24] sm:$0xff]
    %v2306 = vld [vmem:[#allocation10 + $0x2c] sm:$0xf]
    %v2307 = vld [vmem:[#allocation10 + $0x30] sm:$0xff]
    %v2308 = vld [vmem:[#allocation10 + $0x38] sm:$0xf]
    %v2309 = vld [vmem:[#allocation10 + $0x3c] sm:$0xff]
    %v2310 = vld [vmem:[#allocation10 + $0x44] sm:$0xf]
    %v2311 = vld [vmem:[#allocation10 + $0x48] sm:$0xff]
    %v2312 = vld [vmem:[#allocation10 + $0x50] sm:$0xf]
    %v2313 = vld [vmem:[#allocation10 + $0x54] sm:$0xff]
    %v2314 = vld [vmem:[#allocation10 + $0x5c] sm:$0xf]
    %v2315 = vld [vmem:[#allocation10 + $0x60] sm:$0xff]
    %v2316 = vld [vmem:[#allocation10 + $0x68] sm:$0xf]
    %v2317 = vld [vmem:[#allocation10 + $0x6c] sm:$0xff]
    %v2318 = vld [vmem:[#allocation10 + $0x74] sm:$0xf]
    %v2319 = vld [vmem:[#allocation10 + $0x78] sm:$0xff]
    %v2320 = vld [vmem:[#allocation10 + $0x80] sm:$0xf]
    %v2321 = vld [vmem:[#allocation10 + $0x84] sm:$0xff]
    %v2322 = vld [vmem:[#allocation10 + $0x8c] sm:$0xf]
    %v2323 = vld [vmem:[#allocation10 + $0x90] sm:$0xff]
    %v2324 = vld [vmem:[#allocation10 + $0x98] sm:$0xf]
    %v2325 = vld [vmem:[#allocation10 + $0x9c] sm:$0xff]
    %v2326 = vld [vmem:[#allocation10 + $0xa4] sm:$0xf]
    %v2327 = vld [vmem:[#allocation10 + $0xa8] sm:$0xff]
    %v2328 = vld [vmem:[#allocation10 + $0xb0] sm:$0xf]
    %v2329 = vld [vmem:[#allocation10 + $0xb4] sm:$0xff]
    %v2330 = vld [vmem:[#allocation10 + $0xbc] sm:$0xf]
    %v2363 = vunpack.c.l.b16 %v2299
    %v2364 = vunpack.c.h.b16 %v2299
    %v2365 = vunpack.c.l.b16 %v2300
    %v2366 = vunpack.c.l.b16 %v2301
    %v2367 = vunpack.c.h.b16 %v2301
    %v2368 = vunpack.c.l.b16 %v2302
    %v2369 = vunpack.c.l.b16 %v2303
    %v2370 = vunpack.c.h.b16 %v2303
    %v2371 = vunpack.c.l.b16 %v2304
    %v2372 = vunpack.c.l.b16 %v2305
    %v2373 = vunpack.c.h.b16 %v2305
    %v2374 = vunpack.c.l.b16 %v2306
    %v2375 = vunpack.c.l.b16 %v2307
    %v2376 = vunpack.c.h.b16 %v2307
    %v2377 = vunpack.c.l.b16 %v2308
    %v2378 = vunpack.c.l.b16 %v2309
    %v2379 = vunpack.c.h.b16 %v2309
    %v2380 = vunpack.c.l.b16 %v2310
    %v2381 = vunpack.c.l.b16 %v2311
    %v2382 = vunpack.c.h.b16 %v2311
    %v2383 = vunpack.c.l.b16 %v2312
    %v2384 = vunpack.c.l.b16 %v2313
    %v2385 = vunpack.c.h.b16 %v2313
    %v2386 = vunpack.c.l.b16 %v2314
    %v2387 = vunpack.c.l.b16 %v2315
    %v2388 = vunpack.c.h.b16 %v2315
    %v2389 = vunpack.c.l.b16 %v2316
    %v2390 = vunpack.c.l.b16 %v2317
    %v2391 = vunpack.c.h.b16 %v2317
    %v2392 = vunpack.c.l.b16 %v2318
    %v2393 = vunpack.c.l.b16 %v2319
    %v2394 = vunpack.c.h.b16 %v2319
    %v2395 = vunpack.c.l.b16 %v2320
    %v2396 = vunpack.c.l.b16 %v2321
    %v2397 = vunpack.c.h.b16 %v2321
    %v2398 = vunpack.c.l.b16 %v2322
    %v2399 = vunpack.c.l.b16 %v2323
    %v2400 = vunpack.c.h.b16 %v2323
    %v2401 = vunpack.c.l.b16 %v2324
    %v2402 = vunpack.c.l.b16 %v2325
    %v2403 = vunpack.c.h.b16 %v2325
    %v2404 = vunpack.c.l.b16 %v2326
    %v2405 = vunpack.c.l.b16 %v2327
    %v2406 = vunpack.c.h.b16 %v2327
    %v2407 = vunpack.c.l.b16 %v2328
    %v2408 = vunpack.c.l.b16 %v2329
    %v2409 = vunpack.c.h.b16 %v2329
    %v2410 = vunpack.c.l.b16 %v2330
    %v2411 = vpack.c.b16 %v2366, %v2363
    %v2412 = vpack.c.b16 %v2367, %v2364
    %v2413 = vpack.c.b16 %v2368, %v2365
    %v2414 = vpack.c.b16 %v2372, %v2369
    %v2415 = vpack.c.b16 %v2373, %v2370
    %v2416 = vpack.c.b16 %v2374, %v2371
    %v2417 = vpack.c.b16 %v2378, %v2375
    %v2418 = vpack.c.b16 %v2379, %v2376
    %v2419 = vpack.c.b16 %v2380, %v2377
    %v2420 = vpack.c.b16 %v2384, %v2381
    %v2421 = vpack.c.b16 %v2385, %v2382
    %v2422 = vpack.c.b16 %v2386, %v2383
    %v2423 = vpack.c.b16 %v2390, %v2387
    %v2424 = vpack.c.b16 %v2391, %v2388
    %v2425 = vpack.c.b16 %v2392, %v2389
    %v2426 = vpack.c.b16 %v2396, %v2393
    %v2427 = vpack.c.b16 %v2397, %v2394
    %v2428 = vpack.c.b16 %v2398, %v2395
    %v2429 = vpack.c.b16 %v2402, %v2399
    %v2430 = vpack.c.b16 %v2403, %v2400
    %v2431 = vpack.c.b16 %v2404, %v2401
    %v2432 = vpack.c.b16 %v2408, %v2405
    %v2433 = vpack.c.b16 %v2409, %v2406
    %v2434 = vpack.c.b16 %v2410, %v2407
    %2459 = vmatprep.subr.bf16.mxu0 %v2433
    %2460 = vmatpush1.bf16.msra.mxu0 %v2432
    %2461 = vmatprep.subr.bf16.mxu0 %v2430
    %2462 = vmatpush1.bf16.msra.mxu0 %v2429
    %2463 = vmatprep.subr.bf16.mxu0 %v2427
    %2464 = vmatpush1.bf16.msra.mxu0 %v2426
    %2465 = vmatprep.subr.bf16.mxu0 %v2424
    %2466 = vmatpush1.bf16.msra.mxu0 %v2423
    %2467 = vmatprep.subr.bf16.mxu0 %v2421
    %2468 = vmatpush1.bf16.msra.mxu0 %v2420
    %2469 = vmatprep.subr.bf16.mxu0 %v2418
    %2470 = vmatpush1.bf16.msra.mxu0 %v2417
    %2471 = vmatprep.subr.bf16.mxu0 %v2415
    %2472 = vmatpush1.bf16.msra.mxu0 %v2414
    %2473 = vmatprep.subr.bf16.mxu0 %v2412
    %2474 = vmatpush1.bf16.msra.mxu0 %v2411
    %2475 = vmatprep.subr.bf16.mxu0 0
    %2476 = vmatpush2.bf16.msra.mxu0 0
    %2477 = vmatprep.subr.bf16.mxu0 0
    %2478 = vmatpush2.bf16.msra.mxu0 0
    %2479 = vmatprep.subr.bf16.mxu0 0
    %2480 = vmatpush2.bf16.msra.mxu0 0
    %2481 = vmatprep.subr.bf16.mxu0 0
    %2482 = vmatpush2.bf16.msra.mxu0 0
    %2483 = vmatprep.subr.bf16.mxu0 0
    %2484 = vmatpush2.bf16.msra.mxu0 0
    %2485 = vmatprep.subr.bf16.mxu0 0
    %2486 = vmatpush2.bf16.msra.mxu0 0
    %2487 = vmatprep.subr.bf16.mxu0 0
    %2488 = vmatpush2.bf16.msra.mxu0 0
    %2489 = vmatprep.subr.bf16.mxu0 0
    %2490 = vmatpush2.bf16.msra.mxu0 0
    %2491 = vmatprep.mubr.bf16.mxu0 0
    %2492 = vmatmul.mubr.bf16.gmra.mxu0 %v1967
    %v2493 = vpop.f32.mrf.mxu0
    %v2494 = vadd.f32 0.0, %v2493
    %v2495 = vpop.f32.mrf.mxu0
    %v2496 = vadd.f32 0.0, %v2495
    %v2497 = vpop.f32.mrf.mxu0
    %v2498 = vadd.f32 0.0, %v2497
    %v2499 = vpop.f32.mrf.mxu0
    %v2500 = vadd.f32 0.0, %v2499
    %2501 = vdwg.mxu0
    %2502 = vmatprep.subr.bf16.mxu0 0
    %2503 = vmatpush1.bf16.msra.mxu0 %v2434
    %2504 = vmatprep.subr.bf16.mxu0 0
    %2505 = vmatpush1.bf16.msra.mxu0 %v2431
    %2506 = vmatprep.subr.bf16.mxu0 0
    %2507 = vmatpush1.bf16.msra.mxu0 %v2428
    %2508 = vmatprep.subr.bf16.mxu0 0
    %2509 = vmatpush1.bf16.msra.mxu0 %v2425
    %2510 = vmatprep.subr.bf16.mxu0 0
    %2511 = vmatpush1.bf16.msra.mxu0 %v2422
    %2512 = vmatprep.subr.bf16.mxu0 0
    %2513 = vmatpush1.bf16.msra.mxu0 %v2419
    %2514 = vmatprep.subr.bf16.mxu0 0
    %2515 = vmatpush1.bf16.msra.mxu0 %v2416
    %2516 = vmatprep.subr.bf16.mxu0 0
    %2517 = vmatpush1.bf16.msra.mxu0 %v2413
    %2518 = vmatprep.subr.bf16.mxu0 0
    %2519 = vmatpush2.bf16.msra.mxu0 0
    %2520 = vmatprep.subr.bf16.mxu0 0
    %2521 = vmatpush2.bf16.msra.mxu0 0
    %2522 = vmatprep.subr.bf16.mxu0 0
    %2523 = vmatpush2.bf16.msra.mxu0 0
    %2524 = vmatprep.subr.bf16.mxu0 0
    %2525 = vmatpush2.bf16.msra.mxu0 0
    %2526 = vmatprep.subr.bf16.mxu0 0
    %2527 = vmatpush2.bf16.msra.mxu0 0
    %2528 = vmatprep.subr.bf16.mxu0 0
    %2529 = vmatpush2.bf16.msra.mxu0 0
    %2530 = vmatprep.subr.bf16.mxu0 0
    %2531 = vmatpush2.bf16.msra.mxu0 0
    %2532 = vmatprep.subr.bf16.mxu0 0
    %2533 = vmatpush2.bf16.msra.mxu0 0
    %2534 = vmatprep.mubr.bf16.mxu0 0
    %2535 = vmatmul.mubr.bf16.gmra.mxu0 %v1967
    %v2536 = vpop.f32.mrf.mxu0
    %v2537 = vadd.f32 0.0, %v2536
    %v2538 = vpop.f32.mrf.mxu0
    %v2539 = vpop.f32.mrf.mxu0
    %v2540 = vadd.f32 0.0, %v2539
    %v2541 = vpop.f32.mrf.mxu0
    %2542 = vdwg.mxu0
    %v2543 = vadd.f32 %v2293, %v2494
    %v2544 = vadd.f32 %v2296, %v2498
    %v2545 = vxor.u32 %v2543, 2147483648
    %v2546 = vxor.u32 %v2544, 2147483648
    %v2547 = vmul.f32 %v2545, 1.442695
    %v2548 = vpow.pop %v2547
    %v2549 = vmul.f32 %v2546, 1.442695
    %v2550 = vpow.pop %v2549
    %v2551 = vadd.f32 %v2548, 1.0
    %v2552 = vadd.f32 %v2550, 1.0
    %v2553 = vrcp.pop %v2551
    %v2554 = vmul.f32 1.0, %v2553
    %v2555 = vrcp.pop %v2552
    %v2556 = vmul.f32 1.0, %v2555
    %v2557 = vadd.f32 %v2294, %v2496
    %v2558 = vadd.f32 %v2297, %v2500
    %v2559 = vxor.u32 %v2557, 2147483648
    %v2560 = vxor.u32 %v2558, 2147483648
    %v2561 = vmul.f32 %v2559, 1.442695
    %v2562 = vpow.pop %v2561
    %v2563 = vmul.f32 %v2560, 1.442695
    %v2564 = vpow.pop %v2563
    %v2565 = vadd.f32 %v2562, 1.0
    %v2566 = vadd.f32 %v2564, 1.0
    %v2567 = vrcp.pop %v2565
    %v2568 = vmul.f32 1.0, %v2567
    %v2569 = vrcp.pop %v2566
    %v2570 = vmul.f32 1.0, %v2569
    %v2571 = vadd.f32 %v2537, %v112
    %v2572 = vadd.f32 %v2540, %v112
    %v2573 = vmul.f32 %v2554, %v2571
    %v2574 = vmul.f32 %v2556, %v2572
    %v2575 = vadd.f32 %v2295, %v2573
    %v2576 = vadd.f32 %v2298, %v2574
    %v2577 = vtanh.pop %v2575
    %v2578 = vtanh.pop %v2576
    %v2579 = vsub.f32 1.0, %v2568
    %v2580 = vsub.f32 1.0, %v2570
    %v2581 = vmul.f32 %v2579, %v2577
    %v2582 = vmul.f32 %v2580, %v2578
    %v2583 = vmul.f32 %v2568, %v1965
    %v2584 = vmul.f32 %v2570, %v1966
    %v2585 = vadd.f32 %v2581, %v2583
    %v2586 = vadd.f32 %v2582, %v2584
    %v2587 = vpack.c.bf16 %v2586, %v2585
    %v2589 = vunpack.c.l.b16 %v2587
    %v2590 = vunpack.c.h.b16 %v2587
    %v2591 = vpack.c.b16 %v2589, %v2589
    %v2592 = vpack.c.b16 %v2590, %v2590
    %s2595 = scalar_lea.vmem [#allocation13], 32
    %2596 = vst [vmem:[%s2595] sm:$0xf] %v2591
    %2597 = vst [vmem:[%s2595 + $0x4] sm:$0xf] %v2592
    %s2598 = scalar_lea.vmem [#allocation4], 96
    %v2599 = vld [vmem:[%s2598] sm:$0xff]
    %v2600 = vld [vmem:[%s2598 + $0x8] sm:$0xf]
    %v2601 = vld [vmem:[%s2598 + $0xc] sm:$0xff]
    %v2602 = vld [vmem:[%s2598 + $0x14] sm:$0xf]
    %v2603 = vunpack.c.l.bf16 %v2599
    %v2604 = vunpack.c.h.bf16 %v2599
    %v2605 = vunpack.c.l.bf16 %v2600
    %v2606 = vunpack.c.l.bf16 %v2601
    %v2607 = vunpack.c.h.bf16 %v2601
    %v2608 = vunpack.c.l.bf16 %v2602
    %v2609 = vld [vmem:[#allocation9] sm:$0xff]
    %v2610 = vld [vmem:[#allocation9 + $0x8] sm:$0xf]
    %v2611 = vld [vmem:[#allocation9 + $0xc] sm:$0xff]
    %v2612 = vld [vmem:[#allocation9 + $0x14] sm:$0xf]
    %v2613 = vld [vmem:[#allocation9 + $0x18] sm:$0xff]
    %v2614 = vld [vmem:[#allocation9 + $0x20] sm:$0xf]
    %v2615 = vld [vmem:[#allocation9 + $0x24] sm:$0xff]
    %v2616 = vld [vmem:[#allocation9 + $0x2c] sm:$0xf]
    %v2617 = vld [vmem:[#allocation9 + $0x30] sm:$0xff]
    %v2618 = vld [vmem:[#allocation9 + $0x38] sm:$0xf]
    %v2619 = vld [vmem:[#allocation9 + $0x3c] sm:$0xff]
    %v2620 = vld [vmem:[#allocation9 + $0x44] sm:$0xf]
    %v2621 = vld [vmem:[#allocation9 + $0x48] sm:$0xff]
    %v2622 = vld [vmem:[#allocation9 + $0x50] sm:$0xf]
    %v2623 = vld [vmem:[#allocation9 + $0x54] sm:$0xff]
    %v2624 = vld [vmem:[#allocation9 + $0x5c] sm:$0xf]
    %v2625 = vld [vmem:[#allocation9 + $0x60] sm:$0xff]
    %v2626 = vld [vmem:[#allocation9 + $0x68] sm:$0xf]
    %v2627 = vld [vmem:[#allocation9 + $0x6c] sm:$0xff]
    %v2628 = vld [vmem:[#allocation9 + $0x74] sm:$0xf]
    %v2629 = vld [vmem:[#allocation9 + $0x78] sm:$0xff]
    %v2630 = vld [vmem:[#allocation9 + $0x80] sm:$0xf]
    %v2631 = vld [vmem:[#allocation9 + $0x84] sm:$0xff]
    %v2632 = vld [vmem:[#allocation9 + $0x8c] sm:$0xf]
    %v2633 = vld [vmem:[#allocation9 + $0x90] sm:$0xff]
    %v2634 = vld [vmem:[#allocation9 + $0x98] sm:$0xf]
    %v2635 = vld [vmem:[#allocation9 + $0x9c] sm:$0xff]
    %v2636 = vld [vmem:[#allocation9 + $0xa4] sm:$0xf]
    %v2637 = vld [vmem:[#allocation9 + $0xa8] sm:$0xff]
    %v2638 = vld [vmem:[#allocation9 + $0xb0] sm:$0xf]
    %v2639 = vld [vmem:[#allocation9 + $0xb4] sm:$0xff]
    %v2640 = vld [vmem:[#allocation9 + $0xbc] sm:$0xf]
    %v2673 = vunpack.c.l.b16 %v2609
    %v2674 = vunpack.c.h.b16 %v2609
    %v2675 = vunpack.c.l.b16 %v2610
    %v2676 = vunpack.c.l.b16 %v2611
    %v2677 = vunpack.c.h.b16 %v2611
    %v2678 = vunpack.c.l.b16 %v2612
    %v2679 = vunpack.c.l.b16 %v2613
    %v2680 = vunpack.c.h.b16 %v2613
    %v2681 = vunpack.c.l.b16 %v2614
    %v2682 = vunpack.c.l.b16 %v2615
    %v2683 = vunpack.c.h.b16 %v2615
    %v2684 = vunpack.c.l.b16 %v2616
    %v2685 = vunpack.c.l.b16 %v2617
    %v2686 = vunpack.c.h.b16 %v2617
    %v2687 = vunpack.c.l.b16 %v2618
    %v2688 = vunpack.c.l.b16 %v2619
    %v2689 = vunpack.c.h.b16 %v2619
    %v2690 = vunpack.c.l.b16 %v2620
    %v2691 = vunpack.c.l.b16 %v2621
    %v2692 = vunpack.c.h.b16 %v2621
    %v2693 = vunpack.c.l.b16 %v2622
    %v2694 = vunpack.c.l.b16 %v2623
    %v2695 = vunpack.c.h.b16 %v2623
    %v2696 = vunpack.c.l.b16 %v2624
    %v2697 = vunpack.c.l.b16 %v2625
    %v2698 = vunpack.c.h.b16 %v2625
    %v2699 = vunpack.c.l.b16 %v2626
    %v2700 = vunpack.c.l.b16 %v2627
    %v2701 = vunpack.c.h.b16 %v2627
    %v2702 = vunpack.c.l.b16 %v2628
    %v2703 = vunpack.c.l.b16 %v2629
    %v2704 = vunpack.c.h.b16 %v2629
    %v2705 = vunpack.c.l.b16 %v2630
    %v2706 = vunpack.c.l.b16 %v2631
    %v2707 = vunpack.c.h.b16 %v2631
    %v2708 = vunpack.c.l.b16 %v2632
    %v2709 = vunpack.c.l.b16 %v2633
    %v2710 = vunpack.c.h.b16 %v2633
    %v2711 = vunpack.c.l.b16 %v2634
    %v2712 = vunpack.c.l.b16 %v2635
    %v2713 = vunpack.c.h.b16 %v2635
    %v2714 = vunpack.c.l.b16 %v2636
    %v2715 = vunpack.c.l.b16 %v2637
    %v2716 = vunpack.c.h.b16 %v2637
    %v2717 = vunpack.c.l.b16 %v2638
    %v2718 = vunpack.c.l.b16 %v2639
    %v2719 = vunpack.c.h.b16 %v2639
    %v2720 = vunpack.c.l.b16 %v2640
    %v2721 = vpack.c.b16 %v2676, %v2673
    %v2722 = vpack.c.b16 %v2677, %v2674
    %v2723 = vpack.c.b16 %v2678, %v2675
    %v2724 = vpack.c.b16 %v2682, %v2679
    %v2725 = vpack.c.b16 %v2683, %v2680
    %v2726 = vpack.c.b16 %v2684, %v2681
    %v2727 = vpack.c.b16 %v2688, %v2685
    %v2728 = vpack.c.b16 %v2689, %v2686
    %v2729 = vpack.c.b16 %v2690, %v2687
    %v2730 = vpack.c.b16 %v2694, %v2691
    %v2731 = vpack.c.b16 %v2695, %v2692
    %v2732 = vpack.c.b16 %v2696, %v2693
    %v2733 = vpack.c.b16 %v2700, %v2697
    %v2734 = vpack.c.b16 %v2701, %v2698
    %v2735 = vpack.c.b16 %v2702, %v2699
    %v2736 = vpack.c.b16 %v2706, %v2703
    %v2737 = vpack.c.b16 %v2707, %v2704
    %v2738 = vpack.c.b16 %v2708, %v2705
    %v2739 = vpack.c.b16 %v2712, %v2709
    %v2740 = vpack.c.b16 %v2713, %v2710
    %v2741 = vpack.c.b16 %v2714, %v2711
    %v2742 = vpack.c.b16 %v2718, %v2715
    %v2743 = vpack.c.b16 %v2719, %v2716
    %v2744 = vpack.c.b16 %v2720, %v2717
    %2769 = vmatprep.subr.bf16.mxu0 %v2743
    %2770 = vmatpush1.bf16.msra.mxu0 %v2742
    %2771 = vmatprep.subr.bf16.mxu0 %v2740
    %2772 = vmatpush1.bf16.msra.mxu0 %v2739
    %2773 = vmatprep.subr.bf16.mxu0 %v2737
    %2774 = vmatpush1.bf16.msra.mxu0 %v2736
    %2775 = vmatprep.subr.bf16.mxu0 %v2734
    %2776 = vmatpush1.bf16.msra.mxu0 %v2733
    %2777 = vmatprep.subr.bf16.mxu0 %v2731
    %2778 = vmatpush1.bf16.msra.mxu0 %v2730
    %2779 = vmatprep.subr.bf16.mxu0 %v2728
    %2780 = vmatpush1.bf16.msra.mxu0 %v2727
    %2781 = vmatprep.subr.bf16.mxu0 %v2725
    %2782 = vmatpush1.bf16.msra.mxu0 %v2724
    %2783 = vmatprep.subr.bf16.mxu0 %v2722
    %2784 = vmatpush1.bf16.msra.mxu0 %v2721
    %2785 = vmatprep.subr.bf16.mxu0 0
    %2786 = vmatpush2.bf16.msra.mxu0 0
    %2787 = vmatprep.subr.bf16.mxu0 0
    %2788 = vmatpush2.bf16.msra.mxu0 0
    %2789 = vmatprep.subr.bf16.mxu0 0
    %2790 = vmatpush2.bf16.msra.mxu0 0
    %2791 = vmatprep.subr.bf16.mxu0 0
    %2792 = vmatpush2.bf16.msra.mxu0 0
    %2793 = vmatprep.subr.bf16.mxu0 0
    %2794 = vmatpush2.bf16.msra.mxu0 0
    %2795 = vmatprep.subr.bf16.mxu0 0
    %2796 = vmatpush2.bf16.msra.mxu0 0
    %2797 = vmatprep.subr.bf16.mxu0 0
    %2798 = vmatpush2.bf16.msra.mxu0 0
    %2799 = vmatprep.subr.bf16.mxu0 0
    %2800 = vmatpush2.bf16.msra.mxu0 0
    %2801 = vmatprep.mubr.bf16.mxu0 0
    %2802 = vmatmul.mubr.bf16.gmra.mxu0 %v2277
    %v2803 = vpop.f32.mrf.mxu0
    %v2804 = vadd.f32 0.0, %v2803
    %v2805 = vpop.f32.mrf.mxu0
    %v2806 = vadd.f32 0.0, %v2805
    %v2807 = vpop.f32.mrf.mxu0
    %v2808 = vadd.f32 0.0, %v2807
    %v2809 = vpop.f32.mrf.mxu0
    %v2810 = vadd.f32 0.0, %v2809
    %2811 = vdwg.mxu0
    %2812 = vmatprep.subr.bf16.mxu0 0
    %2813 = vmatpush1.bf16.msra.mxu0 %v2744
    %2814 = vmatprep.subr.bf16.mxu0 0
    %2815 = vmatpush1.bf16.msra.mxu0 %v2741
    %2816 = vmatprep.subr.bf16.mxu0 0
    %2817 = vmatpush1.bf16.msra.mxu0 %v2738
    %2818 = vmatprep.subr.bf16.mxu0 0
    %2819 = vmatpush1.bf16.msra.mxu0 %v2735
    %2820 = vmatprep.subr.bf16.mxu0 0
    %2821 = vmatpush1.bf16.msra.mxu0 %v2732
    %2822 = vmatprep.subr.bf16.mxu0 0
    %2823 = vmatpush1.bf16.msra.mxu0 %v2729
    %2824 = vmatprep.subr.bf16.mxu0 0
    %2825 = vmatpush1.bf16.msra.mxu0 %v2726
    %2826 = vmatprep.subr.bf16.mxu0 0
    %2827 = vmatpush1.bf16.msra.mxu0 %v2723
    %2828 = vmatprep.subr.bf16.mxu0 0
    %2829 = vmatpush2.bf16.msra.mxu0 0
    %2830 = vmatprep.subr.bf16.mxu0 0
    %2831 = vmatpush2.bf16.msra.mxu0 0
    %2832 = vmatprep.subr.bf16.mxu0 0
    %2833 = vmatpush2.bf16.msra.mxu0 0
    %2834 = vmatprep.subr.bf16.mxu0 0
    %2835 = vmatpush2.bf16.msra.mxu0 0
    %2836 = vmatprep.subr.bf16.mxu0 0
    %2837 = vmatpush2.bf16.msra.mxu0 0
    %2838 = vmatprep.subr.bf16.mxu0 0
    %2839 = vmatpush2.bf16.msra.mxu0 0
    %2840 = vmatprep.subr.bf16.mxu0 0
    %2841 = vmatpush2.bf16.msra.mxu0 0
    %2842 = vmatprep.subr.bf16.mxu0 0
    %2843 = vmatpush2.bf16.msra.mxu0 0
    %2844 = vmatprep.mubr.bf16.mxu0 0
    %2845 = vmatmul.mubr.bf16.gmra.mxu0 %v2277
    %v2846 = vpop.f32.mrf.mxu0
    %v2847 = vadd.f32 0.0, %v2846
    %v2848 = vpop.f32.mrf.mxu0
    %v2849 = vpop.f32.mrf.mxu0
    %v2850 = vadd.f32 0.0, %v2849
    %v2851 = vpop.f32.mrf.mxu0
    %2852 = vdwg.mxu0
    %v2853 = vadd.f32 %v2603, %v2804
    %v2854 = vadd.f32 %v2606, %v2808
    %v2855 = vxor.u32 %v2853, 2147483648
    %v2856 = vxor.u32 %v2854, 2147483648
    %v2857 = vmul.f32 %v2855, 1.442695
    %v2858 = vpow.pop %v2857
    %v2859 = vmul.f32 %v2856, 1.442695
    %v2860 = vpow.pop %v2859
    %v2861 = vadd.f32 %v2858, 1.0
    %v2862 = vadd.f32 %v2860, 1.0
    %v2863 = vrcp.pop %v2861
    %v2864 = vmul.f32 1.0, %v2863
    %v2865 = vrcp.pop %v2862
    %v2866 = vmul.f32 1.0, %v2865
    %v2867 = vadd.f32 %v2604, %v2806
    %v2868 = vadd.f32 %v2607, %v2810
    %v2869 = vxor.u32 %v2867, 2147483648
    %v2870 = vxor.u32 %v2868, 2147483648
    %v2871 = vmul.f32 %v2869, 1.442695
    %v2872 = vpow.pop %v2871
    %v2873 = vmul.f32 %v2870, 1.442695
    %v2874 = vpow.pop %v2873
    %v2875 = vadd.f32 %v2872, 1.0
    %v2876 = vadd.f32 %v2874, 1.0
    %v2877 = vrcp.pop %v2875
    %v2878 = vmul.f32 1.0, %v2877
    %v2879 = vrcp.pop %v2876
    %v2880 = vmul.f32 1.0, %v2879
    %v2881 = vadd.f32 %v2847, %v105
    %v2882 = vadd.f32 %v2850, %v105
    %v2883 = vmul.f32 %v2864, %v2881
    %v2884 = vmul.f32 %v2866, %v2882
    %v2885 = vadd.f32 %v2605, %v2883
    %v2886 = vadd.f32 %v2608, %v2884
    %v2887 = vtanh.pop %v2885
    %v2888 = vtanh.pop %v2886
    %v2889 = vsub.f32 1.0, %v2878
    %v2890 = vsub.f32 1.0, %v2880
    %v2891 = vmul.f32 %v2889, %v2887
    %v2892 = vmul.f32 %v2890, %v2888
    %v2893 = vmul.f32 %v2878, %v2275
    %v2894 = vmul.f32 %v2880, %v2276
    %v2895 = vadd.f32 %v2891, %v2893
    %v2896 = vadd.f32 %v2892, %v2894
    %v2897 = vpack.c.bf16 %v2896, %v2895
    %v2899 = vunpack.c.l.b16 %v2897
    %v2900 = vunpack.c.h.b16 %v2897
    %v2901 = vpack.c.b16 %v2899, %v2899
    %v2902 = vpack.c.b16 %v2900, %v2900
    %s2905 = scalar_lea.vmem [#allocation12], 32
    %2906 = vst [vmem:[%s2905] sm:$0xf] %v2901
    %2907 = vst [vmem:[%s2905 + $0x4] sm:$0xf] %v2902
    %s2908 = scalar_lea.vmem [#allocation7], 72
    %v2909 = vld [vmem:[%s2908] sm:$0xff]
    %v2910 = vld [vmem:[%s2908 + $0x8] sm:$0xf]
    %v2911 = vld [vmem:[%s2908 + $0xc] sm:$0xff]
    %v2912 = vld [vmem:[%s2908 + $0x14] sm:$0xf]
    %v2913 = vunpack.c.l.bf16 %v2909
    %v2914 = vunpack.c.h.bf16 %v2909
    %v2915 = vunpack.c.l.bf16 %v2910
    %v2916 = vunpack.c.l.bf16 %v2911
    %v2917 = vunpack.c.h.bf16 %v2911
    %v2918 = vunpack.c.l.bf16 %v2912
    %v2919 = vld [vmem:[#allocation10] sm:$0xff]
    %v2920 = vld [vmem:[#allocation10 + $0x8] sm:$0xf]
    %v2921 = vld [vmem:[#allocation10 + $0xc] sm:$0xff]
    %v2922 = vld [vmem:[#allocation10 + $0x14] sm:$0xf]
    %v2923 = vld [vmem:[#allocation10 + $0x18] sm:$0xff]
    %v2924 = vld [vmem:[#allocation10 + $0x20] sm:$0xf]
    %v2925 = vld [vmem:[#allocation10 + $0x24] sm:$0xff]
    %v2926 = vld [vmem:[#allocation10 + $0x2c] sm:$0xf]
    %v2927 = vld [vmem:[#allocation10 + $0x30] sm:$0xff]
    %v2928 = vld [vmem:[#allocation10 + $0x38] sm:$0xf]
    %v2929 = vld [vmem:[#allocation10 + $0x3c] sm:$0xff]
    %v2930 = vld [vmem:[#allocation10 + $0x44] sm:$0xf]
    %v2931 = vld [vmem:[#allocation10 + $0x48] sm:$0xff]
    %v2932 = vld [vmem:[#allocation10 + $0x50] sm:$0xf]
    %v2933 = vld [vmem:[#allocation10 + $0x54] sm:$0xff]
    %v2934 = vld [vmem:[#allocation10 + $0x5c] sm:$0xf]
    %v2935 = vld [vmem:[#allocation10 + $0x60] sm:$0xff]
    %v2936 = vld [vmem:[#allocation10 + $0x68] sm:$0xf]
    %v2937 = vld [vmem:[#allocation10 + $0x6c] sm:$0xff]
    %v2938 = vld [vmem:[#allocation10 + $0x74] sm:$0xf]
    %v2939 = vld [vmem:[#allocation10 + $0x78] sm:$0xff]
    %v2940 = vld [vmem:[#allocation10 + $0x80] sm:$0xf]
    %v2941 = vld [vmem:[#allocation10 + $0x84] sm:$0xff]
    %v2942 = vld [vmem:[#allocation10 + $0x8c] sm:$0xf]
    %v2943 = vld [vmem:[#allocation10 + $0x90] sm:$0xff]
    %v2944 = vld [vmem:[#allocation10 + $0x98] sm:$0xf]
    %v2945 = vld [vmem:[#allocation10 + $0x9c] sm:$0xff]
    %v2946 = vld [vmem:[#allocation10 + $0xa4] sm:$0xf]
    %v2947 = vld [vmem:[#allocation10 + $0xa8] sm:$0xff]
    %v2948 = vld [vmem:[#allocation10 + $0xb0] sm:$0xf]
    %v2949 = vld [vmem:[#allocation10 + $0xb4] sm:$0xff]
    %v2950 = vld [vmem:[#allocation10 + $0xbc] sm:$0xf]
    %v2983 = vunpack.c.l.b16 %v2919
    %v2984 = vunpack.c.h.b16 %v2919
    %v2985 = vunpack.c.l.b16 %v2920
    %v2986 = vunpack.c.l.b16 %v2921
    %v2987 = vunpack.c.h.b16 %v2921
    %v2988 = vunpack.c.l.b16 %v2922
    %v2989 = vunpack.c.l.b16 %v2923
    %v2990 = vunpack.c.h.b16 %v2923
    %v2991 = vunpack.c.l.b16 %v2924
    %v2992 = vunpack.c.l.b16 %v2925
    %v2993 = vunpack.c.h.b16 %v2925
    %v2994 = vunpack.c.l.b16 %v2926
    %v2995 = vunpack.c.l.b16 %v2927
    %v2996 = vunpack.c.h.b16 %v2927
    %v2997 = vunpack.c.l.b16 %v2928
    %v2998 = vunpack.c.l.b16 %v2929
    %v2999 = vunpack.c.h.b16 %v2929
    %v3000 = vunpack.c.l.b16 %v2930
    %v3001 = vunpack.c.l.b16 %v2931
    %v3002 = vunpack.c.h.b16 %v2931
    %v3003 = vunpack.c.l.b16 %v2932
    %v3004 = vunpack.c.l.b16 %v2933
    %v3005 = vunpack.c.h.b16 %v2933
    %v3006 = vunpack.c.l.b16 %v2934
    %v3007 = vunpack.c.l.b16 %v2935
    %v3008 = vunpack.c.h.b16 %v2935
    %v3009 = vunpack.c.l.b16 %v2936
    %v3010 = vunpack.c.l.b16 %v2937
    %v3011 = vunpack.c.h.b16 %v2937
    %v3012 = vunpack.c.l.b16 %v2938
    %v3013 = vunpack.c.l.b16 %v2939
    %v3014 = vunpack.c.h.b16 %v2939
    %v3015 = vunpack.c.l.b16 %v2940
    %v3016 = vunpack.c.l.b16 %v2941
    %v3017 = vunpack.c.h.b16 %v2941
    %v3018 = vunpack.c.l.b16 %v2942
    %v3019 = vunpack.c.l.b16 %v2943
    %v3020 = vunpack.c.h.b16 %v2943
    %v3021 = vunpack.c.l.b16 %v2944
    %v3022 = vunpack.c.l.b16 %v2945
    %v3023 = vunpack.c.h.b16 %v2945
    %v3024 = vunpack.c.l.b16 %v2946
    %v3025 = vunpack.c.l.b16 %v2947
    %v3026 = vunpack.c.h.b16 %v2947
    %v3027 = vunpack.c.l.b16 %v2948
    %v3028 = vunpack.c.l.b16 %v2949
    %v3029 = vunpack.c.h.b16 %v2949
    %v3030 = vunpack.c.l.b16 %v2950
    %v3031 = vpack.c.b16 %v2986, %v2983
    %v3032 = vpack.c.b16 %v2987, %v2984
    %v3033 = vpack.c.b16 %v2988, %v2985
    %v3034 = vpack.c.b16 %v2992, %v2989
    %v3035 = vpack.c.b16 %v2993, %v2990
    %v3036 = vpack.c.b16 %v2994, %v2991
    %v3037 = vpack.c.b16 %v2998, %v2995
    %v3038 = vpack.c.b16 %v2999, %v2996
    %v3039 = vpack.c.b16 %v3000, %v2997
    %v3040 = vpack.c.b16 %v3004, %v3001
    %v3041 = vpack.c.b16 %v3005, %v3002
    %v3042 = vpack.c.b16 %v3006, %v3003
    %v3043 = vpack.c.b16 %v3010, %v3007
    %v3044 = vpack.c.b16 %v3011, %v3008
    %v3045 = vpack.c.b16 %v3012, %v3009
    %v3046 = vpack.c.b16 %v3016, %v3013
    %v3047 = vpack.c.b16 %v3017, %v3014
    %v3048 = vpack.c.b16 %v3018, %v3015
    %v3049 = vpack.c.b16 %v3022, %v3019
    %v3050 = vpack.c.b16 %v3023, %v3020
    %v3051 = vpack.c.b16 %v3024, %v3021
    %v3052 = vpack.c.b16 %v3028, %v3025
    %v3053 = vpack.c.b16 %v3029, %v3026
    %v3054 = vpack.c.b16 %v3030, %v3027
    %3079 = vmatprep.subr.bf16.mxu0 %v3053
    %3080 = vmatpush1.bf16.msra.mxu0 %v3052
    %3081 = vmatprep.subr.bf16.mxu0 %v3050
    %3082 = vmatpush1.bf16.msra.mxu0 %v3049
    %3083 = vmatprep.subr.bf16.mxu0 %v3047
    %3084 = vmatpush1.bf16.msra.mxu0 %v3046
    %3085 = vmatprep.subr.bf16.mxu0 %v3044
    %3086 = vmatpush1.bf16.msra.mxu0 %v3043
    %3087 = vmatprep.subr.bf16.mxu0 %v3041
    %3088 = vmatpush1.bf16.msra.mxu0 %v3040
    %3089 = vmatprep.subr.bf16.mxu0 %v3038
    %3090 = vmatpush1.bf16.msra.mxu0 %v3037
    %3091 = vmatprep.subr.bf16.mxu0 %v3035
    %3092 = vmatpush1.bf16.msra.mxu0 %v3034
    %3093 = vmatprep.subr.bf16.mxu0 %v3032
    %3094 = vmatpush1.bf16.msra.mxu0 %v3031
    %3095 = vmatprep.subr.bf16.mxu0 0
    %3096 = vmatpush2.bf16.msra.mxu0 0
    %3097 = vmatprep.subr.bf16.mxu0 0
    %3098 = vmatpush2.bf16.msra.mxu0 0
    %3099 = vmatprep.subr.bf16.mxu0 0
    %3100 = vmatpush2.bf16.msra.mxu0 0
    %3101 = vmatprep.subr.bf16.mxu0 0
    %3102 = vmatpush2.bf16.msra.mxu0 0
    %3103 = vmatprep.subr.bf16.mxu0 0
    %3104 = vmatpush2.bf16.msra.mxu0 0
    %3105 = vmatprep.subr.bf16.mxu0 0
    %3106 = vmatpush2.bf16.msra.mxu0 0
    %3107 = vmatprep.subr.bf16.mxu0 0
    %3108 = vmatpush2.bf16.msra.mxu0 0
    %3109 = vmatprep.subr.bf16.mxu0 0
    %3110 = vmatpush2.bf16.msra.mxu0 0
    %3111 = vmatprep.mubr.bf16.mxu0 0
    %3112 = vmatmul.mubr.bf16.gmra.mxu0 %v2587
    %v3113 = vpop.f32.mrf.mxu0
    %v3114 = vadd.f32 0.0, %v3113
    %v3115 = vpop.f32.mrf.mxu0
    %v3116 = vadd.f32 0.0, %v3115
    %v3117 = vpop.f32.mrf.mxu0
    %v3118 = vadd.f32 0.0, %v3117
    %v3119 = vpop.f32.mrf.mxu0
    %v3120 = vadd.f32 0.0, %v3119
    %3121 = vdwg.mxu0
    %3122 = vmatprep.subr.bf16.mxu0 0
    %3123 = vmatpush1.bf16.msra.mxu0 %v3054
    %3124 = vmatprep.subr.bf16.mxu0 0
    %3125 = vmatpush1.bf16.msra.mxu0 %v3051
    %3126 = vmatprep.subr.bf16.mxu0 0
    %3127 = vmatpush1.bf16.msra.mxu0 %v3048
    %3128 = vmatprep.subr.bf16.mxu0 0
    %3129 = vmatpush1.bf16.msra.mxu0 %v3045
    %3130 = vmatprep.subr.bf16.mxu0 0
    %3131 = vmatpush1.bf16.msra.mxu0 %v3042
    %3132 = vmatprep.subr.bf16.mxu0 0
    %3133 = vmatpush1.bf16.msra.mxu0 %v3039
    %3134 = vmatprep.subr.bf16.mxu0 0
    %3135 = vmatpush1.bf16.msra.mxu0 %v3036
    %3136 = vmatprep.subr.bf16.mxu0 0
    %3137 = vmatpush1.bf16.msra.mxu0 %v3033
    %3138 = vmatprep.subr.bf16.mxu0 0
    %3139 = vmatpush2.bf16.msra.mxu0 0
    %3140 = vmatprep.subr.bf16.mxu0 0
    %3141 = vmatpush2.bf16.msra.mxu0 0
    %3142 = vmatprep.subr.bf16.mxu0 0
    %3143 = vmatpush2.bf16.msra.mxu0 0
    %3144 = vmatprep.subr.bf16.mxu0 0
    %3145 = vmatpush2.bf16.msra.mxu0 0
    %3146 = vmatprep.subr.bf16.mxu0 0
    %3147 = vmatpush2.bf16.msra.mxu0 0
    %3148 = vmatprep.subr.bf16.mxu0 0
    %3149 = vmatpush2.bf16.msra.mxu0 0
    %3150 = vmatprep.subr.bf16.mxu0 0
    %3151 = vmatpush2.bf16.msra.mxu0 0
    %3152 = vmatprep.subr.bf16.mxu0 0
    %3153 = vmatpush2.bf16.msra.mxu0 0
    %3154 = vmatprep.mubr.bf16.mxu0 0
    %3155 = vmatmul.mubr.bf16.gmra.mxu0 %v2587
    %v3156 = vpop.f32.mrf.mxu0
    %v3157 = vadd.f32 0.0, %v3156
    %v3158 = vpop.f32.mrf.mxu0
    %v3159 = vpop.f32.mrf.mxu0
    %v3160 = vadd.f32 0.0, %v3159
    %v3161 = vpop.f32.mrf.mxu0
    %3162 = vdwg.mxu0
    %v3163 = vadd.f32 %v2913, %v3114
    %v3164 = vadd.f32 %v2916, %v3118
    %v3165 = vxor.u32 %v3163, 2147483648
    %v3166 = vxor.u32 %v3164, 2147483648
    %v3167 = vmul.f32 %v3165, 1.442695
    %v3168 = vpow.pop %v3167
    %v3169 = vmul.f32 %v3166, 1.442695
    %v3170 = vpow.pop %v3169
    %v3171 = vadd.f32 %v3168, 1.0
    %v3172 = vadd.f32 %v3170, 1.0
    %v3173 = vrcp.pop %v3171
    %v3174 = vmul.f32 1.0, %v3173
    %v3175 = vrcp.pop %v3172
    %v3176 = vmul.f32 1.0, %v3175
    %v3177 = vadd.f32 %v2914, %v3116
    %v3178 = vadd.f32 %v2917, %v3120
    %v3179 = vxor.u32 %v3177, 2147483648
    %v3180 = vxor.u32 %v3178, 2147483648
    %v3181 = vmul.f32 %v3179, 1.442695
    %v3182 = vpow.pop %v3181
    %v3183 = vmul.f32 %v3180, 1.442695
    %v3184 = vpow.pop %v3183
    %v3185 = vadd.f32 %v3182, 1.0
    %v3186 = vadd.f32 %v3184, 1.0
    %v3187 = vrcp.pop %v3185
    %v3188 = vmul.f32 1.0, %v3187
    %v3189 = vrcp.pop %v3186
    %v3190 = vmul.f32 1.0, %v3189
    %v3191 = vadd.f32 %v3157, %v112
    %v3192 = vadd.f32 %v3160, %v112
    %v3193 = vmul.f32 %v3174, %v3191
    %v3194 = vmul.f32 %v3176, %v3192
    %v3195 = vadd.f32 %v2915, %v3193
    %v3196 = vadd.f32 %v2918, %v3194
    %v3197 = vtanh.pop %v3195
    %v3198 = vtanh.pop %v3196
    %v3199 = vsub.f32 1.0, %v3188
    %v3200 = vsub.f32 1.0, %v3190
    %v3201 = vmul.f32 %v3199, %v3197
    %v3202 = vmul.f32 %v3200, %v3198
    %v3203 = vmul.f32 %v3188, %v2585
    %v3204 = vmul.f32 %v3190, %v2586
    %v3205 = vadd.f32 %v3201, %v3203
    %v3206 = vadd.f32 %v3202, %v3204
    %v3207 = vpack.c.bf16 %v3206, %v3205
    %v3209 = vunpack.c.l.b16 %v3207
    %v3210 = vunpack.c.h.b16 %v3207
    %v3211 = vpack.c.b16 %v3209, %v3209
    %v3212 = vpack.c.b16 %v3210, %v3210
    %s3215 = scalar_lea.vmem [#allocation13], 24
    %3216 = vst [vmem:[%s3215] sm:$0xf] %v3211
    %3217 = vst [vmem:[%s3215 + $0x4] sm:$0xf] %v3212
    %s3218 = scalar_lea.vmem [#allocation4], 120
    %v3219 = vld [vmem:[%s3218] sm:$0xff]
    %v3220 = vld [vmem:[%s3218 + $0x8] sm:$0xf]
    %v3221 = vld [vmem:[%s3218 + $0xc] sm:$0xff]
    %v3222 = vld [vmem:[%s3218 + $0x14] sm:$0xf]
    %v3223 = vunpack.c.l.bf16 %v3219
    %v3224 = vunpack.c.h.bf16 %v3219
    %v3225 = vunpack.c.l.bf16 %v3220
    %v3226 = vunpack.c.l.bf16 %v3221
    %v3227 = vunpack.c.h.bf16 %v3221
    %v3228 = vunpack.c.l.bf16 %v3222
    %v3229 = vld [vmem:[#allocation9] sm:$0xff]
    %v3230 = vld [vmem:[#allocation9 + $0x8] sm:$0xf]
    %v3231 = vld [vmem:[#allocation9 + $0xc] sm:$0xff]
    %v3232 = vld [vmem:[#allocation9 + $0x14] sm:$0xf]
    %v3233 = vld [vmem:[#allocation9 + $0x18] sm:$0xff]
    %v3234 = vld [vmem:[#allocation9 + $0x20] sm:$0xf]
    %v3235 = vld [vmem:[#allocation9 + $0x24] sm:$0xff]
    %v3236 = vld [vmem:[#allocation9 + $0x2c] sm:$0xf]
    %v3237 = vld [vmem:[#allocation9 + $0x30] sm:$0xff]
    %v3238 = vld [vmem:[#allocation9 + $0x38] sm:$0xf]
    %v3239 = vld [vmem:[#allocation9 + $0x3c] sm:$0xff]
    %v3240 = vld [vmem:[#allocation9 + $0x44] sm:$0xf]
    %v3241 = vld [vmem:[#allocation9 + $0x48] sm:$0xff]
    %v3242 = vld [vmem:[#allocation9 + $0x50] sm:$0xf]
    %v3243 = vld [vmem:[#allocation9 + $0x54] sm:$0xff]
    %v3244 = vld [vmem:[#allocation9 + $0x5c] sm:$0xf]
    %v3245 = vld [vmem:[#allocation9 + $0x60] sm:$0xff]
    %v3246 = vld [vmem:[#allocation9 + $0x68] sm:$0xf]
    %v3247 = vld [vmem:[#allocation9 + $0x6c] sm:$0xff]
    %v3248 = vld [vmem:[#allocation9 + $0x74] sm:$0xf]
    %v3249 = vld [vmem:[#allocation9 + $0x78] sm:$0xff]
    %v3250 = vld [vmem:[#allocation9 + $0x80] sm:$0xf]
    %v3251 = vld [vmem:[#allocation9 + $0x84] sm:$0xff]
    %v3252 = vld [vmem:[#allocation9 + $0x8c] sm:$0xf]
    %v3253 = vld [vmem:[#allocation9 + $0x90] sm:$0xff]
    %v3254 = vld [vmem:[#allocation9 + $0x98] sm:$0xf]
    %v3255 = vld [vmem:[#allocation9 + $0x9c] sm:$0xff]
    %v3256 = vld [vmem:[#allocation9 + $0xa4] sm:$0xf]
    %v3257 = vld [vmem:[#allocation9 + $0xa8] sm:$0xff]
    %v3258 = vld [vmem:[#allocation9 + $0xb0] sm:$0xf]
    %v3259 = vld [vmem:[#allocation9 + $0xb4] sm:$0xff]
    %v3260 = vld [vmem:[#allocation9 + $0xbc] sm:$0xf]
    %v3293 = vunpack.c.l.b16 %v3229
    %v3294 = vunpack.c.h.b16 %v3229
    %v3295 = vunpack.c.l.b16 %v3230
    %v3296 = vunpack.c.l.b16 %v3231
    %v3297 = vunpack.c.h.b16 %v3231
    %v3298 = vunpack.c.l.b16 %v3232
    %v3299 = vunpack.c.l.b16 %v3233
    %v3300 = vunpack.c.h.b16 %v3233
    %v3301 = vunpack.c.l.b16 %v3234
    %v3302 = vunpack.c.l.b16 %v3235
    %v3303 = vunpack.c.h.b16 %v3235
    %v3304 = vunpack.c.l.b16 %v3236
    %v3305 = vunpack.c.l.b16 %v3237
    %v3306 = vunpack.c.h.b16 %v3237
    %v3307 = vunpack.c.l.b16 %v3238
    %v3308 = vunpack.c.l.b16 %v3239
    %v3309 = vunpack.c.h.b16 %v3239
    %v3310 = vunpack.c.l.b16 %v3240
    %v3311 = vunpack.c.l.b16 %v3241
    %v3312 = vunpack.c.h.b16 %v3241
    %v3313 = vunpack.c.l.b16 %v3242
    %v3314 = vunpack.c.l.b16 %v3243
    %v3315 = vunpack.c.h.b16 %v3243
    %v3316 = vunpack.c.l.b16 %v3244
    %v3317 = vunpack.c.l.b16 %v3245
    %v3318 = vunpack.c.h.b16 %v3245
    %v3319 = vunpack.c.l.b16 %v3246
    %v3320 = vunpack.c.l.b16 %v3247
    %v3321 = vunpack.c.h.b16 %v3247
    %v3322 = vunpack.c.l.b16 %v3248
    %v3323 = vunpack.c.l.b16 %v3249
    %v3324 = vunpack.c.h.b16 %v3249
    %v3325 = vunpack.c.l.b16 %v3250
    %v3326 = vunpack.c.l.b16 %v3251
    %v3327 = vunpack.c.h.b16 %v3251
    %v3328 = vunpack.c.l.b16 %v3252
    %v3329 = vunpack.c.l.b16 %v3253
    %v3330 = vunpack.c.h.b16 %v3253
    %v3331 = vunpack.c.l.b16 %v3254
    %v3332 = vunpack.c.l.b16 %v3255
    %v3333 = vunpack.c.h.b16 %v3255
    %v3334 = vunpack.c.l.b16 %v3256
    %v3335 = vunpack.c.l.b16 %v3257
    %v3336 = vunpack.c.h.b16 %v3257
    %v3337 = vunpack.c.l.b16 %v3258
    %v3338 = vunpack.c.l.b16 %v3259
    %v3339 = vunpack.c.h.b16 %v3259
    %v3340 = vunpack.c.l.b16 %v3260
    %v3341 = vpack.c.b16 %v3296, %v3293
    %v3342 = vpack.c.b16 %v3297, %v3294
    %v3343 = vpack.c.b16 %v3298, %v3295
    %v3344 = vpack.c.b16 %v3302, %v3299
    %v3345 = vpack.c.b16 %v3303, %v3300
    %v3346 = vpack.c.b16 %v3304, %v3301
    %v3347 = vpack.c.b16 %v3308, %v3305
    %v3348 = vpack.c.b16 %v3309, %v3306
    %v3349 = vpack.c.b16 %v3310, %v3307
    %v3350 = vpack.c.b16 %v3314, %v3311
    %v3351 = vpack.c.b16 %v3315, %v3312
    %v3352 = vpack.c.b16 %v3316, %v3313
    %v3353 = vpack.c.b16 %v3320, %v3317
    %v3354 = vpack.c.b16 %v3321, %v3318
    %v3355 = vpack.c.b16 %v3322, %v3319
    %v3356 = vpack.c.b16 %v3326, %v3323
    %v3357 = vpack.c.b16 %v3327, %v3324
    %v3358 = vpack.c.b16 %v3328, %v3325
    %v3359 = vpack.c.b16 %v3332, %v3329
    %v3360 = vpack.c.b16 %v3333, %v3330
    %v3361 = vpack.c.b16 %v3334, %v3331
    %v3362 = vpack.c.b16 %v3338, %v3335
    %v3363 = vpack.c.b16 %v3339, %v3336
    %v3364 = vpack.c.b16 %v3340, %v3337
    %3389 = vmatprep.subr.bf16.mxu0 %v3363
    %3390 = vmatpush1.bf16.msra.mxu0 %v3362
    %3391 = vmatprep.subr.bf16.mxu0 %v3360
    %3392 = vmatpush1.bf16.msra.mxu0 %v3359
    %3393 = vmatprep.subr.bf16.mxu0 %v3357
    %3394 = vmatpush1.bf16.msra.mxu0 %v3356
    %3395 = vmatprep.subr.bf16.mxu0 %v3354
    %3396 = vmatpush1.bf16.msra.mxu0 %v3353
    %3397 = vmatprep.subr.bf16.mxu0 %v3351
    %3398 = vmatpush1.bf16.msra.mxu0 %v3350
    %3399 = vmatprep.subr.bf16.mxu0 %v3348
    %3400 = vmatpush1.bf16.msra.mxu0 %v3347
    %3401 = vmatprep.subr.bf16.mxu0 %v3345
    %3402 = vmatpush1.bf16.msra.mxu0 %v3344
    %3403 = vmatprep.subr.bf16.mxu0 %v3342
    %3404 = vmatpush1.bf16.msra.mxu0 %v3341
    %3405 = vmatprep.subr.bf16.mxu0 0
    %3406 = vmatpush2.bf16.msra.mxu0 0
    %3407 = vmatprep.subr.bf16.mxu0 0
    %3408 = vmatpush2.bf16.msra.mxu0 0
    %3409 = vmatprep.subr.bf16.mxu0 0
    %3410 = vmatpush2.bf16.msra.mxu0 0
    %3411 = vmatprep.subr.bf16.mxu0 0
    %3412 = vmatpush2.bf16.msra.mxu0 0
    %3413 = vmatprep.subr.bf16.mxu0 0
    %3414 = vmatpush2.bf16.msra.mxu0 0
    %3415 = vmatprep.subr.bf16.mxu0 0
    %3416 = vmatpush2.bf16.msra.mxu0 0
    %3417 = vmatprep.subr.bf16.mxu0 0
    %3418 = vmatpush2.bf16.msra.mxu0 0
    %3419 = vmatprep.subr.bf16.mxu0 0
    %3420 = vmatpush2.bf16.msra.mxu0 0
    %3421 = vmatprep.mubr.bf16.mxu0 0
    %3422 = vmatmul.mubr.bf16.gmra.mxu0 %v2897
    %v3423 = vpop.f32.mrf.mxu0
    %v3424 = vadd.f32 0.0, %v3423
    %v3425 = vpop.f32.mrf.mxu0
    %v3426 = vadd.f32 0.0, %v3425
    %v3427 = vpop.f32.mrf.mxu0
    %v3428 = vadd.f32 0.0, %v3427
    %v3429 = vpop.f32.mrf.mxu0
    %v3430 = vadd.f32 0.0, %v3429
    %3431 = vdwg.mxu0
    %3432 = vmatprep.subr.bf16.mxu0 0
    %3433 = vmatpush1.bf16.msra.mxu0 %v3364
    %3434 = vmatprep.subr.bf16.mxu0 0
    %3435 = vmatpush1.bf16.msra.mxu0 %v3361
    %3436 = vmatprep.subr.bf16.mxu0 0
    %3437 = vmatpush1.bf16.msra.mxu0 %v3358
    %3438 = vmatprep.subr.bf16.mxu0 0
    %3439 = vmatpush1.bf16.msra.mxu0 %v3355
    %3440 = vmatprep.subr.bf16.mxu0 0
    %3441 = vmatpush1.bf16.msra.mxu0 %v3352
    %3442 = vmatprep.subr.bf16.mxu0 0
    %3443 = vmatpush1.bf16.msra.mxu0 %v3349
    %3444 = vmatprep.subr.bf16.mxu0 0
    %3445 = vmatpush1.bf16.msra.mxu0 %v3346
    %3446 = vmatprep.subr.bf16.mxu0 0
    %3447 = vmatpush1.bf16.msra.mxu0 %v3343
    %3448 = vmatprep.subr.bf16.mxu0 0
    %3449 = vmatpush2.bf16.msra.mxu0 0
    %3450 = vmatprep.subr.bf16.mxu0 0
    %3451 = vmatpush2.bf16.msra.mxu0 0
    %3452 = vmatprep.subr.bf16.mxu0 0
    %3453 = vmatpush2.bf16.msra.mxu0 0
    %3454 = vmatprep.subr.bf16.mxu0 0
    %3455 = vmatpush2.bf16.msra.mxu0 0
    %3456 = vmatprep.subr.bf16.mxu0 0
    %3457 = vmatpush2.bf16.msra.mxu0 0
    %3458 = vmatprep.subr.bf16.mxu0 0
    %3459 = vmatpush2.bf16.msra.mxu0 0
    %3460 = vmatprep.subr.bf16.mxu0 0
    %3461 = vmatpush2.bf16.msra.mxu0 0
    %3462 = vmatprep.subr.bf16.mxu0 0
    %3463 = vmatpush2.bf16.msra.mxu0 0
    %3464 = vmatprep.mubr.bf16.mxu0 0
    %3465 = vmatmul.mubr.bf16.gmra.mxu0 %v2897
    %v3466 = vpop.f32.mrf.mxu0
    %v3467 = vadd.f32 0.0, %v3466
    %v3468 = vpop.f32.mrf.mxu0
    %v3469 = vpop.f32.mrf.mxu0
    %v3470 = vadd.f32 0.0, %v3469
    %v3471 = vpop.f32.mrf.mxu0
    %3472 = vdwg.mxu0
    %v3473 = vadd.f32 %v3223, %v3424
    %v3474 = vadd.f32 %v3226, %v3428
    %v3475 = vxor.u32 %v3473, 2147483648
    %v3476 = vxor.u32 %v3474, 2147483648
    %v3477 = vmul.f32 %v3475, 1.442695
    %v3478 = vpow.pop %v3477
    %v3479 = vmul.f32 %v3476, 1.442695
    %v3480 = vpow.pop %v3479
    %v3481 = vadd.f32 %v3478, 1.0
    %v3482 = vadd.f32 %v3480, 1.0
    %v3483 = vrcp.pop %v3481
    %v3484 = vmul.f32 1.0, %v3483
    %v3485 = vrcp.pop %v3482
    %v3486 = vmul.f32 1.0, %v3485
    %v3487 = vadd.f32 %v3224, %v3426
    %v3488 = vadd.f32 %v3227, %v3430
    %v3489 = vxor.u32 %v3487, 2147483648
    %v3490 = vxor.u32 %v3488, 2147483648
    %v3491 = vmul.f32 %v3489, 1.442695
    %v3492 = vpow.pop %v3491
    %v3493 = vmul.f32 %v3490, 1.442695
    %v3494 = vpow.pop %v3493
    %v3495 = vadd.f32 %v3492, 1.0
    %v3496 = vadd.f32 %v3494, 1.0
    %v3497 = vrcp.pop %v3495
    %v3498 = vmul.f32 1.0, %v3497
    %v3499 = vrcp.pop %v3496
    %v3500 = vmul.f32 1.0, %v3499
    %v3501 = vadd.f32 %v3467, %v105
    %v3502 = vadd.f32 %v3470, %v105
    %v3503 = vmul.f32 %v3484, %v3501
    %v3504 = vmul.f32 %v3486, %v3502
    %v3505 = vadd.f32 %v3225, %v3503
    %v3506 = vadd.f32 %v3228, %v3504
    %v3507 = vtanh.pop %v3505
    %v3508 = vtanh.pop %v3506
    %v3509 = vsub.f32 1.0, %v3498
    %v3510 = vsub.f32 1.0, %v3500
    %v3511 = vmul.f32 %v3509, %v3507
    %v3512 = vmul.f32 %v3510, %v3508
    %v3513 = vmul.f32 %v3498, %v2895
    %v3514 = vmul.f32 %v3500, %v2896
    %v3515 = vadd.f32 %v3511, %v3513
    %v3516 = vadd.f32 %v3512, %v3514
    %v3517 = vpack.c.bf16 %v3516, %v3515
    %v3519 = vunpack.c.l.b16 %v3517
    %v3520 = vunpack.c.h.b16 %v3517
    %v3521 = vpack.c.b16 %v3519, %v3519
    %v3522 = vpack.c.b16 %v3520, %v3520
    %s3525 = scalar_lea.vmem [#allocation12], 40
    %3526 = vst [vmem:[%s3525] sm:$0xf] %v3521
    %3527 = vst [vmem:[%s3525 + $0x4] sm:$0xf] %v3522
    %s3528 = scalar_lea.vmem [#allocation7], 48
    %v3529 = vld [vmem:[%s3528] sm:$0xff]
    %v3530 = vld [vmem:[%s3528 + $0x8] sm:$0xf]
    %v3531 = vld [vmem:[%s3528 + $0xc] sm:$0xff]
    %v3532 = vld [vmem:[%s3528 + $0x14] sm:$0xf]
    %v3533 = vunpack.c.l.bf16 %v3529
    %v3534 = vunpack.c.h.bf16 %v3529
    %v3535 = vunpack.c.l.bf16 %v3530
    %v3536 = vunpack.c.l.bf16 %v3531
    %v3537 = vunpack.c.h.bf16 %v3531
    %v3538 = vunpack.c.l.bf16 %v3532
    %v3539 = vld [vmem:[#allocation10] sm:$0xff]
    %v3540 = vld [vmem:[#allocation10 + $0x8] sm:$0xf]
    %v3541 = vld [vmem:[#allocation10 + $0xc] sm:$0xff]
    %v3542 = vld [vmem:[#allocation10 + $0x14] sm:$0xf]
    %v3543 = vld [vmem:[#allocation10 + $0x18] sm:$0xff]
    %v3544 = vld [vmem:[#allocation10 + $0x20] sm:$0xf]
    %v3545 = vld [vmem:[#allocation10 + $0x24] sm:$0xff]
    %v3546 = vld [vmem:[#allocation10 + $0x2c] sm:$0xf]
    %v3547 = vld [vmem:[#allocation10 + $0x30] sm:$0xff]
    %v3548 = vld [vmem:[#allocation10 + $0x38] sm:$0xf]
    %v3549 = vld [vmem:[#allocation10 + $0x3c] sm:$0xff]
    %v3550 = vld [vmem:[#allocation10 + $0x44] sm:$0xf]
    %v3551 = vld [vmem:[#allocation10 + $0x48] sm:$0xff]
    %v3552 = vld [vmem:[#allocation10 + $0x50] sm:$0xf]
    %v3553 = vld [vmem:[#allocation10 + $0x54] sm:$0xff]
    %v3554 = vld [vmem:[#allocation10 + $0x5c] sm:$0xf]
    %v3555 = vld [vmem:[#allocation10 + $0x60] sm:$0xff]
    %v3556 = vld [vmem:[#allocation10 + $0x68] sm:$0xf]
    %v3557 = vld [vmem:[#allocation10 + $0x6c] sm:$0xff]
    %v3558 = vld [vmem:[#allocation10 + $0x74] sm:$0xf]
    %v3559 = vld [vmem:[#allocation10 + $0x78] sm:$0xff]
    %v3560 = vld [vmem:[#allocation10 + $0x80] sm:$0xf]
    %v3561 = vld [vmem:[#allocation10 + $0x84] sm:$0xff]
    %v3562 = vld [vmem:[#allocation10 + $0x8c] sm:$0xf]
    %v3563 = vld [vmem:[#allocation10 + $0x90] sm:$0xff]
    %v3564 = vld [vmem:[#allocation10 + $0x98] sm:$0xf]
    %v3565 = vld [vmem:[#allocation10 + $0x9c] sm:$0xff]
    %v3566 = vld [vmem:[#allocation10 + $0xa4] sm:$0xf]
    %v3567 = vld [vmem:[#allocation10 + $0xa8] sm:$0xff]
    %v3568 = vld [vmem:[#allocation10 + $0xb0] sm:$0xf]
    %v3569 = vld [vmem:[#allocation10 + $0xb4] sm:$0xff]
    %v3570 = vld [vmem:[#allocation10 + $0xbc] sm:$0xf]
    %v3603 = vunpack.c.l.b16 %v3539
    %v3604 = vunpack.c.h.b16 %v3539
    %v3605 = vunpack.c.l.b16 %v3540
    %v3606 = vunpack.c.l.b16 %v3541
    %v3607 = vunpack.c.h.b16 %v3541
    %v3608 = vunpack.c.l.b16 %v3542
    %v3609 = vunpack.c.l.b16 %v3543
    %v3610 = vunpack.c.h.b16 %v3543
    %v3611 = vunpack.c.l.b16 %v3544
    %v3612 = vunpack.c.l.b16 %v3545
    %v3613 = vunpack.c.h.b16 %v3545
    %v3614 = vunpack.c.l.b16 %v3546
    %v3615 = vunpack.c.l.b16 %v3547
    %v3616 = vunpack.c.h.b16 %v3547
    %v3617 = vunpack.c.l.b16 %v3548
    %v3618 = vunpack.c.l.b16 %v3549
    %v3619 = vunpack.c.h.b16 %v3549
    %v3620 = vunpack.c.l.b16 %v3550
    %v3621 = vunpack.c.l.b16 %v3551
    %v3622 = vunpack.c.h.b16 %v3551
    %v3623 = vunpack.c.l.b16 %v3552
    %v3624 = vunpack.c.l.b16 %v3553
    %v3625 = vunpack.c.h.b16 %v3553
    %v3626 = vunpack.c.l.b16 %v3554
    %v3627 = vunpack.c.l.b16 %v3555
    %v3628 = vunpack.c.h.b16 %v3555
    %v3629 = vunpack.c.l.b16 %v3556
    %v3630 = vunpack.c.l.b16 %v3557
    %v3631 = vunpack.c.h.b16 %v3557
    %v3632 = vunpack.c.l.b16 %v3558
    %v3633 = vunpack.c.l.b16 %v3559
    %v3634 = vunpack.c.h.b16 %v3559
    %v3635 = vunpack.c.l.b16 %v3560
    %v3636 = vunpack.c.l.b16 %v3561
    %v3637 = vunpack.c.h.b16 %v3561
    %v3638 = vunpack.c.l.b16 %v3562
    %v3639 = vunpack.c.l.b16 %v3563
    %v3640 = vunpack.c.h.b16 %v3563
    %v3641 = vunpack.c.l.b16 %v3564
    %v3642 = vunpack.c.l.b16 %v3565
    %v3643 = vunpack.c.h.b16 %v3565
    %v3644 = vunpack.c.l.b16 %v3566
    %v3645 = vunpack.c.l.b16 %v3567
    %v3646 = vunpack.c.h.b16 %v3567
    %v3647 = vunpack.c.l.b16 %v3568
    %v3648 = vunpack.c.l.b16 %v3569
    %v3649 = vunpack.c.h.b16 %v3569
    %v3650 = vunpack.c.l.b16 %v3570
    %v3651 = vpack.c.b16 %v3606, %v3603
    %v3652 = vpack.c.b16 %v3607, %v3604
    %v3653 = vpack.c.b16 %v3608, %v3605
    %v3654 = vpack.c.b16 %v3612, %v3609
    %v3655 = vpack.c.b16 %v3613, %v3610
    %v3656 = vpack.c.b16 %v3614, %v3611
    %v3657 = vpack.c.b16 %v3618, %v3615
    %v3658 = vpack.c.b16 %v3619, %v3616
    %v3659 = vpack.c.b16 %v3620, %v3617
    %v3660 = vpack.c.b16 %v3624, %v3621
    %v3661 = vpack.c.b16 %v3625, %v3622
    %v3662 = vpack.c.b16 %v3626, %v3623
    %v3663 = vpack.c.b16 %v3630, %v3627
    %v3664 = vpack.c.b16 %v3631, %v3628
    %v3665 = vpack.c.b16 %v3632, %v3629
    %v3666 = vpack.c.b16 %v3636, %v3633
    %v3667 = vpack.c.b16 %v3637, %v3634
    %v3668 = vpack.c.b16 %v3638, %v3635
    %v3669 = vpack.c.b16 %v3642, %v3639
    %v3670 = vpack.c.b16 %v3643, %v3640
    %v3671 = vpack.c.b16 %v3644, %v3641
    %v3672 = vpack.c.b16 %v3648, %v3645
    %v3673 = vpack.c.b16 %v3649, %v3646
    %v3674 = vpack.c.b16 %v3650, %v3647
    %3699 = vmatprep.subr.bf16.mxu0 %v3673
    %3700 = vmatpush1.bf16.msra.mxu0 %v3672
    %3701 = vmatprep.subr.bf16.mxu0 %v3670
    %3702 = vmatpush1.bf16.msra.mxu0 %v3669
    %3703 = vmatprep.subr.bf16.mxu0 %v3667
    %3704 = vmatpush1.bf16.msra.mxu0 %v3666
    %3705 = vmatprep.subr.bf16.mxu0 %v3664
    %3706 = vmatpush1.bf16.msra.mxu0 %v3663
    %3707 = vmatprep.subr.bf16.mxu0 %v3661
    %3708 = vmatpush1.bf16.msra.mxu0 %v3660
    %3709 = vmatprep.subr.bf16.mxu0 %v3658
    %3710 = vmatpush1.bf16.msra.mxu0 %v3657
    %3711 = vmatprep.subr.bf16.mxu0 %v3655
    %3712 = vmatpush1.bf16.msra.mxu0 %v3654
    %3713 = vmatprep.subr.bf16.mxu0 %v3652
    %3714 = vmatpush1.bf16.msra.mxu0 %v3651
    %3715 = vmatprep.subr.bf16.mxu0 0
    %3716 = vmatpush2.bf16.msra.mxu0 0
    %3717 = vmatprep.subr.bf16.mxu0 0
    %3718 = vmatpush2.bf16.msra.mxu0 0
    %3719 = vmatprep.subr.bf16.mxu0 0
    %3720 = vmatpush2.bf16.msra.mxu0 0
    %3721 = vmatprep.subr.bf16.mxu0 0
    %3722 = vmatpush2.bf16.msra.mxu0 0
    %3723 = vmatprep.subr.bf16.mxu0 0
    %3724 = vmatpush2.bf16.msra.mxu0 0
    %3725 = vmatprep.subr.bf16.mxu0 0
    %3726 = vmatpush2.bf16.msra.mxu0 0
    %3727 = vmatprep.subr.bf16.mxu0 0
    %3728 = vmatpush2.bf16.msra.mxu0 0
    %3729 = vmatprep.subr.bf16.mxu0 0
    %3730 = vmatpush2.bf16.msra.mxu0 0
    %3731 = vmatprep.mubr.bf16.mxu0 0
    %3732 = vmatmul.mubr.bf16.gmra.mxu0 %v3207
    %v3733 = vpop.f32.mrf.mxu0
    %v3734 = vadd.f32 0.0, %v3733
    %v3735 = vpop.f32.mrf.mxu0
    %v3736 = vadd.f32 0.0, %v3735
    %v3737 = vpop.f32.mrf.mxu0
    %v3738 = vadd.f32 0.0, %v3737
    %v3739 = vpop.f32.mrf.mxu0
    %v3740 = vadd.f32 0.0, %v3739
    %3741 = vdwg.mxu0
    %3742 = vmatprep.subr.bf16.mxu0 0
    %3743 = vmatpush1.bf16.msra.mxu0 %v3674
    %3744 = vmatprep.subr.bf16.mxu0 0
    %3745 = vmatpush1.bf16.msra.mxu0 %v3671
    %3746 = vmatprep.subr.bf16.mxu0 0
    %3747 = vmatpush1.bf16.msra.mxu0 %v3668
    %3748 = vmatprep.subr.bf16.mxu0 0
    %3749 = vmatpush1.bf16.msra.mxu0 %v3665
    %3750 = vmatprep.subr.bf16.mxu0 0
    %3751 = vmatpush1.bf16.msra.mxu0 %v3662
    %3752 = vmatprep.subr.bf16.mxu0 0
    %3753 = vmatpush1.bf16.msra.mxu0 %v3659
    %3754 = vmatprep.subr.bf16.mxu0 0
    %3755 = vmatpush1.bf16.msra.mxu0 %v3656
    %3756 = vmatprep.subr.bf16.mxu0 0
    %3757 = vmatpush1.bf16.msra.mxu0 %v3653
    %3758 = vmatprep.subr.bf16.mxu0 0
    %3759 = vmatpush2.bf16.msra.mxu0 0
    %3760 = vmatprep.subr.bf16.mxu0 0
    %3761 = vmatpush2.bf16.msra.mxu0 0
    %3762 = vmatprep.subr.bf16.mxu0 0
    %3763 = vmatpush2.bf16.msra.mxu0 0
    %3764 = vmatprep.subr.bf16.mxu0 0
    %3765 = vmatpush2.bf16.msra.mxu0 0
    %3766 = vmatprep.subr.bf16.mxu0 0
    %3767 = vmatpush2.bf16.msra.mxu0 0
    %3768 = vmatprep.subr.bf16.mxu0 0
    %3769 = vmatpush2.bf16.msra.mxu0 0
    %3770 = vmatprep.subr.bf16.mxu0 0
    %3771 = vmatpush2.bf16.msra.mxu0 0
    %3772 = vmatprep.subr.bf16.mxu0 0
    %3773 = vmatpush2.bf16.msra.mxu0 0
    %3774 = vmatprep.mubr.bf16.mxu0 0
    %3775 = vmatmul.mubr.bf16.gmra.mxu0 %v3207
    %v3776 = vpop.f32.mrf.mxu0
    %v3777 = vadd.f32 0.0, %v3776
    %v3778 = vpop.f32.mrf.mxu0
    %v3779 = vpop.f32.mrf.mxu0
    %v3780 = vadd.f32 0.0, %v3779
    %v3781 = vpop.f32.mrf.mxu0
    %3782 = vdwg.mxu0
    %v3783 = vadd.f32 %v3533, %v3734
    %v3784 = vadd.f32 %v3536, %v3738
    %v3785 = vxor.u32 %v3783, 2147483648
    %v3786 = vxor.u32 %v3784, 2147483648
    %v3787 = vmul.f32 %v3785, 1.442695
    %v3788 = vpow.pop %v3787
    %v3789 = vmul.f32 %v3786, 1.442695
    %v3790 = vpow.pop %v3789
    %v3791 = vadd.f32 %v3788, 1.0
    %v3792 = vadd.f32 %v3790, 1.0
    %v3793 = vrcp.pop %v3791
    %v3794 = vmul.f32 1.0, %v3793
    %v3795 = vrcp.pop %v3792
    %v3796 = vmul.f32 1.0, %v3795
    %v3797 = vadd.f32 %v3534, %v3736
    %v3798 = vadd.f32 %v3537, %v3740
    %v3799 = vxor.u32 %v3797, 2147483648
    %v3800 = vxor.u32 %v3798, 2147483648
    %v3801 = vmul.f32 %v3799, 1.442695
    %v3802 = vpow.pop %v3801
    %v3803 = vmul.f32 %v3800, 1.442695
    %v3804 = vpow.pop %v3803
    %v3805 = vadd.f32 %v3802, 1.0
    %v3806 = vadd.f32 %v3804, 1.0
    %v3807 = vrcp.pop %v3805
    %v3808 = vmul.f32 1.0, %v3807
    %v3809 = vrcp.pop %v3806
    %v3810 = vmul.f32 1.0, %v3809
    %v3811 = vadd.f32 %v3777, %v112
    %v3812 = vadd.f32 %v3780, %v112
    %v3813 = vmul.f32 %v3794, %v3811
    %v3814 = vmul.f32 %v3796, %v3812
    %v3815 = vadd.f32 %v3535, %v3813
    %v3816 = vadd.f32 %v3538, %v3814
    %v3817 = vtanh.pop %v3815
    %v3818 = vtanh.pop %v3816
    %v3819 = vsub.f32 1.0, %v3808
    %v3820 = vsub.f32 1.0, %v3810
    %v3821 = vmul.f32 %v3819, %v3817
    %v3822 = vmul.f32 %v3820, %v3818
    %v3823 = vmul.f32 %v3808, %v3205
    %v3824 = vmul.f32 %v3810, %v3206
    %v3825 = vadd.f32 %v3821, %v3823
    %v3826 = vadd.f32 %v3822, %v3824
    %v3827 = vpack.c.bf16 %v3826, %v3825
    %v3829 = vunpack.c.l.b16 %v3827
    %v3830 = vunpack.c.h.b16 %v3827
    %v3831 = vpack.c.b16 %v3829, %v3829
    %v3832 = vpack.c.b16 %v3830, %v3830
    %s3835 = scalar_lea.vmem [#allocation13], 16
    %3836 = vst [vmem:[%s3835] sm:$0xf] %v3831
    %3837 = vst [vmem:[%s3835 + $0x4] sm:$0xf] %v3832
    %s3838 = scalar_lea.vmem [#allocation4], 144
    %v3839 = vld [vmem:[%s3838] sm:$0xff]
    %v3840 = vld [vmem:[%s3838 + $0x8] sm:$0xf]
    %v3841 = vld [vmem:[%s3838 + $0xc] sm:$0xff]
    %v3842 = vld [vmem:[%s3838 + $0x14] sm:$0xf]
    %v3843 = vunpack.c.l.bf16 %v3839
    %v3844 = vunpack.c.h.bf16 %v3839
    %v3845 = vunpack.c.l.bf16 %v3840
    %v3846 = vunpack.c.l.bf16 %v3841
    %v3847 = vunpack.c.h.bf16 %v3841
    %v3848 = vunpack.c.l.bf16 %v3842
    %v3849 = vld [vmem:[#allocation9] sm:$0xff]
    %v3850 = vld [vmem:[#allocation9 + $0x8] sm:$0xf]
    %v3851 = vld [vmem:[#allocation9 + $0xc] sm:$0xff]
    %v3852 = vld [vmem:[#allocation9 + $0x14] sm:$0xf]
    %v3853 = vld [vmem:[#allocation9 + $0x18] sm:$0xff]
    %v3854 = vld [vmem:[#allocation9 + $0x20] sm:$0xf]
    %v3855 = vld [vmem:[#allocation9 + $0x24] sm:$0xff]
    %v3856 = vld [vmem:[#allocation9 + $0x2c] sm:$0xf]
    %v3857 = vld [vmem:[#allocation9 + $0x30] sm:$0xff]
    %v3858 = vld [vmem:[#allocation9 + $0x38] sm:$0xf]
    %v3859 = vld [vmem:[#allocation9 + $0x3c] sm:$0xff]
    %v3860 = vld [vmem:[#allocation9 + $0x44] sm:$0xf]
    %v3861 = vld [vmem:[#allocation9 + $0x48] sm:$0xff]
    %v3862 = vld [vmem:[#allocation9 + $0x50] sm:$0xf]
    %v3863 = vld [vmem:[#allocation9 + $0x54] sm:$0xff]
    %v3864 = vld [vmem:[#allocation9 + $0x5c] sm:$0xf]
    %v3865 = vld [vmem:[#allocation9 + $0x60] sm:$0xff]
    %v3866 = vld [vmem:[#allocation9 + $0x68] sm:$0xf]
    %v3867 = vld [vmem:[#allocation9 + $0x6c] sm:$0xff]
    %v3868 = vld [vmem:[#allocation9 + $0x74] sm:$0xf]
    %v3869 = vld [vmem:[#allocation9 + $0x78] sm:$0xff]
    %v3870 = vld [vmem:[#allocation9 + $0x80] sm:$0xf]
    %v3871 = vld [vmem:[#allocation9 + $0x84] sm:$0xff]
    %v3872 = vld [vmem:[#allocation9 + $0x8c] sm:$0xf]
    %v3873 = vld [vmem:[#allocation9 + $0x90] sm:$0xff]
    %v3874 = vld [vmem:[#allocation9 + $0x98] sm:$0xf]
    %v3875 = vld [vmem:[#allocation9 + $0x9c] sm:$0xff]
    %v3876 = vld [vmem:[#allocation9 + $0xa4] sm:$0xf]
    %v3877 = vld [vmem:[#allocation9 + $0xa8] sm:$0xff]
    %v3878 = vld [vmem:[#allocation9 + $0xb0] sm:$0xf]
    %v3879 = vld [vmem:[#allocation9 + $0xb4] sm:$0xff]
    %v3880 = vld [vmem:[#allocation9 + $0xbc] sm:$0xf]
    %v3913 = vunpack.c.l.b16 %v3849
    %v3914 = vunpack.c.h.b16 %v3849
    %v3915 = vunpack.c.l.b16 %v3850
    %v3916 = vunpack.c.l.b16 %v3851
    %v3917 = vunpack.c.h.b16 %v3851
    %v3918 = vunpack.c.l.b16 %v3852
    %v3919 = vunpack.c.l.b16 %v3853
    %v3920 = vunpack.c.h.b16 %v3853
    %v3921 = vunpack.c.l.b16 %v3854
    %v3922 = vunpack.c.l.b16 %v3855
    %v3923 = vunpack.c.h.b16 %v3855
    %v3924 = vunpack.c.l.b16 %v3856
    %v3925 = vunpack.c.l.b16 %v3857
    %v3926 = vunpack.c.h.b16 %v3857
    %v3927 = vunpack.c.l.b16 %v3858
    %v3928 = vunpack.c.l.b16 %v3859
    %v3929 = vunpack.c.h.b16 %v3859
    %v3930 = vunpack.c.l.b16 %v3860
    %v3931 = vunpack.c.l.b16 %v3861
    %v3932 = vunpack.c.h.b16 %v3861
    %v3933 = vunpack.c.l.b16 %v3862
    %v3934 = vunpack.c.l.b16 %v3863
    %v3935 = vunpack.c.h.b16 %v3863
    %v3936 = vunpack.c.l.b16 %v3864
    %v3937 = vunpack.c.l.b16 %v3865
    %v3938 = vunpack.c.h.b16 %v3865
    %v3939 = vunpack.c.l.b16 %v3866
    %v3940 = vunpack.c.l.b16 %v3867
    %v3941 = vunpack.c.h.b16 %v3867
    %v3942 = vunpack.c.l.b16 %v3868
    %v3943 = vunpack.c.l.b16 %v3869
    %v3944 = vunpack.c.h.b16 %v3869
    %v3945 = vunpack.c.l.b16 %v3870
    %v3946 = vunpack.c.l.b16 %v3871
    %v3947 = vunpack.c.h.b16 %v3871
    %v3948 = vunpack.c.l.b16 %v3872
    %v3949 = vunpack.c.l.b16 %v3873
    %v3950 = vunpack.c.h.b16 %v3873
    %v3951 = vunpack.c.l.b16 %v3874
    %v3952 = vunpack.c.l.b16 %v3875
    %v3953 = vunpack.c.h.b16 %v3875
    %v3954 = vunpack.c.l.b16 %v3876
    %v3955 = vunpack.c.l.b16 %v3877
    %v3956 = vunpack.c.h.b16 %v3877
    %v3957 = vunpack.c.l.b16 %v3878
    %v3958 = vunpack.c.l.b16 %v3879
    %v3959 = vunpack.c.h.b16 %v3879
    %v3960 = vunpack.c.l.b16 %v3880
    %v3961 = vpack.c.b16 %v3916, %v3913
    %v3962 = vpack.c.b16 %v3917, %v3914
    %v3963 = vpack.c.b16 %v3918, %v3915
    %v3964 = vpack.c.b16 %v3922, %v3919
    %v3965 = vpack.c.b16 %v3923, %v3920
    %v3966 = vpack.c.b16 %v3924, %v3921
    %v3967 = vpack.c.b16 %v3928, %v3925
    %v3968 = vpack.c.b16 %v3929, %v3926
    %v3969 = vpack.c.b16 %v3930, %v3927
    %v3970 = vpack.c.b16 %v3934, %v3931
    %v3971 = vpack.c.b16 %v3935, %v3932
    %v3972 = vpack.c.b16 %v3936, %v3933
    %v3973 = vpack.c.b16 %v3940, %v3937
    %v3974 = vpack.c.b16 %v3941, %v3938
    %v3975 = vpack.c.b16 %v3942, %v3939
    %v3976 = vpack.c.b16 %v3946, %v3943
    %v3977 = vpack.c.b16 %v3947, %v3944
    %v3978 = vpack.c.b16 %v3948, %v3945
    %v3979 = vpack.c.b16 %v3952, %v3949
    %v3980 = vpack.c.b16 %v3953, %v3950
    %v3981 = vpack.c.b16 %v3954, %v3951
    %v3982 = vpack.c.b16 %v3958, %v3955
    %v3983 = vpack.c.b16 %v3959, %v3956
    %v3984 = vpack.c.b16 %v3960, %v3957
    %4009 = vmatprep.subr.bf16.mxu0 %v3983
    %4010 = vmatpush1.bf16.msra.mxu0 %v3982
    %4011 = vmatprep.subr.bf16.mxu0 %v3980
    %4012 = vmatpush1.bf16.msra.mxu0 %v3979
    %4013 = vmatprep.subr.bf16.mxu0 %v3977
    %4014 = vmatpush1.bf16.msra.mxu0 %v3976
    %4015 = vmatprep.subr.bf16.mxu0 %v3974
    %4016 = vmatpush1.bf16.msra.mxu0 %v3973
    %4017 = vmatprep.subr.bf16.mxu0 %v3971
    %4018 = vmatpush1.bf16.msra.mxu0 %v3970
    %4019 = vmatprep.subr.bf16.mxu0 %v3968
    %4020 = vmatpush1.bf16.msra.mxu0 %v3967
    %4021 = vmatprep.subr.bf16.mxu0 %v3965
    %4022 = vmatpush1.bf16.msra.mxu0 %v3964
    %4023 = vmatprep.subr.bf16.mxu0 %v3962
    %4024 = vmatpush1.bf16.msra.mxu0 %v3961
    %4025 = vmatprep.subr.bf16.mxu0 0
    %4026 = vmatpush2.bf16.msra.mxu0 0
    %4027 = vmatprep.subr.bf16.mxu0 0
    %4028 = vmatpush2.bf16.msra.mxu0 0
    %4029 = vmatprep.subr.bf16.mxu0 0
    %4030 = vmatpush2.bf16.msra.mxu0 0
    %4031 = vmatprep.subr.bf16.mxu0 0
    %4032 = vmatpush2.bf16.msra.mxu0 0
    %4033 = vmatprep.subr.bf16.mxu0 0
    %4034 = vmatpush2.bf16.msra.mxu0 0
    %4035 = vmatprep.subr.bf16.mxu0 0
    %4036 = vmatpush2.bf16.msra.mxu0 0
    %4037 = vmatprep.subr.bf16.mxu0 0
    %4038 = vmatpush2.bf16.msra.mxu0 0
    %4039 = vmatprep.subr.bf16.mxu0 0
    %4040 = vmatpush2.bf16.msra.mxu0 0
    %4041 = vmatprep.mubr.bf16.mxu0 0
    %4042 = vmatmul.mubr.bf16.gmra.mxu0 %v3517
    %v4043 = vpop.f32.mrf.mxu0
    %v4044 = vadd.f32 0.0, %v4043
    %v4045 = vpop.f32.mrf.mxu0
    %v4046 = vadd.f32 0.0, %v4045
    %v4047 = vpop.f32.mrf.mxu0
    %v4048 = vadd.f32 0.0, %v4047
    %v4049 = vpop.f32.mrf.mxu0
    %v4050 = vadd.f32 0.0, %v4049
    %4051 = vdwg.mxu0
    %4052 = vmatprep.subr.bf16.mxu0 0
    %4053 = vmatpush1.bf16.msra.mxu0 %v3984
    %4054 = vmatprep.subr.bf16.mxu0 0
    %4055 = vmatpush1.bf16.msra.mxu0 %v3981
    %4056 = vmatprep.subr.bf16.mxu0 0
    %4057 = vmatpush1.bf16.msra.mxu0 %v3978
    %4058 = vmatprep.subr.bf16.mxu0 0
    %4059 = vmatpush1.bf16.msra.mxu0 %v3975
    %4060 = vmatprep.subr.bf16.mxu0 0
    %4061 = vmatpush1.bf16.msra.mxu0 %v3972
    %4062 = vmatprep.subr.bf16.mxu0 0
    %4063 = vmatpush1.bf16.msra.mxu0 %v3969
    %4064 = vmatprep.subr.bf16.mxu0 0
    %4065 = vmatpush1.bf16.msra.mxu0 %v3966
    %4066 = vmatprep.subr.bf16.mxu0 0
    %4067 = vmatpush1.bf16.msra.mxu0 %v3963
    %4068 = vmatprep.subr.bf16.mxu0 0
    %4069 = vmatpush2.bf16.msra.mxu0 0
    %4070 = vmatprep.subr.bf16.mxu0 0
    %4071 = vmatpush2.bf16.msra.mxu0 0
    %4072 = vmatprep.subr.bf16.mxu0 0
    %4073 = vmatpush2.bf16.msra.mxu0 0
    %4074 = vmatprep.subr.bf16.mxu0 0
    %4075 = vmatpush2.bf16.msra.mxu0 0
    %4076 = vmatprep.subr.bf16.mxu0 0
    %4077 = vmatpush2.bf16.msra.mxu0 0
    %4078 = vmatprep.subr.bf16.mxu0 0
    %4079 = vmatpush2.bf16.msra.mxu0 0
    %4080 = vmatprep.subr.bf16.mxu0 0
    %4081 = vmatpush2.bf16.msra.mxu0 0
    %4082 = vmatprep.subr.bf16.mxu0 0
    %4083 = vmatpush2.bf16.msra.mxu0 0
    %4084 = vmatprep.mubr.bf16.mxu0 0
    %4085 = vmatmul.mubr.bf16.gmra.mxu0 %v3517
    %v4086 = vpop.f32.mrf.mxu0
    %v4087 = vadd.f32 0.0, %v4086
    %v4088 = vpop.f32.mrf.mxu0
    %v4089 = vpop.f32.mrf.mxu0
    %v4090 = vadd.f32 0.0, %v4089
    %v4091 = vpop.f32.mrf.mxu0
    %4092 = vdwg.mxu0
    %v4093 = vadd.f32 %v3843, %v4044
    %v4094 = vadd.f32 %v3846, %v4048
    %v4095 = vxor.u32 %v4093, 2147483648
    %v4096 = vxor.u32 %v4094, 2147483648
    %v4097 = vmul.f32 %v4095, 1.442695
    %v4098 = vpow.pop %v4097
    %v4099 = vmul.f32 %v4096, 1.442695
    %v4100 = vpow.pop %v4099
    %v4101 = vadd.f32 %v4098, 1.0
    %v4102 = vadd.f32 %v4100, 1.0
    %v4103 = vrcp.pop %v4101
    %v4104 = vmul.f32 1.0, %v4103
    %v4105 = vrcp.pop %v4102
    %v4106 = vmul.f32 1.0, %v4105
    %v4107 = vadd.f32 %v3844, %v4046
    %v4108 = vadd.f32 %v3847, %v4050
    %v4109 = vxor.u32 %v4107, 2147483648
    %v4110 = vxor.u32 %v4108, 2147483648
    %v4111 = vmul.f32 %v4109, 1.442695
    %v4112 = vpow.pop %v4111
    %v4113 = vmul.f32 %v4110, 1.442695
    %v4114 = vpow.pop %v4113
    %v4115 = vadd.f32 %v4112, 1.0
    %v4116 = vadd.f32 %v4114, 1.0
    %v4117 = vrcp.pop %v4115
    %v4118 = vmul.f32 1.0, %v4117
    %v4119 = vrcp.pop %v4116
    %v4120 = vmul.f32 1.0, %v4119
    %v4121 = vadd.f32 %v4087, %v105
    %v4122 = vadd.f32 %v4090, %v105
    %v4123 = vmul.f32 %v4104, %v4121
    %v4124 = vmul.f32 %v4106, %v4122
    %v4125 = vadd.f32 %v3845, %v4123
    %v4126 = vadd.f32 %v3848, %v4124
    %v4127 = vtanh.pop %v4125
    %v4128 = vtanh.pop %v4126
    %v4129 = vsub.f32 1.0, %v4118
    %v4130 = vsub.f32 1.0, %v4120
    %v4131 = vmul.f32 %v4129, %v4127
    %v4132 = vmul.f32 %v4130, %v4128
    %v4133 = vmul.f32 %v4118, %v3515
    %v4134 = vmul.f32 %v4120, %v3516
    %v4135 = vadd.f32 %v4131, %v4133
    %v4136 = vadd.f32 %v4132, %v4134
    %v4137 = vpack.c.bf16 %v4136, %v4135
    %v4139 = vunpack.c.l.b16 %v4137
    %v4140 = vunpack.c.h.b16 %v4137
    %v4141 = vpack.c.b16 %v4139, %v4139
    %v4142 = vpack.c.b16 %v4140, %v4140
    %s4145 = scalar_lea.vmem [#allocation12], 48
    %4146 = vst [vmem:[%s4145] sm:$0xf] %v4141
    %4147 = vst [vmem:[%s4145 + $0x4] sm:$0xf] %v4142
    %s4148 = scalar_lea.vmem [#allocation7], 24
    %v4149 = vld [vmem:[%s4148] sm:$0xff]
    %v4150 = vld [vmem:[%s4148 + $0x8] sm:$0xf]
    %v4151 = vld [vmem:[%s4148 + $0xc] sm:$0xff]
    %v4152 = vld [vmem:[%s4148 + $0x14] sm:$0xf]
    %v4153 = vunpack.c.l.bf16 %v4149
    %v4154 = vunpack.c.h.bf16 %v4149
    %v4155 = vunpack.c.l.bf16 %v4150
    %v4156 = vunpack.c.l.bf16 %v4151
    %v4157 = vunpack.c.h.bf16 %v4151
    %v4158 = vunpack.c.l.bf16 %v4152
    %v4159 = vld [vmem:[#allocation10] sm:$0xff]
    %v4160 = vld [vmem:[#allocation10 + $0x8] sm:$0xf]
    %v4161 = vld [vmem:[#allocation10 + $0xc] sm:$0xff]
    %v4162 = vld [vmem:[#allocation10 + $0x14] sm:$0xf]
    %v4163 = vld [vmem:[#allocation10 + $0x18] sm:$0xff]
    %v4164 = vld [vmem:[#allocation10 + $0x20] sm:$0xf]
    %v4165 = vld [vmem:[#allocation10 + $0x24] sm:$0xff]
    %v4166 = vld [vmem:[#allocation10 + $0x2c] sm:$0xf]
    %v4167 = vld [vmem:[#allocation10 + $0x30] sm:$0xff]
    %v4168 = vld [vmem:[#allocation10 + $0x38] sm:$0xf]
    %v4169 = vld [vmem:[#allocation10 + $0x3c] sm:$0xff]
    %v4170 = vld [vmem:[#allocation10 + $0x44] sm:$0xf]
    %v4171 = vld [vmem:[#allocation10 + $0x48] sm:$0xff]
    %v4172 = vld [vmem:[#allocation10 + $0x50] sm:$0xf]
    %v4173 = vld [vmem:[#allocation10 + $0x54] sm:$0xff]
    %v4174 = vld [vmem:[#allocation10 + $0x5c] sm:$0xf]
    %v4175 = vld [vmem:[#allocation10 + $0x60] sm:$0xff]
    %v4176 = vld [vmem:[#allocation10 + $0x68] sm:$0xf]
    %v4177 = vld [vmem:[#allocation10 + $0x6c] sm:$0xff]
    %v4178 = vld [vmem:[#allocation10 + $0x74] sm:$0xf]
    %v4179 = vld [vmem:[#allocation10 + $0x78] sm:$0xff]
    %v4180 = vld [vmem:[#allocation10 + $0x80] sm:$0xf]
    %v4181 = vld [vmem:[#allocation10 + $0x84] sm:$0xff]
    %v4182 = vld [vmem:[#allocation10 + $0x8c] sm:$0xf]
    %v4183 = vld [vmem:[#allocation10 + $0x90] sm:$0xff]
    %v4184 = vld [vmem:[#allocation10 + $0x98] sm:$0xf]
    %v4185 = vld [vmem:[#allocation10 + $0x9c] sm:$0xff]
    %v4186 = vld [vmem:[#allocation10 + $0xa4] sm:$0xf]
    %v4187 = vld [vmem:[#allocation10 + $0xa8] sm:$0xff]
    %v4188 = vld [vmem:[#allocation10 + $0xb0] sm:$0xf]
    %v4189 = vld [vmem:[#allocation10 + $0xb4] sm:$0xff]
    %v4190 = vld [vmem:[#allocation10 + $0xbc] sm:$0xf]
    %v4223 = vunpack.c.l.b16 %v4159
    %v4224 = vunpack.c.h.b16 %v4159
    %v4225 = vunpack.c.l.b16 %v4160
    %v4226 = vunpack.c.l.b16 %v4161
    %v4227 = vunpack.c.h.b16 %v4161
    %v4228 = vunpack.c.l.b16 %v4162
    %v4229 = vunpack.c.l.b16 %v4163
    %v4230 = vunpack.c.h.b16 %v4163
    %v4231 = vunpack.c.l.b16 %v4164
    %v4232 = vunpack.c.l.b16 %v4165
    %v4233 = vunpack.c.h.b16 %v4165
    %v4234 = vunpack.c.l.b16 %v4166
    %v4235 = vunpack.c.l.b16 %v4167
    %v4236 = vunpack.c.h.b16 %v4167
    %v4237 = vunpack.c.l.b16 %v4168
    %v4238 = vunpack.c.l.b16 %v4169
    %v4239 = vunpack.c.h.b16 %v4169
    %v4240 = vunpack.c.l.b16 %v4170
    %v4241 = vunpack.c.l.b16 %v4171
    %v4242 = vunpack.c.h.b16 %v4171
    %v4243 = vunpack.c.l.b16 %v4172
    %v4244 = vunpack.c.l.b16 %v4173
    %v4245 = vunpack.c.h.b16 %v4173
    %v4246 = vunpack.c.l.b16 %v4174
    %v4247 = vunpack.c.l.b16 %v4175
    %v4248 = vunpack.c.h.b16 %v4175
    %v4249 = vunpack.c.l.b16 %v4176
    %v4250 = vunpack.c.l.b16 %v4177
    %v4251 = vunpack.c.h.b16 %v4177
    %v4252 = vunpack.c.l.b16 %v4178
    %v4253 = vunpack.c.l.b16 %v4179
    %v4254 = vunpack.c.h.b16 %v4179
    %v4255 = vunpack.c.l.b16 %v4180
    %v4256 = vunpack.c.l.b16 %v4181
    %v4257 = vunpack.c.h.b16 %v4181
    %v4258 = vunpack.c.l.b16 %v4182
    %v4259 = vunpack.c.l.b16 %v4183
    %v4260 = vunpack.c.h.b16 %v4183
    %v4261 = vunpack.c.l.b16 %v4184
    %v4262 = vunpack.c.l.b16 %v4185
    %v4263 = vunpack.c.h.b16 %v4185
    %v4264 = vunpack.c.l.b16 %v4186
    %v4265 = vunpack.c.l.b16 %v4187
    %v4266 = vunpack.c.h.b16 %v4187
    %v4267 = vunpack.c.l.b16 %v4188
    %v4268 = vunpack.c.l.b16 %v4189
    %v4269 = vunpack.c.h.b16 %v4189
    %v4270 = vunpack.c.l.b16 %v4190
    %v4271 = vpack.c.b16 %v4226, %v4223
    %v4272 = vpack.c.b16 %v4227, %v4224
    %v4273 = vpack.c.b16 %v4228, %v4225
    %v4274 = vpack.c.b16 %v4232, %v4229
    %v4275 = vpack.c.b16 %v4233, %v4230
    %v4276 = vpack.c.b16 %v4234, %v4231
    %v4277 = vpack.c.b16 %v4238, %v4235
    %v4278 = vpack.c.b16 %v4239, %v4236
    %v4279 = vpack.c.b16 %v4240, %v4237
    %v4280 = vpack.c.b16 %v4244, %v4241
    %v4281 = vpack.c.b16 %v4245, %v4242
    %v4282 = vpack.c.b16 %v4246, %v4243
    %v4283 = vpack.c.b16 %v4250, %v4247
    %v4284 = vpack.c.b16 %v4251, %v4248
    %v4285 = vpack.c.b16 %v4252, %v4249
    %v4286 = vpack.c.b16 %v4256, %v4253
    %v4287 = vpack.c.b16 %v4257, %v4254
    %v4288 = vpack.c.b16 %v4258, %v4255
    %v4289 = vpack.c.b16 %v4262, %v4259
    %v4290 = vpack.c.b16 %v4263, %v4260
    %v4291 = vpack.c.b16 %v4264, %v4261
    %v4292 = vpack.c.b16 %v4268, %v4265
    %v4293 = vpack.c.b16 %v4269, %v4266
    %v4294 = vpack.c.b16 %v4270, %v4267
    %4319 = vmatprep.subr.bf16.mxu0 %v4293
    %4320 = vmatpush1.bf16.msra.mxu0 %v4292
    %4321 = vmatprep.subr.bf16.mxu0 %v4290
    %4322 = vmatpush1.bf16.msra.mxu0 %v4289
    %4323 = vmatprep.subr.bf16.mxu0 %v4287
    %4324 = vmatpush1.bf16.msra.mxu0 %v4286
    %4325 = vmatprep.subr.bf16.mxu0 %v4284
    %4326 = vmatpush1.bf16.msra.mxu0 %v4283
    %4327 = vmatprep.subr.bf16.mxu0 %v4281
    %4328 = vmatpush1.bf16.msra.mxu0 %v4280
    %4329 = vmatprep.subr.bf16.mxu0 %v4278
    %4330 = vmatpush1.bf16.msra.mxu0 %v4277
    %4331 = vmatprep.subr.bf16.mxu0 %v4275
    %4332 = vmatpush1.bf16.msra.mxu0 %v4274
    %4333 = vmatprep.subr.bf16.mxu0 %v4272
    %4334 = vmatpush1.bf16.msra.mxu0 %v4271
    %4335 = vmatprep.subr.bf16.mxu0 0
    %4336 = vmatpush2.bf16.msra.mxu0 0
    %4337 = vmatprep.subr.bf16.mxu0 0
    %4338 = vmatpush2.bf16.msra.mxu0 0
    %4339 = vmatprep.subr.bf16.mxu0 0
    %4340 = vmatpush2.bf16.msra.mxu0 0
    %4341 = vmatprep.subr.bf16.mxu0 0
    %4342 = vmatpush2.bf16.msra.mxu0 0
    %4343 = vmatprep.subr.bf16.mxu0 0
    %4344 = vmatpush2.bf16.msra.mxu0 0
    %4345 = vmatprep.subr.bf16.mxu0 0
    %4346 = vmatpush2.bf16.msra.mxu0 0
    %4347 = vmatprep.subr.bf16.mxu0 0
    %4348 = vmatpush2.bf16.msra.mxu0 0
    %4349 = vmatprep.subr.bf16.mxu0 0
    %4350 = vmatpush2.bf16.msra.mxu0 0
    %4351 = vmatprep.mubr.bf16.mxu0 0
    %4352 = vmatmul.mubr.bf16.gmra.mxu0 %v3827
    %v4353 = vpop.f32.mrf.mxu0
    %v4354 = vadd.f32 0.0, %v4353
    %v4355 = vpop.f32.mrf.mxu0
    %v4356 = vadd.f32 0.0, %v4355
    %v4357 = vpop.f32.mrf.mxu0
    %v4358 = vadd.f32 0.0, %v4357
    %v4359 = vpop.f32.mrf.mxu0
    %v4360 = vadd.f32 0.0, %v4359
    %4361 = vdwg.mxu0
    %4362 = vmatprep.subr.bf16.mxu0 0
    %4363 = vmatpush1.bf16.msra.mxu0 %v4294
    %4364 = vmatprep.subr.bf16.mxu0 0
    %4365 = vmatpush1.bf16.msra.mxu0 %v4291
    %4366 = vmatprep.subr.bf16.mxu0 0
    %4367 = vmatpush1.bf16.msra.mxu0 %v4288
    %4368 = vmatprep.subr.bf16.mxu0 0
    %4369 = vmatpush1.bf16.msra.mxu0 %v4285
    %4370 = vmatprep.subr.bf16.mxu0 0
    %4371 = vmatpush1.bf16.msra.mxu0 %v4282
    %4372 = vmatprep.subr.bf16.mxu0 0
    %4373 = vmatpush1.bf16.msra.mxu0 %v4279
    %4374 = vmatprep.subr.bf16.mxu0 0
    %4375 = vmatpush1.bf16.msra.mxu0 %v4276
    %4376 = vmatprep.subr.bf16.mxu0 0
    %4377 = vmatpush1.bf16.msra.mxu0 %v4273
    %4378 = vmatprep.subr.bf16.mxu0 0
    %4379 = vmatpush2.bf16.msra.mxu0 0
    %4380 = vmatprep.subr.bf16.mxu0 0
    %4381 = vmatpush2.bf16.msra.mxu0 0
    %4382 = vmatprep.subr.bf16.mxu0 0
    %4383 = vmatpush2.bf16.msra.mxu0 0
    %4384 = vmatprep.subr.bf16.mxu0 0
    %4385 = vmatpush2.bf16.msra.mxu0 0
    %4386 = vmatprep.subr.bf16.mxu0 0
    %4387 = vmatpush2.bf16.msra.mxu0 0
    %4388 = vmatprep.subr.bf16.mxu0 0
    %4389 = vmatpush2.bf16.msra.mxu0 0
    %4390 = vmatprep.subr.bf16.mxu0 0
    %4391 = vmatpush2.bf16.msra.mxu0 0
    %4392 = vmatprep.subr.bf16.mxu0 0
    %4393 = vmatpush2.bf16.msra.mxu0 0
    %4394 = vmatprep.mubr.bf16.mxu0 0
    %4395 = vmatmul.mubr.bf16.gmra.mxu0 %v3827
    %v4396 = vpop.f32.mrf.mxu0
    %v4397 = vadd.f32 0.0, %v4396
    %v4398 = vpop.f32.mrf.mxu0
    %v4399 = vpop.f32.mrf.mxu0
    %v4400 = vadd.f32 0.0, %v4399
    %v4401 = vpop.f32.mrf.mxu0
    %4402 = vdwg.mxu0
    %v4403 = vadd.f32 %v4153, %v4354
    %v4404 = vadd.f32 %v4156, %v4358
    %v4405 = vxor.u32 %v4403, 2147483648
    %v4406 = vxor.u32 %v4404, 2147483648
    %v4407 = vmul.f32 %v4405, 1.442695
    %v4408 = vpow.pop %v4407
    %v4409 = vmul.f32 %v4406, 1.442695
    %v4410 = vpow.pop %v4409
    %v4411 = vadd.f32 %v4408, 1.0
    %v4412 = vadd.f32 %v4410, 1.0
    %v4413 = vrcp.pop %v4411
    %v4414 = vmul.f32 1.0, %v4413
    %v4415 = vrcp.pop %v4412
    %v4416 = vmul.f32 1.0, %v4415
    %v4417 = vadd.f32 %v4154, %v4356
    %v4418 = vadd.f32 %v4157, %v4360
    %v4419 = vxor.u32 %v4417, 2147483648
    %v4420 = vxor.u32 %v4418, 2147483648
    %v4421 = vmul.f32 %v4419, 1.442695
    %v4422 = vpow.pop %v4421
    %v4423 = vmul.f32 %v4420, 1.442695
    %v4424 = vpow.pop %v4423
    %v4425 = vadd.f32 %v4422, 1.0
    %v4426 = vadd.f32 %v4424, 1.0
    %v4427 = vrcp.pop %v4425
    %v4428 = vmul.f32 1.0, %v4427
    %v4429 = vrcp.pop %v4426
    %v4430 = vmul.f32 1.0, %v4429
    %v4431 = vadd.f32 %v4397, %v112
    %v4432 = vadd.f32 %v4400, %v112
    %v4433 = vmul.f32 %v4414, %v4431
    %v4434 = vmul.f32 %v4416, %v4432
    %v4435 = vadd.f32 %v4155, %v4433
    %v4436 = vadd.f32 %v4158, %v4434
    %v4437 = vtanh.pop %v4435
    %v4438 = vtanh.pop %v4436
    %v4439 = vsub.f32 1.0, %v4428
    %v4440 = vsub.f32 1.0, %v4430
    %v4441 = vmul.f32 %v4439, %v4437
    %v4442 = vmul.f32 %v4440, %v4438
    %v4443 = vmul.f32 %v4428, %v3825
    %v4444 = vmul.f32 %v4430, %v3826
    %v4445 = vadd.f32 %v4441, %v4443
    %v4446 = vadd.f32 %v4442, %v4444
    %v4447 = vpack.c.bf16 %v4446, %v4445
    %v4449 = vunpack.c.l.b16 %v4447
    %v4450 = vunpack.c.h.b16 %v4447
    %v4451 = vpack.c.b16 %v4449, %v4449
    %v4452 = vpack.c.b16 %v4450, %v4450
    %s4455 = scalar_lea.vmem [#allocation13], 8
    %4456 = vst [vmem:[%s4455] sm:$0xf] %v4451
    %4457 = vst [vmem:[%s4455 + $0x4] sm:$0xf] %v4452
    %s4458 = scalar_lea.vmem [#allocation4], 168
    %v4459 = vld [vmem:[%s4458] sm:$0xff]
    %v4460 = vld [vmem:[%s4458 + $0x8] sm:$0xf]
    %v4461 = vld [vmem:[%s4458 + $0xc] sm:$0xff]
    %v4462 = vld [vmem:[%s4458 + $0x14] sm:$0xf]
    %v4463 = vunpack.c.l.bf16 %v4459
    %v4464 = vunpack.c.h.bf16 %v4459
    %v4465 = vunpack.c.l.bf16 %v4460
    %v4466 = vunpack.c.l.bf16 %v4461
    %v4467 = vunpack.c.h.bf16 %v4461
    %v4468 = vunpack.c.l.bf16 %v4462
    %v4469 = vld [vmem:[#allocation9] sm:$0xff]
    %v4470 = vld [vmem:[#allocation9 + $0x8] sm:$0xf]
    %v4471 = vld [vmem:[#allocation9 + $0xc] sm:$0xff]
    %v4472 = vld [vmem:[#allocation9 + $0x14] sm:$0xf]
    %v4473 = vld [vmem:[#allocation9 + $0x18] sm:$0xff]
    %v4474 = vld [vmem:[#allocation9 + $0x20] sm:$0xf]
    %v4475 = vld [vmem:[#allocation9 + $0x24] sm:$0xff]
    %v4476 = vld [vmem:[#allocation9 + $0x2c] sm:$0xf]
    %v4477 = vld [vmem:[#allocation9 + $0x30] sm:$0xff]
    %v4478 = vld [vmem:[#allocation9 + $0x38] sm:$0xf]
    %v4479 = vld [vmem:[#allocation9 + $0x3c] sm:$0xff]
    %v4480 = vld [vmem:[#allocation9 + $0x44] sm:$0xf]
    %v4481 = vld [vmem:[#allocation9 + $0x48] sm:$0xff]
    %v4482 = vld [vmem:[#allocation9 + $0x50] sm:$0xf]
    %v4483 = vld [vmem:[#allocation9 + $0x54] sm:$0xff]
    %v4484 = vld [vmem:[#allocation9 + $0x5c] sm:$0xf]
    %v4485 = vld [vmem:[#allocation9 + $0x60] sm:$0xff]
    %v4486 = vld [vmem:[#allocation9 + $0x68] sm:$0xf]
    %v4487 = vld [vmem:[#allocation9 + $0x6c] sm:$0xff]
    %v4488 = vld [vmem:[#allocation9 + $0x74] sm:$0xf]
    %v4489 = vld [vmem:[#allocation9 + $0x78] sm:$0xff]
    %v4490 = vld [vmem:[#allocation9 + $0x80] sm:$0xf]
    %v4491 = vld [vmem:[#allocation9 + $0x84] sm:$0xff]
    %v4492 = vld [vmem:[#allocation9 + $0x8c] sm:$0xf]
    %v4493 = vld [vmem:[#allocation9 + $0x90] sm:$0xff]
    %v4494 = vld [vmem:[#allocation9 + $0x98] sm:$0xf]
    %v4495 = vld [vmem:[#allocation9 + $0x9c] sm:$0xff]
    %v4496 = vld [vmem:[#allocation9 + $0xa4] sm:$0xf]
    %v4497 = vld [vmem:[#allocation9 + $0xa8] sm:$0xff]
    %v4498 = vld [vmem:[#allocation9 + $0xb0] sm:$0xf]
    %v4499 = vld [vmem:[#allocation9 + $0xb4] sm:$0xff]
    %v4500 = vld [vmem:[#allocation9 + $0xbc] sm:$0xf]
    %v4533 = vunpack.c.l.b16 %v4469
    %v4534 = vunpack.c.h.b16 %v4469
    %v4535 = vunpack.c.l.b16 %v4470
    %v4536 = vunpack.c.l.b16 %v4471
    %v4537 = vunpack.c.h.b16 %v4471
    %v4538 = vunpack.c.l.b16 %v4472
    %v4539 = vunpack.c.l.b16 %v4473
    %v4540 = vunpack.c.h.b16 %v4473
    %v4541 = vunpack.c.l.b16 %v4474
    %v4542 = vunpack.c.l.b16 %v4475
    %v4543 = vunpack.c.h.b16 %v4475
    %v4544 = vunpack.c.l.b16 %v4476
    %v4545 = vunpack.c.l.b16 %v4477
    %v4546 = vunpack.c.h.b16 %v4477
    %v4547 = vunpack.c.l.b16 %v4478
    %v4548 = vunpack.c.l.b16 %v4479
    %v4549 = vunpack.c.h.b16 %v4479
    %v4550 = vunpack.c.l.b16 %v4480
    %v4551 = vunpack.c.l.b16 %v4481
    %v4552 = vunpack.c.h.b16 %v4481
    %v4553 = vunpack.c.l.b16 %v4482
    %v4554 = vunpack.c.l.b16 %v4483
    %v4555 = vunpack.c.h.b16 %v4483
    %v4556 = vunpack.c.l.b16 %v4484
    %v4557 = vunpack.c.l.b16 %v4485
    %v4558 = vunpack.c.h.b16 %v4485
    %v4559 = vunpack.c.l.b16 %v4486
    %v4560 = vunpack.c.l.b16 %v4487
    %v4561 = vunpack.c.h.b16 %v4487
    %v4562 = vunpack.c.l.b16 %v4488
    %v4563 = vunpack.c.l.b16 %v4489
    %v4564 = vunpack.c.h.b16 %v4489
    %v4565 = vunpack.c.l.b16 %v4490
    %v4566 = vunpack.c.l.b16 %v4491
    %v4567 = vunpack.c.h.b16 %v4491
    %v4568 = vunpack.c.l.b16 %v4492
    %v4569 = vunpack.c.l.b16 %v4493
    %v4570 = vunpack.c.h.b16 %v4493
    %v4571 = vunpack.c.l.b16 %v4494
    %v4572 = vunpack.c.l.b16 %v4495
    %v4573 = vunpack.c.h.b16 %v4495
    %v4574 = vunpack.c.l.b16 %v4496
    %v4575 = vunpack.c.l.b16 %v4497
    %v4576 = vunpack.c.h.b16 %v4497
    %v4577 = vunpack.c.l.b16 %v4498
    %v4578 = vunpack.c.l.b16 %v4499
    %v4579 = vunpack.c.h.b16 %v4499
    %v4580 = vunpack.c.l.b16 %v4500
    %v4581 = vpack.c.b16 %v4536, %v4533
    %v4582 = vpack.c.b16 %v4537, %v4534
    %v4583 = vpack.c.b16 %v4538, %v4535
    %v4584 = vpack.c.b16 %v4542, %v4539
    %v4585 = vpack.c.b16 %v4543, %v4540
    %v4586 = vpack.c.b16 %v4544, %v4541
    %v4587 = vpack.c.b16 %v4548, %v4545
    %v4588 = vpack.c.b16 %v4549, %v4546
    %v4589 = vpack.c.b16 %v4550, %v4547
    %v4590 = vpack.c.b16 %v4554, %v4551
    %v4591 = vpack.c.b16 %v4555, %v4552
    %v4592 = vpack.c.b16 %v4556, %v4553
    %v4593 = vpack.c.b16 %v4560, %v4557
    %v4594 = vpack.c.b16 %v4561, %v4558
    %v4595 = vpack.c.b16 %v4562, %v4559
    %v4596 = vpack.c.b16 %v4566, %v4563
    %v4597 = vpack.c.b16 %v4567, %v4564
    %v4598 = vpack.c.b16 %v4568, %v4565
    %v4599 = vpack.c.b16 %v4572, %v4569
    %v4600 = vpack.c.b16 %v4573, %v4570
    %v4601 = vpack.c.b16 %v4574, %v4571
    %v4602 = vpack.c.b16 %v4578, %v4575
    %v4603 = vpack.c.b16 %v4579, %v4576
    %v4604 = vpack.c.b16 %v4580, %v4577
    %4629 = vmatprep.subr.bf16.mxu0 %v4603
    %4630 = vmatpush1.bf16.msra.mxu0 %v4602
    %4631 = vmatprep.subr.bf16.mxu0 %v4600
    %4632 = vmatpush1.bf16.msra.mxu0 %v4599
    %4633 = vmatprep.subr.bf16.mxu0 %v4597
    %4634 = vmatpush1.bf16.msra.mxu0 %v4596
    %4635 = vmatprep.subr.bf16.mxu0 %v4594
    %4636 = vmatpush1.bf16.msra.mxu0 %v4593
    %4637 = vmatprep.subr.bf16.mxu0 %v4591
    %4638 = vmatpush1.bf16.msra.mxu0 %v4590
    %4639 = vmatprep.subr.bf16.mxu0 %v4588
    %4640 = vmatpush1.bf16.msra.mxu0 %v4587
    %4641 = vmatprep.subr.bf16.mxu0 %v4585
    %4642 = vmatpush1.bf16.msra.mxu0 %v4584
    %4643 = vmatprep.subr.bf16.mxu0 %v4582
    %4644 = vmatpush1.bf16.msra.mxu0 %v4581
    %4645 = vmatprep.subr.bf16.mxu0 0
    %4646 = vmatpush2.bf16.msra.mxu0 0
    %4647 = vmatprep.subr.bf16.mxu0 0
    %4648 = vmatpush2.bf16.msra.mxu0 0
    %4649 = vmatprep.subr.bf16.mxu0 0
    %4650 = vmatpush2.bf16.msra.mxu0 0
    %4651 = vmatprep.subr.bf16.mxu0 0
    %4652 = vmatpush2.bf16.msra.mxu0 0
    %4653 = vmatprep.subr.bf16.mxu0 0
    %4654 = vmatpush2.bf16.msra.mxu0 0
    %4655 = vmatprep.subr.bf16.mxu0 0
    %4656 = vmatpush2.bf16.msra.mxu0 0
    %4657 = vmatprep.subr.bf16.mxu0 0
    %4658 = vmatpush2.bf16.msra.mxu0 0
    %4659 = vmatprep.subr.bf16.mxu0 0
    %4660 = vmatpush2.bf16.msra.mxu0 0
    %4661 = vmatprep.mubr.bf16.mxu0 0
    %4662 = vmatmul.mubr.bf16.gmra.mxu0 %v4137
    %v4663 = vpop.f32.mrf.mxu0
    %v4664 = vadd.f32 0.0, %v4663
    %v4665 = vpop.f32.mrf.mxu0
    %v4666 = vadd.f32 0.0, %v4665
    %v4667 = vpop.f32.mrf.mxu0
    %v4668 = vadd.f32 0.0, %v4667
    %v4669 = vpop.f32.mrf.mxu0
    %v4670 = vadd.f32 0.0, %v4669
    %4671 = vdwg.mxu0
    %4672 = vmatprep.subr.bf16.mxu0 0
    %4673 = vmatpush1.bf16.msra.mxu0 %v4604
    %4674 = vmatprep.subr.bf16.mxu0 0
    %4675 = vmatpush1.bf16.msra.mxu0 %v4601
    %4676 = vmatprep.subr.bf16.mxu0 0
    %4677 = vmatpush1.bf16.msra.mxu0 %v4598
    %4678 = vmatprep.subr.bf16.mxu0 0
    %4679 = vmatpush1.bf16.msra.mxu0 %v4595
    %4680 = vmatprep.subr.bf16.mxu0 0
    %4681 = vmatpush1.bf16.msra.mxu0 %v4592
    %4682 = vmatprep.subr.bf16.mxu0 0
    %4683 = vmatpush1.bf16.msra.mxu0 %v4589
    %4684 = vmatprep.subr.bf16.mxu0 0
    %4685 = vmatpush1.bf16.msra.mxu0 %v4586
    %4686 = vmatprep.subr.bf16.mxu0 0
    %4687 = vmatpush1.bf16.msra.mxu0 %v4583
    %4688 = vmatprep.subr.bf16.mxu0 0
    %4689 = vmatpush2.bf16.msra.mxu0 0
    %4690 = vmatprep.subr.bf16.mxu0 0
    %4691 = vmatpush2.bf16.msra.mxu0 0
    %4692 = vmatprep.subr.bf16.mxu0 0
    %4693 = vmatpush2.bf16.msra.mxu0 0
    %4694 = vmatprep.subr.bf16.mxu0 0
    %4695 = vmatpush2.bf16.msra.mxu0 0
    %4696 = vmatprep.subr.bf16.mxu0 0
    %4697 = vmatpush2.bf16.msra.mxu0 0
    %4698 = vmatprep.subr.bf16.mxu0 0
    %4699 = vmatpush2.bf16.msra.mxu0 0
    %4700 = vmatprep.subr.bf16.mxu0 0
    %4701 = vmatpush2.bf16.msra.mxu0 0
    %4702 = vmatprep.subr.bf16.mxu0 0
    %4703 = vmatpush2.bf16.msra.mxu0 0
    %4704 = vmatprep.mubr.bf16.mxu0 0
    %4705 = vmatmul.mubr.bf16.gmra.mxu0 %v4137
    %v4706 = vpop.f32.mrf.mxu0
    %v4707 = vadd.f32 0.0, %v4706
    %v4708 = vpop.f32.mrf.mxu0
    %v4709 = vpop.f32.mrf.mxu0
    %v4710 = vadd.f32 0.0, %v4709
    %v4711 = vpop.f32.mrf.mxu0
    %4712 = vdwg.mxu0
    %v4713 = vadd.f32 %v4463, %v4664
    %v4714 = vadd.f32 %v4466, %v4668
    %v4715 = vxor.u32 %v4713, 2147483648
    %v4716 = vxor.u32 %v4714, 2147483648
    %v4717 = vmul.f32 %v4715, 1.442695
    %v4718 = vpow.pop %v4717
    %v4719 = vmul.f32 %v4716, 1.442695
    %v4720 = vpow.pop %v4719
    %v4721 = vadd.f32 %v4718, 1.0
    %v4722 = vadd.f32 %v4720, 1.0
    %v4723 = vrcp.pop %v4721
    %v4724 = vmul.f32 1.0, %v4723
    %v4725 = vrcp.pop %v4722
    %v4726 = vmul.f32 1.0, %v4725
    %v4727 = vadd.f32 %v4464, %v4666
    %v4728 = vadd.f32 %v4467, %v4670
    %v4729 = vxor.u32 %v4727, 2147483648
    %v4730 = vxor.u32 %v4728, 2147483648
    %v4731 = vmul.f32 %v4729, 1.442695
    %v4732 = vpow.pop %v4731
    %v4733 = vmul.f32 %v4730, 1.442695
    %v4734 = vpow.pop %v4733
    %v4735 = vadd.f32 %v4732, 1.0
    %v4736 = vadd.f32 %v4734, 1.0
    %v4737 = vrcp.pop %v4735
    %v4738 = vmul.f32 1.0, %v4737
    %v4739 = vrcp.pop %v4736
    %v4740 = vmul.f32 1.0, %v4739
    %v4741 = vadd.f32 %v4707, %v105
    %v4742 = vadd.f32 %v4710, %v105
    %v4743 = vmul.f32 %v4724, %v4741
    %v4744 = vmul.f32 %v4726, %v4742
    %v4745 = vadd.f32 %v4465, %v4743
    %v4746 = vadd.f32 %v4468, %v4744
    %v4747 = vtanh.pop %v4745
    %v4748 = vtanh.pop %v4746
    %v4749 = vsub.f32 1.0, %v4738
    %v4750 = vsub.f32 1.0, %v4740
    %v4751 = vmul.f32 %v4749, %v4747
    %v4752 = vmul.f32 %v4750, %v4748
    %v4753 = vmul.f32 %v4738, %v4135
    %v4754 = vmul.f32 %v4740, %v4136
    %v4755 = vadd.f32 %v4751, %v4753
    %v4756 = vadd.f32 %v4752, %v4754
    %v4757 = vpack.c.bf16 %v4756, %v4755
    %v4759 = vunpack.c.l.b16 %v4757
    %v4760 = vunpack.c.h.b16 %v4757
    %v4761 = vpack.c.b16 %v4759, %v4759
    %v4762 = vpack.c.b16 %v4760, %v4760
    %s4765 = scalar_lea.vmem [#allocation12], 56
    %4766 = vst [vmem:[%s4765] sm:$0xf] %v4761
    %4767 = vst [vmem:[%s4765 + $0x4] sm:$0xf] %v4762
    %v4768 = vld [vmem:[#allocation7] sm:$0xff]
    %v4769 = vld [vmem:[#allocation7 + $0x8] sm:$0xf]
    %v4770 = vld [vmem:[#allocation7 + $0xc] sm:$0xff]
    %v4771 = vld [vmem:[#allocation7 + $0x14] sm:$0xf]
    %v4772 = vunpack.c.l.bf16 %v4768
    %v4773 = vunpack.c.h.bf16 %v4768
    %v4774 = vunpack.c.l.bf16 %v4769
    %v4775 = vunpack.c.l.bf16 %v4770
    %v4776 = vunpack.c.h.bf16 %v4770
    %v4777 = vunpack.c.l.bf16 %v4771
    %v4778 = vld [vmem:[#allocation10] sm:$0xff]
    %v4779 = vld [vmem:[#allocation10 + $0x8] sm:$0xf]
    %v4780 = vld [vmem:[#allocation10 + $0xc] sm:$0xff]
    %v4781 = vld [vmem:[#allocation10 + $0x14] sm:$0xf]
    %v4782 = vld [vmem:[#allocation10 + $0x18] sm:$0xff]
    %v4783 = vld [vmem:[#allocation10 + $0x20] sm:$0xf]
    %v4784 = vld [vmem:[#allocation10 + $0x24] sm:$0xff]
    %v4785 = vld [vmem:[#allocation10 + $0x2c] sm:$0xf]
    %v4786 = vld [vmem:[#allocation10 + $0x30] sm:$0xff]
    %v4787 = vld [vmem:[#allocation10 + $0x38] sm:$0xf]
    %v4788 = vld [vmem:[#allocation10 + $0x3c] sm:$0xff]
    %v4789 = vld [vmem:[#allocation10 + $0x44] sm:$0xf]
    %v4790 = vld [vmem:[#allocation10 + $0x48] sm:$0xff]
    %v4791 = vld [vmem:[#allocation10 + $0x50] sm:$0xf]
    %v4792 = vld [vmem:[#allocation10 + $0x54] sm:$0xff]
    %v4793 = vld [vmem:[#allocation10 + $0x5c] sm:$0xf]
    %v4794 = vld [vmem:[#allocation10 + $0x60] sm:$0xff]
    %v4795 = vld [vmem:[#allocation10 + $0x68] sm:$0xf]
    %v4796 = vld [vmem:[#allocation10 + $0x6c] sm:$0xff]
    %v4797 = vld [vmem:[#allocation10 + $0x74] sm:$0xf]
    %v4798 = vld [vmem:[#allocation10 + $0x78] sm:$0xff]
    %v4799 = vld [vmem:[#allocation10 + $0x80] sm:$0xf]
    %v4800 = vld [vmem:[#allocation10 + $0x84] sm:$0xff]
    %v4801 = vld [vmem:[#allocation10 + $0x8c] sm:$0xf]
    %v4802 = vld [vmem:[#allocation10 + $0x90] sm:$0xff]
    %v4803 = vld [vmem:[#allocation10 + $0x98] sm:$0xf]
    %v4804 = vld [vmem:[#allocation10 + $0x9c] sm:$0xff]
    %v4805 = vld [vmem:[#allocation10 + $0xa4] sm:$0xf]
    %v4806 = vld [vmem:[#allocation10 + $0xa8] sm:$0xff]
    %v4807 = vld [vmem:[#allocation10 + $0xb0] sm:$0xf]
    %v4808 = vld [vmem:[#allocation10 + $0xb4] sm:$0xff]
    %v4809 = vld [vmem:[#allocation10 + $0xbc] sm:$0xf]
    %v4842 = vunpack.c.l.b16 %v4778
    %v4843 = vunpack.c.h.b16 %v4778
    %v4844 = vunpack.c.l.b16 %v4779
    %v4845 = vunpack.c.l.b16 %v4780
    %v4846 = vunpack.c.h.b16 %v4780
    %v4847 = vunpack.c.l.b16 %v4781
    %v4848 = vunpack.c.l.b16 %v4782
    %v4849 = vunpack.c.h.b16 %v4782
    %v4850 = vunpack.c.l.b16 %v4783
    %v4851 = vunpack.c.l.b16 %v4784
    %v4852 = vunpack.c.h.b16 %v4784
    %v4853 = vunpack.c.l.b16 %v4785
    %v4854 = vunpack.c.l.b16 %v4786
    %v4855 = vunpack.c.h.b16 %v4786
    %v4856 = vunpack.c.l.b16 %v4787
    %v4857 = vunpack.c.l.b16 %v4788
    %v4858 = vunpack.c.h.b16 %v4788
    %v4859 = vunpack.c.l.b16 %v4789
    %v4860 = vunpack.c.l.b16 %v4790
    %v4861 = vunpack.c.h.b16 %v4790
    %v4862 = vunpack.c.l.b16 %v4791
    %v4863 = vunpack.c.l.b16 %v4792
    %v4864 = vunpack.c.h.b16 %v4792
    %v4865 = vunpack.c.l.b16 %v4793
    %v4866 = vunpack.c.l.b16 %v4794
    %v4867 = vunpack.c.h.b16 %v4794
    %v4868 = vunpack.c.l.b16 %v4795
    %v4869 = vunpack.c.l.b16 %v4796
    %v4870 = vunpack.c.h.b16 %v4796
    %v4871 = vunpack.c.l.b16 %v4797
    %v4872 = vunpack.c.l.b16 %v4798
    %v4873 = vunpack.c.h.b16 %v4798
    %v4874 = vunpack.c.l.b16 %v4799
    %v4875 = vunpack.c.l.b16 %v4800
    %v4876 = vunpack.c.h.b16 %v4800
    %v4877 = vunpack.c.l.b16 %v4801
    %v4878 = vunpack.c.l.b16 %v4802
    %v4879 = vunpack.c.h.b16 %v4802
    %v4880 = vunpack.c.l.b16 %v4803
    %v4881 = vunpack.c.l.b16 %v4804
    %v4882 = vunpack.c.h.b16 %v4804
    %v4883 = vunpack.c.l.b16 %v4805
    %v4884 = vunpack.c.l.b16 %v4806
    %v4885 = vunpack.c.h.b16 %v4806
    %v4886 = vunpack.c.l.b16 %v4807
    %v4887 = vunpack.c.l.b16 %v4808
    %v4888 = vunpack.c.h.b16 %v4808
    %v4889 = vunpack.c.l.b16 %v4809
    %v4890 = vpack.c.b16 %v4845, %v4842
    %v4891 = vpack.c.b16 %v4846, %v4843
    %v4892 = vpack.c.b16 %v4847, %v4844
    %v4893 = vpack.c.b16 %v4851, %v4848
    %v4894 = vpack.c.b16 %v4852, %v4849
    %v4895 = vpack.c.b16 %v4853, %v4850
    %v4896 = vpack.c.b16 %v4857, %v4854
    %v4897 = vpack.c.b16 %v4858, %v4855
    %v4898 = vpack.c.b16 %v4859, %v4856
    %v4899 = vpack.c.b16 %v4863, %v4860
    %v4900 = vpack.c.b16 %v4864, %v4861
    %v4901 = vpack.c.b16 %v4865, %v4862
    %v4902 = vpack.c.b16 %v4869, %v4866
    %v4903 = vpack.c.b16 %v4870, %v4867
    %v4904 = vpack.c.b16 %v4871, %v4868
    %v4905 = vpack.c.b16 %v4875, %v4872
    %v4906 = vpack.c.b16 %v4876, %v4873
    %v4907 = vpack.c.b16 %v4877, %v4874
    %v4908 = vpack.c.b16 %v4881, %v4878
    %v4909 = vpack.c.b16 %v4882, %v4879
    %v4910 = vpack.c.b16 %v4883, %v4880
    %v4911 = vpack.c.b16 %v4887, %v4884
    %v4912 = vpack.c.b16 %v4888, %v4885
    %v4913 = vpack.c.b16 %v4889, %v4886
    %4938 = vmatprep.subr.bf16.mxu0 %v4912
    %4939 = vmatpush1.bf16.msra.mxu0 %v4911
    %4940 = vmatprep.subr.bf16.mxu0 %v4909
    %4941 = vmatpush1.bf16.msra.mxu0 %v4908
    %4942 = vmatprep.subr.bf16.mxu0 %v4906
    %4943 = vmatpush1.bf16.msra.mxu0 %v4905
    %4944 = vmatprep.subr.bf16.mxu0 %v4903
    %4945 = vmatpush1.bf16.msra.mxu0 %v4902
    %4946 = vmatprep.subr.bf16.mxu0 %v4900
    %4947 = vmatpush1.bf16.msra.mxu0 %v4899
    %4948 = vmatprep.subr.bf16.mxu0 %v4897
    %4949 = vmatpush1.bf16.msra.mxu0 %v4896
    %4950 = vmatprep.subr.bf16.mxu0 %v4894
    %4951 = vmatpush1.bf16.msra.mxu0 %v4893
    %4952 = vmatprep.subr.bf16.mxu0 %v4891
    %4953 = vmatpush1.bf16.msra.mxu0 %v4890
    %4954 = vmatprep.subr.bf16.mxu0 0
    %4955 = vmatpush2.bf16.msra.mxu0 0
    %4956 = vmatprep.subr.bf16.mxu0 0
    %4957 = vmatpush2.bf16.msra.mxu0 0
    %4958 = vmatprep.subr.bf16.mxu0 0
    %4959 = vmatpush2.bf16.msra.mxu0 0
    %4960 = vmatprep.subr.bf16.mxu0 0
    %4961 = vmatpush2.bf16.msra.mxu0 0
    %4962 = vmatprep.subr.bf16.mxu0 0
    %4963 = vmatpush2.bf16.msra.mxu0 0
    %4964 = vmatprep.subr.bf16.mxu0 0
    %4965 = vmatpush2.bf16.msra.mxu0 0
    %4966 = vmatprep.subr.bf16.mxu0 0
    %4967 = vmatpush2.bf16.msra.mxu0 0
    %4968 = vmatprep.subr.bf16.mxu0 0
    %4969 = vmatpush2.bf16.msra.mxu0 0
    %4970 = vmatprep.mubr.bf16.mxu0 0
    %4971 = vmatmul.mubr.bf16.gmra.mxu0 %v4447
    %v4972 = vpop.f32.mrf.mxu0
    %v4973 = vadd.f32 0.0, %v4972
    %v4974 = vpop.f32.mrf.mxu0
    %v4975 = vadd.f32 0.0, %v4974
    %v4976 = vpop.f32.mrf.mxu0
    %v4977 = vadd.f32 0.0, %v4976
    %v4978 = vpop.f32.mrf.mxu0
    %v4979 = vadd.f32 0.0, %v4978
    %4980 = vdwg.mxu0
    %4981 = vmatprep.subr.bf16.mxu0 0
    %4982 = vmatpush1.bf16.msra.mxu0 %v4913
    %4983 = vmatprep.subr.bf16.mxu0 0
    %4984 = vmatpush1.bf16.msra.mxu0 %v4910
    %4985 = vmatprep.subr.bf16.mxu0 0
    %4986 = vmatpush1.bf16.msra.mxu0 %v4907
    %4987 = vmatprep.subr.bf16.mxu0 0
    %4988 = vmatpush1.bf16.msra.mxu0 %v4904
    %4989 = vmatprep.subr.bf16.mxu0 0
    %4990 = vmatpush1.bf16.msra.mxu0 %v4901
    %4991 = vmatprep.subr.bf16.mxu0 0
    %4992 = vmatpush1.bf16.msra.mxu0 %v4898
    %4993 = vmatprep.subr.bf16.mxu0 0
    %4994 = vmatpush1.bf16.msra.mxu0 %v4895
    %4995 = vmatprep.subr.bf16.mxu0 0
    %4996 = vmatpush1.bf16.msra.mxu0 %v4892
    %4997 = vmatprep.subr.bf16.mxu0 0
    %4998 = vmatpush2.bf16.msra.mxu0 0
    %4999 = vmatprep.subr.bf16.mxu0 0
    %5000 = vmatpush2.bf16.msra.mxu0 0
    %5001 = vmatprep.subr.bf16.mxu0 0
    %5002 = vmatpush2.bf16.msra.mxu0 0
    %5003 = vmatprep.subr.bf16.mxu0 0
    %5004 = vmatpush2.bf16.msra.mxu0 0
    %5005 = vmatprep.subr.bf16.mxu0 0
    %5006 = vmatpush2.bf16.msra.mxu0 0
    %5007 = vmatprep.subr.bf16.mxu0 0
    %5008 = vmatpush2.bf16.msra.mxu0 0
    %5009 = vmatprep.subr.bf16.mxu0 0
    %5010 = vmatpush2.bf16.msra.mxu0 0
    %5011 = vmatprep.subr.bf16.mxu0 0
    %5012 = vmatpush2.bf16.msra.mxu0 0
    %5013 = vmatprep.mubr.bf16.mxu0 0
    %5014 = vmatmul.mubr.bf16.gmra.mxu0 %v4447
    %v5015 = vpop.f32.mrf.mxu0
    %v5016 = vadd.f32 0.0, %v5015
    %v5017 = vpop.f32.mrf.mxu0
    %v5018 = vpop.f32.mrf.mxu0
    %v5019 = vadd.f32 0.0, %v5018
    %v5020 = vpop.f32.mrf.mxu0
    %5021 = vdwg.mxu0
    %v5022 = vadd.f32 %v4772, %v4973
    %v5023 = vadd.f32 %v4775, %v4977
    %v5024 = vxor.u32 %v5022, 2147483648
    %v5025 = vxor.u32 %v5023, 2147483648
    %v5026 = vmul.f32 %v5024, 1.442695
    %v5027 = vpow.pop %v5026
    %v5028 = vmul.f32 %v5025, 1.442695
    %v5029 = vpow.pop %v5028
    %v5030 = vadd.f32 %v5027, 1.0
    %v5031 = vadd.f32 %v5029, 1.0
    %v5032 = vrcp.pop %v5030
    %v5033 = vmul.f32 1.0, %v5032
    %v5034 = vrcp.pop %v5031
    %v5035 = vmul.f32 1.0, %v5034
    %v5036 = vadd.f32 %v4773, %v4975
    %v5037 = vadd.f32 %v4776, %v4979
    %v5038 = vxor.u32 %v5036, 2147483648
    %v5039 = vxor.u32 %v5037, 2147483648
    %v5040 = vmul.f32 %v5038, 1.442695
    %v5041 = vpow.pop %v5040
    %v5042 = vmul.f32 %v5039, 1.442695
    %v5043 = vpow.pop %v5042
    %v5044 = vadd.f32 %v5041, 1.0
    %v5045 = vadd.f32 %v5043, 1.0
    %v5046 = vrcp.pop %v5044
    %v5047 = vmul.f32 1.0, %v5046
    %v5048 = vrcp.pop %v5045
    %v5049 = vmul.f32 1.0, %v5048
    %v5050 = vadd.f32 %v5016, %v112
    %v5051 = vadd.f32 %v5019, %v112
    %v5052 = vmul.f32 %v5033, %v5050
    %v5053 = vmul.f32 %v5035, %v5051
    %v5054 = vadd.f32 %v4774, %v5052
    %v5055 = vadd.f32 %v4777, %v5053
    %v5056 = vtanh.pop %v5054
    %v5057 = vtanh.pop %v5055
    %v5058 = vsub.f32 1.0, %v5047
    %v5059 = vsub.f32 1.0, %v5049
    %v5060 = vmul.f32 %v5058, %v5056
    %v5061 = vmul.f32 %v5059, %v5057
    %v5062 = vmul.f32 %v5047, %v4445
    %v5063 = vmul.f32 %v5049, %v4446
    %v5064 = vadd.f32 %v5060, %v5062
    %v5065 = vadd.f32 %v5061, %v5063
    %v5066 = vpack.c.bf16 %v5065, %v5064
    %v5068 = vunpack.c.l.b16 %v5066
    %v5069 = vunpack.c.h.b16 %v5066
    %v5070 = vpack.c.b16 %v5068, %v5068
    %v5071 = vpack.c.b16 %v5069, %v5069
    %5074 = vst [vmem:[#allocation13] sm:$0xf] %v5070
    %5075 = vst [vmem:[#allocation13 + $0x4] sm:$0xf] %v5071
    %5076 = vst [vmem:[#allocation2] sm:$0xff] %v4755
    %5077 = vst [vmem:[#allocation2 + $0x8] sm:$0xff] %v4756
    %5078 = vst [vmem:[#allocation3] sm:$0xff] %v5064
    %5079 = vst [vmem:[#allocation3 + $0x8] sm:$0xff] %v5065
    // Predicated region
    $region46: #{tpu_custom_call.1} parent=1 // pred_check
      _
    $region47: #{tpu_custom_call.1} parent=1 // pred_check_branch
      %5081 = sbr.rel (0) target = $region49
    $region48: #{tpu_custom_call.1} parent=1 // pred_region
      %s5083 = ssub.s32 1024, 1024
      %5084 = vsyncadd [#allocation6], %s5083
      %s5085 = sshll.u32 [#allocation12], 4
      %s5086 = int_to_ptr.vmem [resolvable:$true] %s5085
      %5091 = dma.vmem_to_hbm [thread:$0]  %s5086, 1024, %s6, [#allocation6], 64, 64, 4
    $region49: #{tpu_custom_call.1} parent=1 // pred_fallthru
      _
    // Predicated region
    $region50: #{tpu_custom_call.1} parent=1 // pred_check
      _
    $region51: #{tpu_custom_call.1} parent=1 // pred_check_branch
      %5093 = sbr.rel (0) target = $region53
    $region52: #{tpu_custom_call.1} parent=1 // pred_region
      %s5094 = ssub.s32 0, 0
      %s5095 = smul.u32 8, %s5094
      %s5097 = ssub.s32 1024, 1024
      %5098 = vsyncadd [#allocation14], %s5097
      %s5099 = smul.addr %s5095, 2
      %s5100 = smul.addr %s5099, 64
      %s5101 = scalar_lea.hbm %s7, %s5100
      %s5102 = sshll.u32 [#allocation13], 4
      %s5103 = int_to_ptr.vmem [resolvable:$true] %s5102
      %5108 = dma.vmem_to_hbm [thread:$0]  %s5103, 1024, %s5101, [#allocation14], 64, 64, 4
    $region53: #{tpu_custom_call.1} parent=1 // pred_fallthru
      _
    // Predicated region
    $region54: #{tpu_custom_call.1} parent=1 // pred_check
      _
    $region55: #{tpu_custom_call.1} parent=1 // pred_check_branch
      %5110 = sbr.rel (0) target = $region57
    $region56: #{tpu_custom_call.1} parent=1 // pred_region
      %5111 = dma.done [#allocation6], 1024
    $region57: #{tpu_custom_call.1} parent=1 // pred_fallthru
      _
    // Predicated region
    $region58: #{tpu_custom_call.1} parent=1 // pred_check
      _
    $region59: #{tpu_custom_call.1} parent=1 // pred_check_branch
      %5113 = sbr.rel (0) target = $region61
    $region60: #{tpu_custom_call.1} parent=1 // pred_region
      %5114 = dma.done [#allocation14], 1024
    $region61: #{tpu_custom_call.1} parent=1 // pred_fallthru
      _
    %5115 = vsyncpa [#allocation5], 1
    %5116 = vsyncpa [#allocation8], 1
    %5117 = vsyncpa [#allocation11], 1
    %5118 = vsyncpa [#allocation6], 1
    %5119 = vsyncpa [#allocation14], 1

</llo_original>
